<compile_context>
chip_gen: v7x
topology: tpu7x:2x2x1
jax: 0.10.0
libtpu: 0.0.40
codegen_flags: <defaults>
</compile_context>

<pallas_src>
import functools

import jax
import jax.numpy as jnp
import numpy as np
from jax.experimental import pallas as pl
from jax.experimental.pallas import tpu as pltpu

_EPS = 1e-5      # nn.BatchNorm2d default eps
_LANES = 128     # pad channels to a full lane width


# ------------------------------ fused kernel ------------------------------- #
def _fused_residual_block_kernel(p1_ref, xp_ref, w1_ref, w2_ref, wp_ref, gb_ref,
                                 msk_ref, o_ref, y1s_ref, *,
                                 m, wo, ksize, pad, pad_rows, has_proj):
    """conv1+BN1+ReLU -> conv2+BN2 (+proj1x1+BNp) + add + ReLU, fully fused."""
    inv_m = jnp.float32(1.0 / m)

    def batch_norm(y, g, b):
        # one-pass batch statistics over the M = N*H*W rows (f32 throughout)
        mean = jnp.sum(y, axis=0, keepdims=True) * inv_m
        ex2 = jnp.sum(y * y, axis=0, keepdims=True) * inv_m
        var = jnp.maximum(ex2 - mean * mean, 0.0)
        return (y - mean) * jax.lax.rsqrt(var + _EPS) * g + b

    gb = gb_ref[...]   # (8, CP) f32: rows = g1, b1, g2, b2, gp, bp, 0, 0

    # ---- conv1 (im2col matmul, bf16 operands, f32 accumulate) + BN1 + ReLU ----
    y = jnp.dot(p1_ref[...], w1_ref[...], preferred_element_type=jnp.float32)
    y1 = jnp.maximum(batch_norm(y, gb[0:1], gb[1:2]), 0.0)          # (m, CP) f32

    # ---- stash y1 in VMEM with an aligned zero halo; it never goes back to HBM ----
    y1s_ref[...] = jnp.zeros_like(y1s_ref)
    y1s_ref[pl.ds(pad_rows, m), :] = y1

    # ---- conv2 = sum of k*k shifted sub-matmuls, accumulated in f32 ----
    acc = jnp.zeros_like(y1)
    for kh in range(ksize):
        for kw in range(ksize):
            dh, dw = kh - pad, kw - pad
            start = pad_rows + dh * wo + dw                  # static row offset
            win = y1s_ref[pl.ds(start, m), :] * msk_ref[kh * ksize + kw]
            acc = acc + jnp.dot(win.astype(jnp.bfloat16),
                                w2_ref[kh * ksize + kw],
                                preferred_element_type=jnp.float32)
    y2 = batch_norm(acc, gb[2:3], gb[3:4])

    # ---- residual branch: 1x1 strided projection conv + BNp (or identity) ----
    if has_proj:
        r = jnp.dot(xp_ref[...], wp_ref[...], preferred_element_type=jnp.float32)
        r = batch_norm(r, gb[4:5], gb[5:6])
    else:
        r = xp_ref[...]

    o_ref[...] = jnp.maximum(y2 + r, 0.0)


# ------------------------------ JAX-side glue ------------------------------- #
def _full_spec(shape):
    nd = len(shape)
    return pl.BlockSpec(shape, lambda i, _nd=nd: (0,) * _nd)


def _im2col(x_nhwc, ksize, stride, pad):
    """Patch extraction for conv1 (layout plumbing only; the hot path is in-kernel)."""
    n, h, w, c = x_nhwc.shape
    xp = jnp.pad(x_nhwc, ((0, 0), (pad, pad), (pad, pad), (0, 0)))
    ho = (h + 2 * pad - ksize) // stride + 1
    wo = (w + 2 * pad - ksize) // stride + 1
    cols = []
    for kh in range(ksize):
        for kw in range(ksize):
            cols.append(xp[:, kh:kh + stride * ho:stride, kw:kw + stride * wo:stride, :])
    patches = jnp.concatenate(cols, axis=-1)                 # (N, Ho, Wo, k*k*C)
    return patches.reshape(n * ho * wo, ksize * ksize * c), (n, ho, wo)


def _w_oihw_to_mat(w_oihw):
    # (Cout, Cin, KH, KW) -> (KH*KW*Cin, Cout), same ordering as _im2col columns.
    return jnp.transpose(w_oihw, (2, 3, 1, 0)).reshape(-1, w_oihw.shape[0])


def _pad_cols(a, cp):
    return jnp.pad(a, ((0, 0), (0, cp - a.shape[1])))


def _w2_taps(w2, ksize, cp):
    # (Cout, Cin, KH, KW) -> (KH*KW, CP, CP) per-tap matrices, zero padded to lane width.
    cout, cin = w2.shape[0], w2.shape[1]
    taps = jnp.transpose(w2, (2, 3, 1, 0)).reshape(ksize * ksize, cin, cout)
    return jnp.pad(taps, ((0, 0), (0, cp - cin), (0, cp - cout))).astype(jnp.bfloat16)


def _conv2_masks(n, ho, wo, ksize, pad):
    # (k*k, m, 1) f32 validity masks for the shifted-window conv2 (trace-time constant).
    ii, jj = np.meshgrid(np.arange(ho), np.arange(wo), indexing="ij")
    i_flat = np.tile(ii.reshape(-1), n)
    j_flat = np.tile(jj.reshape(-1), n)
    masks = []
    for kh in range(ksize):
        for kw in range(ksize):
            dh, dw = kh - pad, kw - pad
            masks.append((i_flat + dh >= 0) & (i_flat + dh < ho) &
                         (j_flat + dw >= 0) & (j_flat + dw < wo))
    m = n * ho * wo
    return jnp.asarray(np.stack(masks).astype(np.float32).reshape(ksize * ksize, m, 1))


def residual_block_forward(x_nchw, params, cfg):
    k, s, p = cfg["kernel_size"], cfg["stride"], cfg["padding"]
    cin, cout = cfg["in_channel"], cfg["out_channel"]
    cp = ((cout + _LANES - 1) // _LANES) * _LANES            # lane-dense channel width

    x = jnp.transpose(x_nchw, (0, 2, 3, 1)).astype(jnp.float32)   # NCHW -> NHWC
    n = x.shape[0]

    patches1, (_, ho, wo) = _im2col(x, k, s, p)
    m = n * ho * wo
    reach = max(p, k - 1 - p) * (wo + 1)                     # max flat row displacement
    pad_rows = ((reach + 7) // 8) * 8                        # aligned zero halo

    w1m = _pad_cols(_w_oihw_to_mat(params["w1"]), cp).astype(jnp.bfloat16)  # (k*k*Cin, CP)
    w2t = _w2_taps(params["w2"], k, cp)                                     # (k*k, CP, CP)
    masks = _conv2_masks(n, ho, wo, k, p)                                   # (k*k, m, 1)

    has_proj = (s == 2)
    if has_proj:
        xp = x[:, ::s, ::s, :].reshape(m, cin).astype(jnp.bfloat16)
        wpm = _pad_cols(_w_oihw_to_mat(params["wp"]), cp).astype(jnp.bfloat16)
        gp, bp = params["gp"], params["bp"]
    else:
        # TODO(synk): identity residual is only valid when cin == cout (same as PyTorch).
        xp = _pad_cols(x.reshape(m, cin), cp)                # f32 identity residual
        wpm = jnp.zeros((8, cp), jnp.bfloat16)               # unused dummy operand
        gp = jnp.zeros((1, cout), jnp.float32)
        bp = jnp.zeros((1, cout), jnp.float32)

    gb = jnp.concatenate(
        [_pad_cols(params["g1"].astype(jnp.float32), cp),
         _pad_cols(params["b1"].astype(jnp.float32), cp),
         _pad_cols(params["g2"].astype(jnp.float32), cp),
         _pad_cols(params["b2"].astype(jnp.float32), cp),
         _pad_cols(gp.astype(jnp.float32), cp),
         _pad_cols(bp.astype(jnp.float32), cp),
         jnp.zeros((2, cp), jnp.float32)], axis=0)           # (8, CP)

    kernel = functools.partial(
        _fused_residual_block_kernel,
        m=m, wo=wo, ksize=k, pad=p, pad_rows=pad_rows, has_proj=has_proj)

    out = pl.pallas_call(
        kernel,
        out_shape=jax.ShapeDtypeStruct((m, cp), jnp.float32),
        grid=(1,),
        in_specs=[_full_spec(patches1.shape), _full_spec(xp.shape),
                  _full_spec(w1m.shape), _full_spec(w2t.shape),
                  _full_spec(wpm.shape), _full_spec(gb.shape),
                  _full_spec(masks.shape)],
        out_specs=_full_spec((m, cp)),
        scratch_shapes=[pltpu.VMEM((m + 2 * pad_rows, cp), jnp.float32)],
        compiler_params=pltpu.CompilerParams(
            dimension_semantics=("arbitrary",)),
    )(patches1.astype(jnp.bfloat16), xp, w1m, w2t, wpm, gb, masks)

    y = out[:, :cout].reshape(n, ho, wo, cout)
    return jnp.transpose(y, (0, 3, 1, 2))                    # back to NCHW


# --------------------------- pure-JAX reference ----------------------------- #
def _ref_conv(x, w, stride, pad):
    return jax.lax.conv_general_dilated(
        x, w, (stride, stride), [(pad, pad), (pad, pad)],
        dimension_numbers=("NCHW", "OIHW", "NCHW"))


def _ref_bn(x, g, b):
    mean = x.mean(axis=(0, 2, 3), keepdims=True)
    var = jnp.square(x - mean).mean(axis=(0, 2, 3), keepdims=True)
    return (x - mean) * jax.lax.rsqrt(var + _EPS) * g.reshape(1, -1, 1, 1) \
        + b.reshape(1, -1, 1, 1)


def _ref_forward(x, params, cfg):
    k, s, p = cfg["kernel_size"], cfg["stride"], cfg["padding"]
    y = jax.nn.relu(_ref_bn(_ref_conv(x, params["w1"], s, p),
                            params["g1"][0], params["b1"][0]))
    y = _ref_bn(_ref_conv(y, params["w2"], 1, p), params["g2"][0], params["b2"][0])
    if s == 2:
        r = _ref_bn(_ref_conv(x, params["wp"], s, 0), params["gp"][0], params["bp"][0])
    else:
        r = x
    return jax.nn.relu(y + r)


# --------------------------------- main ------------------------------------ #
if __name__ == "__main__":
    cfg = dict(in_channel=4, out_channel=8, kernel_size=3, stride=2,
               padding=1, bias=False, activation="ReLU", n_conv=2)

    key = jax.random.PRNGKey(0)
    ks = jax.random.split(key, 8)
    cin, cout, k = cfg["in_channel"], cfg["out_channel"], cfg["kernel_size"]

    x = jax.random.normal(ks[0], (2, cin, 16, 16), jnp.float32)
    params = {
        "w1": 0.1 * jax.random.normal(ks[1], (cout, cin, k, k), jnp.float32),
        "w2": 0.1 * jax.random.normal(ks[2], (cout, cout, k, k), jnp.float32),
        "wp": 0.1 * jax.random.normal(ks[3], (cout, cin, 1, 1), jnp.float32),
        "g1": 1.0 + 0.1 * jax.random.normal(ks[4], (1, cout), jnp.float32),
        "b1": 0.1 * jax.random.normal(ks[5], (1, cout), jnp.float32),
        "g2": 1.0 + 0.1 * jax.random.normal(ks[6], (1, cout), jnp.float32),
        "b2": 0.1 * jax.random.normal(ks[7], (1, cout), jnp.float32),
        "gp": jnp.ones((1, cout), jnp.float32),
        "bp": jnp.zeros((1, cout), jnp.float32),
    }

    fwd = jax.jit(lambda xx, pp: residual_block_forward(xx, pp, cfg))
    out = jax.block_until_ready(fwd(x, params))
    ref = jax.block_until_ready(_ref_forward(x, params, cfg))

    assert out.shape == (2, cout, 8, 8), out.shape
    # bf16 MXU operands vs f32 reference -> modest tolerance
    np.testing.assert_allclose(np.asarray(out), np.asarray(ref), atol=8e-2, rtol=8e-2)
    print("KERNEL_OK")
</pallas_src>

<mosaic_0001>
module attributes {stable_mosaic.version = 11 : i64} {
  func.func @_fused_residual_block_kernel(%arg0: i32, %arg1: memref<128x36xbf16, #tpu.memory_space<vmem>>, %arg2: memref<128x4xbf16, #tpu.memory_space<vmem>>, %arg3: memref<36x128xbf16, #tpu.memory_space<vmem>>, %arg4: memref<9x128x128xbf16, #tpu.memory_space<vmem>>, %arg5: memref<4x128xbf16, #tpu.memory_space<vmem>>, %arg6: memref<8x128xf32, #tpu.memory_space<vmem>>, %arg7: memref<9x128x1xf32, #tpu.memory_space<vmem>>, %arg8: memref<128x128xf32, #tpu.memory_space<vmem>>, %arg9: memref<160x128xf32, #tpu.memory_space<vmem>>) attributes {dimension_semantics = [#tpu.dimension_semantics<arbitrary>], iteration_bounds = array<i64: 1>, scalar_prefetch = 0 : i64, scratch_operands = 1 : i64, tpu.core_type = #tpu.core_type<tc>, window_params = [{pipeline_mode = #tpu.pipeline_mode<synchronous>, transform_indices = @transform_0, window_bounds = array<i64: 128, 36>}, {pipeline_mode = #tpu.pipeline_mode<synchronous>, transform_indices = @transform_1, window_bounds = array<i64: 128, 4>}, {pipeline_mode = #tpu.pipeline_mode<synchronous>, transform_indices = @transform_2, window_bounds = array<i64: 36, 128>}, {pipeline_mode = #tpu.pipeline_mode<synchronous>, transform_indices = @transform_3, window_bounds = array<i64: 9, 128, 128>}, {pipeline_mode = #tpu.pipeline_mode<synchronous>, transform_indices = @transform_4, window_bounds = array<i64: 4, 128>}, {pipeline_mode = #tpu.pipeline_mode<synchronous>, transform_indices = @transform_5, window_bounds = array<i64: 8, 128>}, {pipeline_mode = #tpu.pipeline_mode<synchronous>, transform_indices = @transform_6, window_bounds = array<i64: 9, 128, 1>}, {pipeline_mode = #tpu.pipeline_mode<synchronous>, transform_indices = @transform_7, window_bounds = array<i64: 128, 128>}]} {
    %c0 = arith.constant 0 : index
    %c0_0 = arith.constant 0 : index
    %0 = vector.load %arg6[%c0, %c0_0] : memref<8x128xf32, #tpu.memory_space<vmem>>, vector<8x128xf32>
    %c0_1 = arith.constant 0 : index
    %c0_2 = arith.constant 0 : index
    %1 = vector.load %arg1[%c0_1, %c0_2] : memref<128x36xbf16, #tpu.memory_space<vmem>>, vector<128x36xbf16>
    %c0_3 = arith.constant 0 : index
    %c0_4 = arith.constant 0 : index
    %2 = vector.load %arg3[%c0_3, %c0_4] : memref<36x128xbf16, #tpu.memory_space<vmem>>, vector<36x128xbf16>
    %cst = arith.constant dense<0.000000e+00> : vector<128x128xf32>
    %3 = tpu.matmul %1, %2, %cst {dimension_numbers = #tpu.dot_dimension_numbers<[1], [0], [0], [1], [0, 0, 1, 1], [], []>} : vector<128x36xbf16>, vector<36x128xbf16>, vector<128x128xf32> -> vector<128x128xf32>
    %4 = vector.extract_strided_slice %0 {offsets = [0, 0], sizes = [1, 128], strides = [1, 1]} : vector<8x128xf32> to vector<1x128xf32>
    %5 = vector.extract_strided_slice %0 {offsets = [1, 0], sizes = [1, 128], strides = [1, 1]} : vector<8x128xf32> to vector<1x128xf32>
    %cst_5 = arith.constant dense<0.000000e+00> : vector<128xf32>
    %6 = vector.multi_reduction <add>, %3, %cst_5 [0] : vector<128x128xf32> to vector<128xf32>
    %7 = vector.shape_cast %6 : vector<128xf32> to vector<1x128xf32>
    %cst_6 = arith.constant 7.812500e-03 : f32
    %8 = vector.broadcast %cst_6 : f32 to vector<1x128xf32>
    %9 = arith.mulf %7, %8 : vector<1x128xf32>
    %10 = arith.mulf %3, %3 : vector<128x128xf32>
    %cst_7 = arith.constant dense<0.000000e+00> : vector<128xf32>
    %11 = vector.multi_reduction <add>, %10, %cst_7 [0] : vector<128x128xf32> to vector<128xf32>
    %12 = vector.shape_cast %11 : vector<128xf32> to vector<1x128xf32>
    %cst_8 = arith.constant 7.812500e-03 : f32
    %13 = vector.broadcast %cst_8 : f32 to vector<1x128xf32>
    %14 = arith.mulf %12, %13 : vector<1x128xf32>
    %15 = arith.mulf %9, %9 : vector<1x128xf32>
    %16 = arith.subf %14, %15 : vector<1x128xf32>
    %cst_9 = arith.constant 0.000000e+00 : f32
    %17 = vector.broadcast %cst_9 : f32 to vector<1x128xf32>
    %18 = arith.maximumf %16, %17 : vector<1x128xf32>
    %19 = vector.broadcast %9 : vector<1x128xf32> to vector<128x128xf32>
    %20 = arith.subf %3, %19 : vector<128x128xf32>
    %cst_10 = arith.constant 9.99999974E-6 : f32
    %21 = vector.broadcast %cst_10 : f32 to vector<1x128xf32>
    %22 = arith.addf %18, %21 : vector<1x128xf32>
    %23 = math.rsqrt %22 : vector<1x128xf32>
    %24 = vector.broadcast %23 : vector<1x128xf32> to vector<128x128xf32>
    %25 = arith.mulf %20, %24 : vector<128x128xf32>
    %26 = vector.broadcast %4 : vector<1x128xf32> to vector<128x128xf32>
    %27 = arith.mulf %25, %26 : vector<128x128xf32>
    %28 = vector.broadcast %5 : vector<1x128xf32> to vector<128x128xf32>
    %29 = arith.addf %27, %28 : vector<128x128xf32>
    %cst_11 = arith.constant 0.000000e+00 : f32
    %30 = vector.broadcast %cst_11 : f32 to vector<128x128xf32>
    %31 = arith.maximumf %29, %30 : vector<128x128xf32>
    %cst_12 = arith.constant 0.000000e+00 : f32
    %32 = vector.broadcast %cst_12 : f32 to vector<160x128xf32>
    %c0_13 = arith.constant 0 : index
    %c0_14 = arith.constant 0 : index
    %33 = vector.load %arg9[%c0_13, %c0_14] : memref<160x128xf32, #tpu.memory_space<vmem>>, vector<160x128xf32>
    tpu.vector_store %arg9[%c0_13, %c0_14], %32 {strides = array<i32>} : memref<160x128xf32, #tpu.memory_space<vmem>>, vector<160x128xf32>,
    %c16 = arith.constant 16 : index
    %c0_15 = arith.constant 0 : index
    %34 = vector.load %arg9[%c16, %c0_15] : memref<160x128xf32, #tpu.memory_space<vmem>>, vector<128x128xf32>
    tpu.vector_store %arg9[%c16, %c0_15], %31 {strides = array<i32>} : memref<160x128xf32, #tpu.memory_space<vmem>>, vector<128x128xf32>,
    %cst_16 = arith.constant 0.000000e+00 : f32
    %35 = vector.broadcast %cst_16 : f32 to vector<128x128xf32>
    %c7 = arith.constant 7 : index
    %c0_17 = arith.constant 0 : index
    %36 = vector.load %arg9[%c7, %c0_17] : memref<160x128xf32, #tpu.memory_space<vmem>>, vector<128x128xf32>
    %c0_18 = arith.constant 0 : index
    %c0_19 = arith.constant 0 : index
    %c0_20 = arith.constant 0 : index
    %37 = vector.load %arg7[%c0_18, %c0_19, %c0_20] : memref<9x128x1xf32, #tpu.memory_space<vmem>>, vector<1x128x1xf32>
    %38 = vector.shape_cast %37 : vector<1x128x1xf32> to vector<128x1xf32>
    %39 = vector.broadcast %38 : vector<128x1xf32> to vector<128x128xf32>
    %40 = arith.mulf %36, %39 : vector<128x128xf32>
    %41 = arith.truncf %40 : vector<128x128xf32> to vector<128x128xbf16>
    %c0_21 = arith.constant 0 : index
    %c0_22 = arith.constant 0 : index
    %c0_23 = arith.constant 0 : index
    %42 = vector.load %arg4[%c0_21, %c0_22, %c0_23] : memref<9x128x128xbf16, #tpu.memory_space<vmem>>, vector<1x128x128xbf16>
    %43 = vector.shape_cast %42 : vector<1x128x128xbf16> to vector<128x128xbf16>
    %cst_24 = arith.constant dense<0.000000e+00> : vector<128x128xf32>
    %44 = tpu.matmul %41, %43, %cst_24 {dimension_numbers = #tpu.dot_dimension_numbers<[1], [0], [0], [1], [0, 0, 1, 1], [], []>} : vector<128x128xbf16>, vector<128x128xbf16>, vector<128x128xf32> -> vector<128x128xf32>
    %45 = arith.addf %35, %44 : vector<128x128xf32>
    %c8 = arith.constant 8 : index
    %c0_25 = arith.constant 0 : index
    %46 = vector.load %arg9[%c8, %c0_25] : memref<160x128xf32, #tpu.memory_space<vmem>>, vector<128x128xf32>
    %c1 = arith.constant 1 : index
    %c0_26 = arith.constant 0 : index
    %c0_27 = arith.constant 0 : index
    %47 = vector.load %arg7[%c1, %c0_26, %c0_27] : memref<9x128x1xf32, #tpu.memory_space<vmem>>, vector<1x128x1xf32>
    %48 = vector.shape_cast %47 : vector<1x128x1xf32> to vector<128x1xf32>
    %49 = vector.broadcast %48 : vector<128x1xf32> to vector<128x128xf32>
    %50 = arith.mulf %46, %49 : vector<128x128xf32>
    %51 = arith.truncf %50 : vector<128x128xf32> to vector<128x128xbf16>
    %c1_28 = arith.constant 1 : index
    %c0_29 = arith.constant 0 : index
    %c0_30 = arith.constant 0 : index
    %52 = vector.load %arg4[%c1_28, %c0_29, %c0_30] : memref<9x128x128xbf16, #tpu.memory_space<vmem>>, vector<1x128x128xbf16>
    %53 = vector.shape_cast %52 : vector<1x128x128xbf16> to vector<128x128xbf16>
    %cst_31 = arith.constant dense<0.000000e+00> : vector<128x128xf32>
    %54 = tpu.matmul %51, %53, %cst_31 {dimension_numbers = #tpu.dot_dimension_numbers<[1], [0], [0], [1], [0, 0, 1, 1], [], []>} : vector<128x128xbf16>, vector<128x128xbf16>, vector<128x128xf32> -> vector<128x128xf32>
    %55 = arith.addf %45, %54 : vector<128x128xf32>
    %c9 = arith.constant 9 : index
    %c0_32 = arith.constant 0 : index
    %56 = vector.load %arg9[%c9, %c0_32] : memref<160x128xf32, #tpu.memory_space<vmem>>, vector<128x128xf32>
    %c2 = arith.constant 2 : index
    %c0_33 = arith.constant 0 : index
    %c0_34 = arith.constant 0 : index
    %57 = vector.load %arg7[%c2, %c0_33, %c0_34] : memref<9x128x1xf32, #tpu.memory_space<vmem>>, vector<1x128x1xf32>
    %58 = vector.shape_cast %57 : vector<1x128x1xf32> to vector<128x1xf32>
    %59 = vector.broadcast %58 : vector<128x1xf32> to vector<128x128xf32>
    %60 = arith.mulf %56, %59 : vector<128x128xf32>
    %61 = arith.truncf %60 : vector<128x128xf32> to vector<128x128xbf16>
    %c2_35 = arith.constant 2 : index
    %c0_36 = arith.constant 0 : index
    %c0_37 = arith.constant 0 : index
    %62 = vector.load %arg4[%c2_35, %c0_36, %c0_37] : memref<9x128x128xbf16, #tpu.memory_space<vmem>>, vector<1x128x128xbf16>
    %63 = vector.shape_cast %62 : vector<1x128x128xbf16> to vector<128x128xbf16>
    %cst_38 = arith.constant dense<0.000000e+00> : vector<128x128xf32>
    %64 = tpu.matmul %61, %63, %cst_38 {dimension_numbers = #tpu.dot_dimension_numbers<[1], [0], [0], [1], [0, 0, 1, 1], [], []>} : vector<128x128xbf16>, vector<128x128xbf16>, vector<128x128xf32> -> vector<128x128xf32>
    %65 = arith.addf %55, %64 : vector<128x128xf32>
    %c15 = arith.constant 15 : index
    %c0_39 = arith.constant 0 : index
    %66 = vector.load %arg9[%c15, %c0_39] : memref<160x128xf32, #tpu.memory_space<vmem>>, vector<128x128xf32>
    %c3 = arith.constant 3 : index
    %c0_40 = arith.constant 0 : index
    %c0_41 = arith.constant 0 : index
    %67 = vector.load %arg7[%c3, %c0_40, %c0_41] : memref<9x128x1xf32, #tpu.memory_space<vmem>>, vector<1x128x1xf32>
    %68 = vector.shape_cast %67 : vector<1x128x1xf32> to vector<128x1xf32>
    %69 = vector.broadcast %68 : vector<128x1xf32> to vector<128x128xf32>
    %70 = arith.mulf %66, %69 : vector<128x128xf32>
    %71 = arith.truncf %70 : vector<128x128xf32> to vector<128x128xbf16>
    %c3_42 = arith.constant 3 : index
    %c0_43 = arith.constant 0 : index
    %c0_44 = arith.constant 0 : index
    %72 = vector.load %arg4[%c3_42, %c0_43, %c0_44] : memref<9x128x128xbf16, #tpu.memory_space<vmem>>, vector<1x128x128xbf16>
    %73 = vector.shape_cast %72 : vector<1x128x128xbf16> to vector<128x128xbf16>
    %cst_45 = arith.constant dense<0.000000e+00> : vector<128x128xf32>
    %74 = tpu.matmul %71, %73, %cst_45 {dimension_numbers = #tpu.dot_dimension_numbers<[1], [0], [0], [1], [0, 0, 1, 1], [], []>} : vector<128x128xbf16>, vector<128x128xbf16>, vector<128x128xf32> -> vector<128x128xf32>
    %75 = arith.addf %65, %74 : vector<128x128xf32>
    %c16_46 = arith.constant 16 : index
    %c0_47 = arith.constant 0 : index
    %76 = vector.load %arg9[%c16_46, %c0_47] : memref<160x128xf32, #tpu.memory_space<vmem>>, vector<128x128xf32>
    %c4 = arith.constant 4 : index
    %c0_48 = arith.constant 0 : index
    %c0_49 = arith.constant 0 : index
    %77 = vector.load %arg7[%c4, %c0_48, %c0_49] : memref<9x128x1xf32, #tpu.memory_space<vmem>>, vector<1x128x1xf32>
    %78 = vector.shape_cast %77 : vector<1x128x1xf32> to vector<128x1xf32>
    %79 = vector.broadcast %78 : vector<128x1xf32> to vector<128x128xf32>
    %80 = arith.mulf %76, %79 : vector<128x128xf32>
    %81 = arith.truncf %80 : vector<128x128xf32> to vector<128x128xbf16>
    %c4_50 = arith.constant 4 : index
    %c0_51 = arith.constant 0 : index
    %c0_52 = arith.constant 0 : index
    %82 = vector.load %arg4[%c4_50, %c0_51, %c0_52] : memref<9x128x128xbf16, #tpu.memory_space<vmem>>, vector<1x128x128xbf16>
    %83 = vector.shape_cast %82 : vector<1x128x128xbf16> to vector<128x128xbf16>
    %cst_53 = arith.constant dense<0.000000e+00> : vector<128x128xf32>
    %84 = tpu.matmul %81, %83, %cst_53 {dimension_numbers = #tpu.dot_dimension_numbers<[1], [0], [0], [1], [0, 0, 1, 1], [], []>} : vector<128x128xbf16>, vector<128x128xbf16>, vector<128x128xf32> -> vector<128x128xf32>
    %85 = arith.addf %75, %84 : vector<128x128xf32>
    %c17 = arith.constant 17 : index
    %c0_54 = arith.constant 0 : index
    %86 = vector.load %arg9[%c17, %c0_54] : memref<160x128xf32, #tpu.memory_space<vmem>>, vector<128x128xf32>
    %c5 = arith.constant 5 : index
    %c0_55 = arith.constant 0 : index
    %c0_56 = arith.constant 0 : index
    %87 = vector.load %arg7[%c5, %c0_55, %c0_56] : memref<9x128x1xf32, #tpu.memory_space<vmem>>, vector<1x128x1xf32>
    %88 = vector.shape_cast %87 : vector<1x128x1xf32> to vector<128x1xf32>
    %89 = vector.broadcast %88 : vector<128x1xf32> to vector<128x128xf32>
    %90 = arith.mulf %86, %89 : vector<128x128xf32>
    %91 = arith.truncf %90 : vector<128x128xf32> to vector<128x128xbf16>
    %c5_57 = arith.constant 5 : index
    %c0_58 = arith.constant 0 : index
    %c0_59 = arith.constant 0 : index
    %92 = vector.load %arg4[%c5_57, %c0_58, %c0_59] : memref<9x128x128xbf16, #tpu.memory_space<vmem>>, vector<1x128x128xbf16>
    %93 = vector.shape_cast %92 : vector<1x128x128xbf16> to vector<128x128xbf16>
    %cst_60 = arith.constant dense<0.000000e+00> : vector<128x128xf32>
    %94 = tpu.matmul %91, %93, %cst_60 {dimension_numbers = #tpu.dot_dimension_numbers<[1], [0], [0], [1], [0, 0, 1, 1], [], []>} : vector<128x128xbf16>, vector<128x128xbf16>, vector<128x128xf32> -> vector<128x128xf32>
    %95 = arith.addf %85, %94 : vector<128x128xf32>
    %c23 = arith.constant 23 : index
    %c0_61 = arith.constant 0 : index
    %96 = vector.load %arg9[%c23, %c0_61] : memref<160x128xf32, #tpu.memory_space<vmem>>, vector<128x128xf32>
    %c6 = arith.constant 6 : index
    %c0_62 = arith.constant 0 : index
    %c0_63 = arith.constant 0 : index
    %97 = vector.load %arg7[%c6, %c0_62, %c0_63] : memref<9x128x1xf32, #tpu.memory_space<vmem>>, vector<1x128x1xf32>
    %98 = vector.shape_cast %97 : vector<1x128x1xf32> to vector<128x1xf32>
    %99 = vector.broadcast %98 : vector<128x1xf32> to vector<128x128xf32>
    %100 = arith.mulf %96, %99 : vector<128x128xf32>
    %101 = arith.truncf %100 : vector<128x128xf32> to vector<128x128xbf16>
    %c6_64 = arith.constant 6 : index
    %c0_65 = arith.constant 0 : index
    %c0_66 = arith.constant 0 : index
    %102 = vector.load %arg4[%c6_64, %c0_65, %c0_66] : memref<9x128x128xbf16, #tpu.memory_space<vmem>>, vector<1x128x128xbf16>
    %103 = vector.shape_cast %102 : vector<1x128x128xbf16> to vector<128x128xbf16>
    %cst_67 = arith.constant dense<0.000000e+00> : vector<128x128xf32>
    %104 = tpu.matmul %101, %103, %cst_67 {dimension_numbers = #tpu.dot_dimension_numbers<[1], [0], [0], [1], [0, 0, 1, 1], [], []>} : vector<128x128xbf16>, vector<128x128xbf16>, vector<128x128xf32> -> vector<128x128xf32>
    %105 = arith.addf %95, %104 : vector<128x128xf32>
    %c24 = arith.constant 24 : index
    %c0_68 = arith.constant 0 : index
    %106 = vector.load %arg9[%c24, %c0_68] : memref<160x128xf32, #tpu.memory_space<vmem>>, vector<128x128xf32>
    %c7_69 = arith.constant 7 : index
    %c0_70 = arith.constant 0 : index
    %c0_71 = arith.constant 0 : index
    %107 = vector.load %arg7[%c7_69, %c0_70, %c0_71] : memref<9x128x1xf32, #tpu.memory_space<vmem>>, vector<1x128x1xf32>
    %108 = vector.shape_cast %107 : vector<1x128x1xf32> to vector<128x1xf32>
    %109 = vector.broadcast %108 : vector<128x1xf32> to vector<128x128xf32>
    %110 = arith.mulf %106, %109 : vector<128x128xf32>
    %111 = arith.truncf %110 : vector<128x128xf32> to vector<128x128xbf16>
    %c7_72 = arith.constant 7 : index
    %c0_73 = arith.constant 0 : index
    %c0_74 = arith.constant 0 : index
    %112 = vector.load %arg4[%c7_72, %c0_73, %c0_74] : memref<9x128x128xbf16, #tpu.memory_space<vmem>>, vector<1x128x128xbf16>
    %113 = vector.shape_cast %112 : vector<1x128x128xbf16> to vector<128x128xbf16>
    %cst_75 = arith.constant dense<0.000000e+00> : vector<128x128xf32>
    %114 = tpu.matmul %111, %113, %cst_75 {dimension_numbers = #tpu.dot_dimension_numbers<[1], [0], [0], [1], [0, 0, 1, 1], [], []>} : vector<128x128xbf16>, vector<128x128xbf16>, vector<128x128xf32> -> vector<128x128xf32>
    %115 = arith.addf %105, %114 : vector<128x128xf32>
    %c25 = arith.constant 25 : index
    %c0_76 = arith.constant 0 : index
    %116 = vector.load %arg9[%c25, %c0_76] : memref<160x128xf32, #tpu.memory_space<vmem>>, vector<128x128xf32>
    %c8_77 = arith.constant 8 : index
    %c0_78 = arith.constant 0 : index
    %c0_79 = arith.constant 0 : index
    %117 = vector.load %arg7[%c8_77, %c0_78, %c0_79] : memref<9x128x1xf32, #tpu.memory_space<vmem>>, vector<1x128x1xf32>
    %118 = vector.shape_cast %117 : vector<1x128x1xf32> to vector<128x1xf32>
    %119 = vector.broadcast %118 : vector<128x1xf32> to vector<128x128xf32>
    %120 = arith.mulf %116, %119 : vector<128x128xf32>
    %121 = arith.truncf %120 : vector<128x128xf32> to vector<128x128xbf16>
    %c8_80 = arith.constant 8 : index
    %c0_81 = arith.constant 0 : index
    %c0_82 = arith.constant 0 : index
    %122 = vector.load %arg4[%c8_80, %c0_81, %c0_82] : memref<9x128x128xbf16, #tpu.memory_space<vmem>>, vector<1x128x128xbf16>
    %123 = vector.shape_cast %122 : vector<1x128x128xbf16> to vector<128x128xbf16>
    %cst_83 = arith.constant dense<0.000000e+00> : vector<128x128xf32>
    %124 = tpu.matmul %121, %123, %cst_83 {dimension_numbers = #tpu.dot_dimension_numbers<[1], [0], [0], [1], [0, 0, 1, 1], [], []>} : vector<128x128xbf16>, vector<128x128xbf16>, vector<128x128xf32> -> vector<128x128xf32>
    %125 = arith.addf %115, %124 : vector<128x128xf32>
    %126 = vector.extract_strided_slice %0 {offsets = [2, 0], sizes = [1, 128], strides = [1, 1]} : vector<8x128xf32> to vector<1x128xf32>
    %127 = vector.extract_strided_slice %0 {offsets = [3, 0], sizes = [1, 128], strides = [1, 1]} : vector<8x128xf32> to vector<1x128xf32>
    %cst_84 = arith.constant dense<0.000000e+00> : vector<128xf32>
    %128 = vector.multi_reduction <add>, %125, %cst_84 [0] : vector<128x128xf32> to vector<128xf32>
    %129 = vector.shape_cast %128 : vector<128xf32> to vector<1x128xf32>
    %cst_85 = arith.constant 7.812500e-03 : f32
    %130 = vector.broadcast %cst_85 : f32 to vector<1x128xf32>
    %131 = arith.mulf %129, %130 : vector<1x128xf32>
    %132 = arith.mulf %125, %125 : vector<128x128xf32>
    %cst_86 = arith.constant dense<0.000000e+00> : vector<128xf32>
    %133 = vector.multi_reduction <add>, %132, %cst_86 [0] : vector<128x128xf32> to vector<128xf32>
    %134 = vector.shape_cast %133 : vector<128xf32> to vector<1x128xf32>
    %cst_87 = arith.constant 7.812500e-03 : f32
    %135 = vector.broadcast %cst_87 : f32 to vector<1x128xf32>
    %136 = arith.mulf %134, %135 : vector<1x128xf32>
    %137 = arith.mulf %131, %131 : vector<1x128xf32>
    %138 = arith.subf %136, %137 : vector<1x128xf32>
    %cst_88 = arith.constant 0.000000e+00 : f32
    %139 = vector.broadcast %cst_88 : f32 to vector<1x128xf32>
    %140 = arith.maximumf %138, %139 : vector<1x128xf32>
    %141 = vector.broadcast %131 : vector<1x128xf32> to vector<128x128xf32>
    %142 = arith.subf %125, %141 : vector<128x128xf32>
    %cst_89 = arith.constant 9.99999974E-6 : f32
    %143 = vector.broadcast %cst_89 : f32 to vector<1x128xf32>
    %144 = arith.addf %140, %143 : vector<1x128xf32>
    %145 = math.rsqrt %144 : vector<1x128xf32>
    %146 = vector.broadcast %145 : vector<1x128xf32> to vector<128x128xf32>
    %147 = arith.mulf %142, %146 : vector<128x128xf32>
    %148 = vector.broadcast %126 : vector<1x128xf32> to vector<128x128xf32>
    %149 = arith.mulf %147, %148 : vector<128x128xf32>
    %150 = vector.broadcast %127 : vector<1x128xf32> to vector<128x128xf32>
    %151 = arith.addf %149, %150 : vector<128x128xf32>
    %c0_90 = arith.constant 0 : index
    %c0_91 = arith.constant 0 : index
    %152 = vector.load %arg2[%c0_90, %c0_91] : memref<128x4xbf16, #tpu.memory_space<vmem>>, vector<128x4xbf16>
    %c0_92 = arith.constant 0 : index
    %c0_93 = arith.constant 0 : index
    %153 = vector.load %arg5[%c0_92, %c0_93] : memref<4x128xbf16, #tpu.memory_space<vmem>>, vector<4x128xbf16>
    %cst_94 = arith.constant dense<0.000000e+00> : vector<128x128xf32>
    %154 = tpu.matmul %152, %153, %cst_94 {dimension_numbers = #tpu.dot_dimension_numbers<[1], [0], [0], [1], [0, 0, 1, 1], [], []>} : vector<128x4xbf16>, vector<4x128xbf16>, vector<128x128xf32> -> vector<128x128xf32>
    %155 = vector.extract_strided_slice %0 {offsets = [4, 0], sizes = [1, 128], strides = [1, 1]} : vector<8x128xf32> to vector<1x128xf32>
    %156 = vector.extract_strided_slice %0 {offsets = [5, 0], sizes = [1, 128], strides = [1, 1]} : vector<8x128xf32> to vector<1x128xf32>
    %cst_95 = arith.constant dense<0.000000e+00> : vector<128xf32>
    %157 = vector.multi_reduction <add>, %154, %cst_95 [0] : vector<128x128xf32> to vector<128xf32>
    %158 = vector.shape_cast %157 : vector<128xf32> to vector<1x128xf32>
    %cst_96 = arith.constant 7.812500e-03 : f32
    %159 = vector.broadcast %cst_96 : f32 to vector<1x128xf32>
    %160 = arith.mulf %158, %159 : vector<1x128xf32>
    %161 = arith.mulf %154, %154 : vector<128x128xf32>
    %cst_97 = arith.constant dense<0.000000e+00> : vector<128xf32>
    %162 = vector.multi_reduction <add>, %161, %cst_97 [0] : vector<128x128xf32> to vector<128xf32>
    %163 = vector.shape_cast %162 : vector<128xf32> to vector<1x128xf32>
    %cst_98 = arith.constant 7.812500e-03 : f32
    %164 = vector.broadcast %cst_98 : f32 to vector<1x128xf32>
    %165 = arith.mulf %163, %164 : vector<1x128xf32>
    %166 = arith.mulf %160, %160 : vector<1x128xf32>
    %167 = arith.subf %165, %166 : vector<1x128xf32>
    %cst_99 = arith.constant 0.000000e+00 : f32
    %168 = vector.broadcast %cst_99 : f32 to vector<1x128xf32>
    %169 = arith.maximumf %167, %168 : vector<1x128xf32>
    %170 = vector.broadcast %160 : vector<1x128xf32> to vector<128x128xf32>
    %171 = arith.subf %154, %170 : vector<128x128xf32>
    %cst_100 = arith.constant 9.99999974E-6 : f32
    %172 = vector.broadcast %cst_100 : f32 to vector<1x128xf32>
    %173 = arith.addf %169, %172 : vector<1x128xf32>
    %174 = math.rsqrt %173 : vector<1x128xf32>
    %175 = vector.broadcast %174 : vector<1x128xf32> to vector<128x128xf32>
    %176 = arith.mulf %171, %175 : vector<128x128xf32>
    %177 = vector.broadcast %155 : vector<1x128xf32> to vector<128x128xf32>
    %178 = arith.mulf %176, %177 : vector<128x128xf32>
    %179 = vector.broadcast %156 : vector<1x128xf32> to vector<128x128xf32>
    %180 = arith.addf %178, %179 : vector<128x128xf32>
    %181 = arith.addf %151, %180 : vector<128x128xf32>
    %cst_101 = arith.constant 0.000000e+00 : f32
    %182 = vector.broadcast %cst_101 : f32 to vector<128x128xf32>
    %183 = arith.maximumf %181, %182 : vector<128x128xf32>
    %c0_102 = arith.constant 0 : index
    %c0_103 = arith.constant 0 : index
    %184 = vector.load %arg8[%c0_102, %c0_103] : memref<128x128xf32, #tpu.memory_space<vmem>>, vector<128x128xf32>
    tpu.vector_store %arg8[%c0_102, %c0_103], %183 {strides = array<i32>} : memref<128x128xf32, #tpu.memory_space<vmem>>, vector<128x128xf32>,
    return
  }
  func.func @transform_0(%arg0: i32) -> (i32, i32) {
    %c0_i32 = arith.constant 0 : i32
    %c0_i32_0 = arith.constant 0 : i32
    %c0_i32_1 = arith.constant 0 : i32
    return %c0_i32, %c0_i32_0 : i32, i32
  }
  func.func @transform_1(%arg0: i32) -> (i32, i32) {
    %c0_i32 = arith.constant 0 : i32
    %c0_i32_0 = arith.constant 0 : i32
    %c0_i32_1 = arith.constant 0 : i32
    return %c0_i32, %c0_i32_0 : i32, i32
  }
  func.func @transform_2(%arg0: i32) -> (i32, i32) {
    %c0_i32 = arith.constant 0 : i32
    %c0_i32_0 = arith.constant 0 : i32
    %c0_i32_1 = arith.constant 0 : i32
    return %c0_i32, %c0_i32_0 : i32, i32
  }
  func.func @transform_3(%arg0: i32) -> (i32, i32, i32) {
    %c0_i32 = arith.constant 0 : i32
    %c0_i32_0 = arith.constant 0 : i32
    %c0_i32_1 = arith.constant 0 : i32
    %c0_i32_2 = arith.constant 0 : i32
    return %c0_i32, %c0_i32_0, %c0_i32_1 : i32, i32, i32
  }
  func.func @transform_4(%arg0: i32) -> (i32, i32) {
    %c0_i32 = arith.constant 0 : i32
    %c0_i32_0 = arith.constant 0 : i32
    %c0_i32_1 = arith.constant 0 : i32
    return %c0_i32, %c0_i32_0 : i32, i32
  }
  func.func @transform_5(%arg0: i32) -> (i32, i32) {
    %c0_i32 = arith.constant 0 : i32
    %c0_i32_0 = arith.constant 0 : i32
    %c0_i32_1 = arith.constant 0 : i32
    return %c0_i32, %c0_i32_0 : i32, i32
  }
  func.func @transform_6(%arg0: i32) -> (i32, i32, i32) {
    %c0_i32 = arith.constant 0 : i32
    %c0_i32_0 = arith.constant 0 : i32
    %c0_i32_1 = arith.constant 0 : i32
    %c0_i32_2 = arith.constant 0 : i32
    return %c0_i32, %c0_i32_0, %c0_i32_1 : i32, i32, i32
  }
  func.func @transform_7(%arg0: i32) -> (i32, i32) {
    %c0_i32 = arith.constant 0 : i32
    %c0_i32_0 = arith.constant 0 : i32
    %c0_i32_1 = arith.constant 0 : i32
    return %c0_i32, %c0_i32_0 : i32, i32
  }
}

</mosaic_0001>

<llo_original>
// kernel: _lambda_.1
$region0: #{_lambda_.1}
  #allocation0 [shape = 'u32[]', space=smem, size = 0x4, offset = 0x4, fixed_abs, tag = 'smem constant byte address 0x4 - core index']
  #allocation1 [shape = 'u32[144,128]{1,0:T(1,128)}', space=vmem, size = 0x12000, scoped, tag = 'internal scratch']
  #allocation2 [shape = 'f32[160,128]{1,0:T(8,128)}', space=vmem, size = 0x14000, scoped, tag = 'scratch operand']
  %s0 = inlined_call_operand.vmem [shape: bf16[128,36], index: 0, kind: input, shape index: {}]
  %s1 = inlined_call_operand.vmem [shape: bf16[128,4], index: 1, kind: input, shape index: {}]
  %s2 = inlined_call_operand.vmem [shape: bf16[36,128], index: 2, kind: input, shape index: {}]
  %s3 = inlined_call_operand.vmem [shape: bf16[9,128,128], index: 3, kind: input, shape index: {}]
  %s4 = inlined_call_operand.vmem [shape: bf16[4,128], index: 4, kind: input, shape index: {}]
  %s5 = inlined_call_operand.vmem [shape: f32[8,128], index: 5, kind: input, shape index: {}]
  %s6 = inlined_call_operand.vmem [shape: f32[9,128,1], index: 6, kind: input, shape index: {}]
  %s7 = inlined_call_operand.vmem [shape: f32[128,128], index: 7, kind: output, shape index: {}]
  %s8 = sld [smem:[#allocation0]]
  $region38: #{_lambda_.1} parent=0
    _
  %s10 = ssub.s32 1, %s8
  %s11 = scalar_select 0, %s10, %s8
  // Predicated region
  $region2: #{_lambda_.1} parent=0 // pred_check
    _
  $region3: #{_lambda_.1} parent=0 // pred_check_branch
    %13 = sbr.rel (0) target = $region5
  $region4: #{_lambda_.1} parent=0 // pred_region
    _
  $region5: #{_lambda_.1} parent=0 // pred_fallthru
    _
  // Predicated region
  $region6: #{_lambda_.1} parent=0 // pred_check
    _
  $region7: #{_lambda_.1} parent=0 // pred_check_branch
    %15 = sbr.rel (0) target = $region9
  $region8: #{_lambda_.1} parent=0 // pred_region
    _
  $region9: #{_lambda_.1} parent=0 // pred_fallthru
    _
  // Predicated region
  $region10: #{_lambda_.1} parent=0 // pred_check
    _
  $region11: #{_lambda_.1} parent=0 // pred_check_branch
    %17 = sbr.rel (0) target = $region13
  $region12: #{_lambda_.1} parent=0 // pred_region
    _
  $region13: #{_lambda_.1} parent=0 // pred_fallthru
    _
  // Predicated region
  $region14: #{_lambda_.1} parent=0 // pred_check
    _
  $region15: #{_lambda_.1} parent=0 // pred_check_branch
    %19 = sbr.rel (0) target = $region17
  $region16: #{_lambda_.1} parent=0 // pred_region
    _
  $region17: #{_lambda_.1} parent=0 // pred_fallthru
    _
  // Predicated region
  $region18: #{_lambda_.1} parent=0 // pred_check
    _
  $region19: #{_lambda_.1} parent=0 // pred_check_branch
    %21 = sbr.rel (0) target = $region21
  $region20: #{_lambda_.1} parent=0 // pred_region
    _
  $region21: #{_lambda_.1} parent=0 // pred_fallthru
    _
  // Predicated region
  $region22: #{_lambda_.1} parent=0 // pred_check
    _
  $region23: #{_lambda_.1} parent=0 // pred_check_branch
    %23 = sbr.rel (0) target = $region25
  $region24: #{_lambda_.1} parent=0 // pred_region
    _
  $region25: #{_lambda_.1} parent=0 // pred_fallthru
    _
  // Predicated region
  $region26: #{_lambda_.1} parent=0 // pred_check
    _
  $region27: #{_lambda_.1} parent=0 // pred_check_branch
    %25 = sbr.rel (0) target = $region29
  $region28: #{_lambda_.1} parent=0 // pred_region
    _
  $region29: #{_lambda_.1} parent=0 // pred_fallthru
    _
  %v27 = vld [vmem:[%s5] sm:$0xff]
  %v28 = vld [vmem:[%s0] sm:$0xf]
  %v29 = vld [vmem:[%s0 + $0x4] sm:$0xf]
  %v30 = vld [vmem:[%s0 + $0x8] sm:$0xf]
  %v31 = vld [vmem:[%s0 + $0xc] sm:$0xf]
  %v32 = vld [vmem:[%s0 + $0x10] sm:$0xf]
  %v33 = vld [vmem:[%s0 + $0x14] sm:$0xf]
  %v34 = vld [vmem:[%s0 + $0x18] sm:$0xf]
  %v35 = vld [vmem:[%s0 + $0x1c] sm:$0xf]
  %v36 = vld [vmem:[%s0 + $0x20] sm:$0xf]
  %v37 = vld [vmem:[%s0 + $0x24] sm:$0xf]
  %v38 = vld [vmem:[%s0 + $0x28] sm:$0xf]
  %v39 = vld [vmem:[%s0 + $0x2c] sm:$0xf]
  %v40 = vld [vmem:[%s0 + $0x30] sm:$0xf]
  %v41 = vld [vmem:[%s0 + $0x34] sm:$0xf]
  %v42 = vld [vmem:[%s0 + $0x38] sm:$0xf]
  %v43 = vld [vmem:[%s0 + $0x3c] sm:$0xf]
  %v44 = vld [vmem:[%s2] sm:$0xf]
  %v45 = vld [vmem:[%s2 + $0x4] sm:$0xf]
  %v46 = vld [vmem:[%s2 + $0x8] sm:$0xf]
  %v47 = vld [vmem:[%s2 + $0xc] sm:$0xf]
  %v48 = vld [vmem:[%s2 + $0x10] sm:$0x3]
  %v65 = vunpack.c.l.b16 %v28
  %v66 = vunpack.c.l.b16 %v29
  %v67 = vunpack.c.l.b16 %v30
  %v68 = vunpack.c.l.b16 %v31
  %v69 = vunpack.c.l.b16 %v32
  %v70 = vunpack.c.l.b16 %v33
  %v71 = vunpack.c.l.b16 %v34
  %v72 = vunpack.c.l.b16 %v35
  %v73 = vunpack.c.l.b16 %v36
  %v74 = vunpack.c.l.b16 %v37
  %v75 = vunpack.c.l.b16 %v38
  %v76 = vunpack.c.l.b16 %v39
  %v77 = vunpack.c.l.b16 %v40
  %v78 = vunpack.c.l.b16 %v41
  %v79 = vunpack.c.l.b16 %v42
  %v80 = vunpack.c.l.b16 %v43
  %v81 = vpack.c.b16 %v66, %v65
  %v82 = vpack.c.b16 %v68, %v67
  %v83 = vpack.c.b16 %v70, %v69
  %v84 = vpack.c.b16 %v72, %v71
  %v85 = vpack.c.b16 %v74, %v73
  %v86 = vpack.c.b16 %v76, %v75
  %v87 = vpack.c.b16 %v78, %v77
  %v88 = vpack.c.b16 %v80, %v79
  %v94 = vunpack.c.l.b16 %v44
  %v95 = vunpack.c.l.b16 %v45
  %v96 = vunpack.c.l.b16 %v46
  %v97 = vunpack.c.l.b16 %v47
  %v98 = vunpack.c.l.b16 %v48
  %v99 = vpack.c.b16 %v95, %v94
  %v100 = vpack.c.b16 %v97, %v96
  %v101 = vpack.c.b16 %v98, %v98
  %vm104 = vcmask 293888
  %v106 = vsel %vm104, %v81, 0
  %v109 = vsel %vm104, %v82, 0
  %v112 = vsel %vm104, %v83, 0
  %v115 = vsel %vm104, %v84, 0
  %v118 = vsel %vm104, %v85, 0
  %v121 = vsel %vm104, %v86, 0
  %v124 = vsel %vm104, %v87, 0
  %v127 = vsel %vm104, %v88, 0
  %vm129 = vcmask 1041408
  %v131 = vsel %vm129, %v101, 0
  %133 = vmatprep.subr.bf16.mxu0 0
  %134 = vmatpush1.bf16.msra.mxu0 %v99
  %135 = vmatprep.subr.bf16.mxu0 0
  %136 = vmatpush1.bf16.msra.mxu0 %v100
  %137 = vmatprep.subr.bf16.mxu0 0
  %138 = vmatpush1.bf16.msra.mxu0 %v131
  %139 = vmatprep.subr.bf16.mxu0 0
  %140 = vmatpush1.bf16.msra.mxu0 0
  %141 = vmatprep.subr.bf16.mxu0 0
  %142 = vmatpush1.bf16.msra.mxu0 0
  %143 = vmatprep.subr.bf16.mxu0 0
  %144 = vmatpush1.bf16.msra.mxu0 0
  %145 = vmatprep.subr.bf16.mxu0 0
  %146 = vmatpush1.bf16.msra.mxu0 0
  %147 = vmatprep.subr.bf16.mxu0 0
  %148 = vmatpush1.bf16.msra.mxu0 0
  %149 = vmatprep.subr.bf16.mxu0 0
  %150 = vmatpush1.bf16.msra.mxu0 0
  %151 = vmatprep.subr.bf16.mxu0 0
  %152 = vmatpush1.bf16.msra.mxu0 0
  %153 = vmatprep.subr.bf16.mxu0 0
  %154 = vmatpush1.bf16.msra.mxu0 0
  %155 = vmatprep.subr.bf16.mxu0 0
  %156 = vmatpush1.bf16.msra.mxu0 0
  %157 = vmatprep.subr.bf16.mxu0 0
  %158 = vmatpush1.bf16.msra.mxu0 0
  %159 = vmatprep.subr.bf16.mxu0 0
  %160 = vmatpush1.bf16.msra.mxu0 0
  %161 = vmatprep.subr.bf16.mxu0 0
  %162 = vmatpush1.bf16.msra.mxu0 0
  %163 = vmatprep.subr.bf16.mxu0 0
  %164 = vmatpush1.bf16.msra.mxu0 0
  %165 = vmatprep.mubr.bf16.mxu0 0
  %166 = vmatmul.mubr.bf16.gmra.mrb[0].mxu0 %v106
  %v167 = vpop.f32.mrb[0].mxu0
  %v168 = vadd.f32 0.0, %v167
  %v169 = vpop.f32.mrb[0].mxu0
  %v170 = vpop.f32.mrb[0].mxu0
  %v171 = vadd.f32 0.0, %v170
  %v172 = vpop.f32.mrb[0].mxu0
  %173 = vmatprep.mubr.bf16.mxu0 0
  %174 = vmatmul.mubr.bf16.gmra.mrb[0].mxu0 %v109
  %v175 = vpop.f32.mrb[0].mxu0
  %v176 = vadd.f32 0.0, %v175
  %v177 = vpop.f32.mrb[0].mxu0
  %v178 = vpop.f32.mrb[0].mxu0
  %v179 = vadd.f32 0.0, %v178
  %v180 = vpop.f32.mrb[0].mxu0
  %181 = vmatprep.mubr.bf16.mxu0 0
  %182 = vmatmul.mubr.bf16.gmra.mrb[0].mxu0 %v112
  %v183 = vpop.f32.mrb[0].mxu0
  %v184 = vadd.f32 0.0, %v183
  %v185 = vpop.f32.mrb[0].mxu0
  %v186 = vpop.f32.mrb[0].mxu0
  %v187 = vadd.f32 0.0, %v186
  %v188 = vpop.f32.mrb[0].mxu0
  %189 = vmatprep.mubr.bf16.mxu0 0
  %190 = vmatmul.mubr.bf16.gmra.mrb[0].mxu0 %v115
  %v191 = vpop.f32.mrb[0].mxu0
  %v192 = vadd.f32 0.0, %v191
  %v193 = vpop.f32.mrb[0].mxu0
  %v194 = vpop.f32.mrb[0].mxu0
  %v195 = vadd.f32 0.0, %v194
  %v196 = vpop.f32.mrb[0].mxu0
  %197 = vmatprep.mubr.bf16.mxu0 0
  %198 = vmatmul.mubr.bf16.gmra.mrb[0].mxu0 %v118
  %v199 = vpop.f32.mrb[0].mxu0
  %v200 = vadd.f32 0.0, %v199
  %v201 = vpop.f32.mrb[0].mxu0
  %v202 = vpop.f32.mrb[0].mxu0
  %v203 = vadd.f32 0.0, %v202
  %v204 = vpop.f32.mrb[0].mxu0
  %205 = vmatprep.mubr.bf16.mxu0 0
  %206 = vmatmul.mubr.bf16.gmra.mrb[0].mxu0 %v121
  %v207 = vpop.f32.mrb[0].mxu0
  %v208 = vadd.f32 0.0, %v207
  %v209 = vpop.f32.mrb[0].mxu0
  %v210 = vpop.f32.mrb[0].mxu0
  %v211 = vadd.f32 0.0, %v210
  %v212 = vpop.f32.mrb[0].mxu0
  %213 = vmatprep.mubr.bf16.mxu0 0
  %214 = vmatmul.mubr.bf16.gmra.mrb[0].mxu0 %v124
  %v215 = vpop.f32.mrb[0].mxu0
  %v216 = vadd.f32 0.0, %v215
  %v217 = vpop.f32.mrb[0].mxu0
  %v218 = vpop.f32.mrb[0].mxu0
  %v219 = vadd.f32 0.0, %v218
  %v220 = vpop.f32.mrb[0].mxu0
  %221 = vmatprep.mubr.bf16.mxu0 0
  %222 = vmatmul.mubr.bf16.gmra.mrb[0].mxu0 %v127
  %v223 = vpop.f32.mrb[0].mxu0
  %v224 = vadd.f32 0.0, %v223
  %v225 = vpop.f32.mrb[0].mxu0
  %v226 = vpop.f32.mrb[0].mxu0
  %v227 = vadd.f32 0.0, %v226
  %v228 = vpop.f32.mrb[0].mxu0
  %229 = vdwg.mxu0
  %v230 = vadd.f32 %v168, %v171
  %v231 = vadd.f32 %v230, %v176
  %v232 = vadd.f32 %v231, %v179
  %v233 = vadd.f32 %v232, %v184
  %v234 = vadd.f32 %v233, %v187
  %v235 = vadd.f32 %v234, %v192
  %v236 = vadd.f32 %v235, %v195
  %v237 = vadd.f32 %v236, %v200
  %v238 = vadd.f32 %v237, %v203
  %v239 = vadd.f32 %v238, %v208
  %v240 = vadd.f32 %v239, %v211
  %v241 = vadd.f32 %v240, %v216
  %v242 = vadd.f32 %v241, %v219
  %v243 = vadd.f32 %v242, %v224
  %v244 = vadd.f32 %v243, %v227
  %v245 = vrot.slane %v244, 4
  %v246 = vadd.f32 %v244, %v245
  %v247 = vrot.slane %v246, 2
  %v248 = vadd.f32 %v246, %v247
  %v249 = vrot.slane %v248, 1
  %v250 = vadd.f32 %v248, %v249
  %v251 = vmul.f32 %v250, 0.0078125
  %v252 = vmul.f32 %v168, %v168
  %v253 = vmul.f32 %v171, %v171
  %v254 = vmul.f32 %v176, %v176
  %v255 = vmul.f32 %v179, %v179
  %v256 = vmul.f32 %v184, %v184
  %v257 = vmul.f32 %v187, %v187
  %v258 = vmul.f32 %v192, %v192
  %v259 = vmul.f32 %v195, %v195
  %v260 = vmul.f32 %v200, %v200
  %v261 = vmul.f32 %v203, %v203
  %v262 = vmul.f32 %v208, %v208
  %v263 = vmul.f32 %v211, %v211
  %v264 = vmul.f32 %v216, %v216
  %v265 = vmul.f32 %v219, %v219
  %v266 = vmul.f32 %v224, %v224
  %v267 = vmul.f32 %v227, %v227
  %v268 = vadd.f32 %v252, %v253
  %v269 = vadd.f32 %v268, %v254
  %v270 = vadd.f32 %v269, %v255
  %v271 = vadd.f32 %v270, %v256
  %v272 = vadd.f32 %v271, %v257
  %v273 = vadd.f32 %v272, %v258
  %v274 = vadd.f32 %v273, %v259
  %v275 = vadd.f32 %v274, %v260
  %v276 = vadd.f32 %v275, %v261
  %v277 = vadd.f32 %v276, %v262
  %v278 = vadd.f32 %v277, %v263
  %v279 = vadd.f32 %v278, %v264
  %v280 = vadd.f32 %v279, %v265
  %v281 = vadd.f32 %v280, %v266
  %v282 = vadd.f32 %v281, %v267
  %v283 = vrot.slane %v282, 4
  %v284 = vadd.f32 %v282, %v283
  %v285 = vrot.slane %v284, 2
  %v286 = vadd.f32 %v284, %v285
  %v287 = vrot.slane %v286, 1
  %v288 = vadd.f32 %v286, %v287
  %v289 = vmul.f32 %v288, 0.0078125
  %v290 = vmul.f32 %v251, %v251
  %v291 = vsub.f32 %v289, %v290
  %v292 = vmax.f32 %v291, 0.0
  %v293 = vsub.f32 %v168, %v251
  %v294 = vsub.f32 %v171, %v251
  %v295 = vsub.f32 %v176, %v251
  %v296 = vsub.f32 %v179, %v251
  %v297 = vsub.f32 %v184, %v251
  %v298 = vsub.f32 %v187, %v251
  %v299 = vsub.f32 %v192, %v251
  %v300 = vsub.f32 %v195, %v251
  %v301 = vsub.f32 %v200, %v251
  %v302 = vsub.f32 %v203, %v251
  %v303 = vsub.f32 %v208, %v251
  %v304 = vsub.f32 %v211, %v251
  %v305 = vsub.f32 %v216, %v251
  %v306 = vsub.f32 %v219, %v251
  %v307 = vsub.f32 %v224, %v251
  %v308 = vsub.f32 %v227, %v251
  %v309 = vadd.f32 %v292, 1e-05
  %v310 = vrsqrt.pop %v309
  %v311 = vmul.f32 %v293, %v310
  %v312 = vmul.f32 %v294, %v310
  %v313 = vmul.f32 %v295, %v310
  %v314 = vmul.f32 %v296, %v310
  %v315 = vmul.f32 %v297, %v310
  %v316 = vmul.f32 %v298, %v310
  %v317 = vmul.f32 %v299, %v310
  %v318 = vmul.f32 %v300, %v310
  %v319 = vmul.f32 %v301, %v310
  %v320 = vmul.f32 %v302, %v310
  %v321 = vmul.f32 %v303, %v310
  %v322 = vmul.f32 %v304, %v310
  %v323 = vmul.f32 %v305, %v310
  %v324 = vmul.f32 %v306, %v310
  %v325 = vmul.f32 %v307, %v310
  %v326 = vmul.f32 %v308, %v310
  %v327 = vlaneseq
  %v328 = vshrl.u32 %v327, 7
  %v329 = vsub.s32 0, %v328
  %v330 = vrot.slane %v27, %v329
  %v331 = vmul.f32 %v311, %v330
  %v332 = vmul.f32 %v312, %v330
  %v333 = vmul.f32 %v313, %v330
  %v334 = vmul.f32 %v314, %v330
  %v335 = vmul.f32 %v315, %v330
  %v336 = vmul.f32 %v316, %v330
  %v337 = vmul.f32 %v317, %v330
  %v338 = vmul.f32 %v318, %v330
  %v339 = vmul.f32 %v319, %v330
  %v340 = vmul.f32 %v320, %v330
  %v341 = vmul.f32 %v321, %v330
  %v342 = vmul.f32 %v322, %v330
  %v343 = vmul.f32 %v323, %v330
  %v344 = vmul.f32 %v324, %v330
  %v345 = vmul.f32 %v325, %v330
  %v346 = vmul.f32 %v326, %v330
  %v347 = vlaneseq
  %v348 = vshrl.u32 %v347, 7
  %v349 = vsub.s32 1, %v348
  %v350 = vrot.slane %v27, %v349
  %v351 = vadd.f32 %v331, %v350
  %v352 = vadd.f32 %v332, %v350
  %v353 = vadd.f32 %v333, %v350
  %v354 = vadd.f32 %v334, %v350
  %v355 = vadd.f32 %v335, %v350
  %v356 = vadd.f32 %v336, %v350
  %v357 = vadd.f32 %v337, %v350
  %v358 = vadd.f32 %v338, %v350
  %v359 = vadd.f32 %v339, %v350
  %v360 = vadd.f32 %v340, %v350
  %v361 = vadd.f32 %v341, %v350
  %v362 = vadd.f32 %v342, %v350
  %v363 = vadd.f32 %v343, %v350
  %v364 = vadd.f32 %v344, %v350
  %v365 = vadd.f32 %v345, %v350
  %v366 = vadd.f32 %v346, %v350
  %v367 = vmax.f32 %v351, 0.0
  %v368 = vmax.f32 %v352, 0.0
  %v369 = vmax.f32 %v353, 0.0
  %v370 = vmax.f32 %v354, 0.0
  %v371 = vmax.f32 %v355, 0.0
  %v372 = vmax.f32 %v356, 0.0
  %v373 = vmax.f32 %v357, 0.0
  %v374 = vmax.f32 %v358, 0.0
  %v375 = vmax.f32 %v359, 0.0
  %v376 = vmax.f32 %v360, 0.0
  %v377 = vmax.f32 %v361, 0.0
  %v378 = vmax.f32 %v362, 0.0
  %v379 = vmax.f32 %v363, 0.0
  %v380 = vmax.f32 %v364, 0.0
  %v381 = vmax.f32 %v365, 0.0
  %v382 = vmax.f32 %v366, 0.0
  %383 = vst [vmem:[#allocation2] sm:$0xff] 0.0
  %384 = vst [vmem:[#allocation2 + $0x8] sm:$0xff] 0.0
  %385 = vst [vmem:[#allocation2 + $0x10] sm:$0xff] 0.0
  %386 = vst [vmem:[#allocation2 + $0x18] sm:$0xff] 0.0
  %387 = vst [vmem:[#allocation2 + $0x20] sm:$0xff] 0.0
  %388 = vst [vmem:[#allocation2 + $0x28] sm:$0xff] 0.0
  %389 = vst [vmem:[#allocation2 + $0x30] sm:$0xff] 0.0
  %390 = vst [vmem:[#allocation2 + $0x38] sm:$0xff] 0.0
  %391 = vst [vmem:[#allocation2 + $0x40] sm:$0xff] 0.0
  %392 = vst [vmem:[#allocation2 + $0x48] sm:$0xff] 0.0
  %393 = vst [vmem:[#allocation2 + $0x50] sm:$0xff] 0.0
  %394 = vst [vmem:[#allocation2 + $0x58] sm:$0xff] 0.0
  %395 = vst [vmem:[#allocation2 + $0x60] sm:$0xff] 0.0
  %396 = vst [vmem:[#allocation2 + $0x68] sm:$0xff] 0.0
  %397 = vst [vmem:[#allocation2 + $0x70] sm:$0xff] 0.0
  %398 = vst [vmem:[#allocation2 + $0x78] sm:$0xff] 0.0
  %399 = vst [vmem:[#allocation2 + $0x80] sm:$0xff] 0.0
  %400 = vst [vmem:[#allocation2 + $0x88] sm:$0xff] 0.0
  %401 = vst [vmem:[#allocation2 + $0x90] sm:$0xff] 0.0
  %402 = vst [vmem:[#allocation2 + $0x98] sm:$0xff] 0.0
  %403 = vst [vmem:[#allocation2 + $0x10] sm:$0xff] %v367
  %404 = vst [vmem:[#allocation2 + $0x18] sm:$0xff] %v368
  %405 = vst [vmem:[#allocation2 + $0x20] sm:$0xff] %v369
  %406 = vst [vmem:[#allocation2 + $0x28] sm:$0xff] %v370
  %407 = vst [vmem:[#allocation2 + $0x30] sm:$0xff] %v371
  %408 = vst [vmem:[#allocation2 + $0x38] sm:$0xff] %v372
  %409 = vst [vmem:[#allocation2 + $0x40] sm:$0xff] %v373
  %410 = vst [vmem:[#allocation2 + $0x48] sm:$0xff] %v374
  %411 = vst [vmem:[#allocation2 + $0x50] sm:$0xff] %v375
  %412 = vst [vmem:[#allocation2 + $0x58] sm:$0xff] %v376
  %413 = vst [vmem:[#allocation2 + $0x60] sm:$0xff] %v377
  %414 = vst [vmem:[#allocation2 + $0x68] sm:$0xff] %v378
  %415 = vst [vmem:[#allocation2 + $0x70] sm:$0xff] %v379
  %416 = vst [vmem:[#allocation2 + $0x78] sm:$0xff] %v380
  %417 = vst [vmem:[#allocation2 + $0x80] sm:$0xff] %v381
  %418 = vst [vmem:[#allocation2 + $0x88] sm:$0xff] %v382
  %v419 = vld [vmem:[#allocation2 + $0x7] sm:$0xff]
  %v420 = vld [vmem:[#allocation2 + $0xf] sm:$0xff]
  %v421 = vld [vmem:[#allocation2 + $0x17] sm:$0xff]
  %v422 = vld [vmem:[#allocation2 + $0x1f] sm:$0xff]
  %v423 = vld [vmem:[#allocation2 + $0x27] sm:$0xff]
  %v424 = vld [vmem:[#allocation2 + $0x2f] sm:$0xff]
  %v425 = vld [vmem:[#allocation2 + $0x37] sm:$0xff]
  %v426 = vld [vmem:[#allocation2 + $0x3f] sm:$0xff]
  %v427 = vld [vmem:[#allocation2 + $0x47] sm:$0xff]
  %v428 = vld [vmem:[#allocation2 + $0x4f] sm:$0xff]
  %v429 = vld [vmem:[#allocation2 + $0x57] sm:$0xff]
  %v430 = vld [vmem:[#allocation2 + $0x5f] sm:$0xff]
  %v431 = vld [vmem:[#allocation2 + $0x67] sm:$0xff]
  %v432 = vld [vmem:[#allocation2 + $0x6f] sm:$0xff]
  %v433 = vld [vmem:[#allocation2 + $0x77] sm:$0xff]
  %v434 = vld [vmem:[#allocation2 + $0x7f] sm:$0xff]
  %v435 = vld [vmem:[%s6] sm:$0xff]
  %v436 = vld [vmem:[%s6 + $0x8] sm:$0xff]
  %v437 = vld [vmem:[%s6 + $0x10] sm:$0xff]
  %v438 = vld [vmem:[%s6 + $0x18] sm:$0xff]
  %v439 = vld [vmem:[%s6 + $0x20] sm:$0xff]
  %v440 = vld [vmem:[%s6 + $0x28] sm:$0xff]
  %v441 = vld [vmem:[%s6 + $0x30] sm:$0xff]
  %v442 = vld [vmem:[%s6 + $0x38] sm:$0xff]
  %v443 = vld [vmem:[%s6 + $0x40] sm:$0xff]
  %v444 = vld [vmem:[%s6 + $0x48] sm:$0xff]
  %v445 = vld [vmem:[%s6 + $0x50] sm:$0xff]
  %v446 = vld [vmem:[%s6 + $0x58] sm:$0xff]
  %v447 = vld [vmem:[%s6 + $0x60] sm:$0xff]
  %v448 = vld [vmem:[%s6 + $0x68] sm:$0xff]
  %v449 = vld [vmem:[%s6 + $0x70] sm:$0xff]
  %v450 = vld [vmem:[%s6 + $0x78] sm:$0xff]
  %452 = vset.pattern.permute.xlu0 0
  %453 = vperm.xlu0 %452, %v435
  %v454 = vpop.permute.xlu0 %453
  %457 = vset.pattern.permute.xlu0 0
  %458 = vperm.xlu0 %457, %v436
  %v459 = vpop.permute.xlu0 %458
  %462 = vset.pattern.permute.xlu0 0
  %463 = vperm.xlu0 %462, %v437
  %v464 = vpop.permute.xlu0 %463
  %467 = vset.pattern.permute.xlu0 0
  %468 = vperm.xlu0 %467, %v438
  %v469 = vpop.permute.xlu0 %468
  %472 = vset.pattern.permute.xlu0 0
  %473 = vperm.xlu0 %472, %v439
  %v474 = vpop.permute.xlu0 %473
  %477 = vset.pattern.permute.xlu0 0
  %478 = vperm.xlu0 %477, %v440
  %v479 = vpop.permute.xlu0 %478
  %482 = vset.pattern.permute.xlu0 0
  %483 = vperm.xlu0 %482, %v441
  %v484 = vpop.permute.xlu0 %483
  %487 = vset.pattern.permute.xlu0 0
  %488 = vperm.xlu0 %487, %v442
  %v489 = vpop.permute.xlu0 %488
  %492 = vset.pattern.permute.xlu0 0
  %493 = vperm.xlu0 %492, %v443
  %v494 = vpop.permute.xlu0 %493
  %497 = vset.pattern.permute.xlu0 0
  %498 = vperm.xlu0 %497, %v444
  %v499 = vpop.permute.xlu0 %498
  %502 = vset.pattern.permute.xlu0 0
  %503 = vperm.xlu0 %502, %v445
  %v504 = vpop.permute.xlu0 %503
  %507 = vset.pattern.permute.xlu0 0
  %508 = vperm.xlu0 %507, %v446
  %v509 = vpop.permute.xlu0 %508
  %512 = vset.pattern.permute.xlu0 0
  %513 = vperm.xlu0 %512, %v447
  %v514 = vpop.permute.xlu0 %513
  %517 = vset.pattern.permute.xlu0 0
  %518 = vperm.xlu0 %517, %v448
  %v519 = vpop.permute.xlu0 %518
  %522 = vset.pattern.permute.xlu0 0
  %523 = vperm.xlu0 %522, %v449
  %v524 = vpop.permute.xlu0 %523
  %527 = vset.pattern.permute.xlu0 0
  %528 = vperm.xlu0 %527, %v450
  %v529 = vpop.permute.xlu0 %528
  %v531 = vmul.f32 %v419, %v454
  %v532 = vmul.f32 %v420, %v459
  %v533 = vmul.f32 %v421, %v464
  %v534 = vmul.f32 %v422, %v469
  %v535 = vmul.f32 %v423, %v474
  %v536 = vmul.f32 %v424, %v479
  %v537 = vmul.f32 %v425, %v484
  %v538 = vmul.f32 %v426, %v489
  %v539 = vmul.f32 %v427, %v494
  %v540 = vmul.f32 %v428, %v499
  %v541 = vmul.f32 %v429, %v504
  %v542 = vmul.f32 %v430, %v509
  %v543 = vmul.f32 %v431, %v514
  %v544 = vmul.f32 %v432, %v519
  %v545 = vmul.f32 %v433, %v524
  %v546 = vmul.f32 %v434, %v529
  %v547 = vpack.c.bf16 %v532, %v531
  %v548 = vpack.c.bf16 %v534, %v533
  %v549 = vpack.c.bf16 %v536, %v535
  %v550 = vpack.c.bf16 %v538, %v537
  %v551 = vpack.c.bf16 %v540, %v539
  %v552 = vpack.c.bf16 %v542, %v541
  %v553 = vpack.c.bf16 %v544, %v543
  %v554 = vpack.c.bf16 %v546, %v545
  %v555 = vld [vmem:[%s3] sm:$0xf]
  %v556 = vld [vmem:[%s3 + $0x4] sm:$0xf]
  %v557 = vld [vmem:[%s3 + $0x8] sm:$0xf]
  %v558 = vld [vmem:[%s3 + $0xc] sm:$0xf]
  %v559 = vld [vmem:[%s3 + $0x10] sm:$0xf]
  %v560 = vld [vmem:[%s3 + $0x14] sm:$0xf]
  %v561 = vld [vmem:[%s3 + $0x18] sm:$0xf]
  %v562 = vld [vmem:[%s3 + $0x1c] sm:$0xf]
  %v563 = vld [vmem:[%s3 + $0x20] sm:$0xf]
  %v564 = vld [vmem:[%s3 + $0x24] sm:$0xf]
  %v565 = vld [vmem:[%s3 + $0x28] sm:$0xf]
  %v566 = vld [vmem:[%s3 + $0x2c] sm:$0xf]
  %v567 = vld [vmem:[%s3 + $0x30] sm:$0xf]
  %v568 = vld [vmem:[%s3 + $0x34] sm:$0xf]
  %v569 = vld [vmem:[%s3 + $0x38] sm:$0xf]
  %v570 = vld [vmem:[%s3 + $0x3c] sm:$0xf]
  %v571 = vld [vmem:[#allocation2 + $0x8] sm:$0xff]
  %v572 = vld [vmem:[#allocation2 + $0x10] sm:$0xff]
  %v573 = vld [vmem:[#allocation2 + $0x18] sm:$0xff]
  %v574 = vld [vmem:[#allocation2 + $0x20] sm:$0xff]
  %v575 = vld [vmem:[#allocation2 + $0x28] sm:$0xff]
  %v576 = vld [vmem:[#allocation2 + $0x30] sm:$0xff]
  %v577 = vld [vmem:[#allocation2 + $0x38] sm:$0xff]
  %v578 = vld [vmem:[#allocation2 + $0x40] sm:$0xff]
  %v579 = vld [vmem:[#allocation2 + $0x48] sm:$0xff]
  %v580 = vld [vmem:[#allocation2 + $0x50] sm:$0xff]
  %v581 = vld [vmem:[#allocation2 + $0x58] sm:$0xff]
  %v582 = vld [vmem:[#allocation2 + $0x60] sm:$0xff]
  %v583 = vld [vmem:[#allocation2 + $0x68] sm:$0xff]
  %v584 = vld [vmem:[#allocation2 + $0x70] sm:$0xff]
  %v585 = vld [vmem:[#allocation2 + $0x78] sm:$0xff]
  %v586 = vld [vmem:[#allocation2 + $0x80] sm:$0xff]
  %s587 = scalar_lea.vmem %s6, 128
  %v588 = vld [vmem:[%s587] sm:$0xff]
  %v589 = vld [vmem:[%s587 + $0x8] sm:$0xff]
  %v590 = vld [vmem:[%s587 + $0x10] sm:$0xff]
  %v591 = vld [vmem:[%s587 + $0x18] sm:$0xff]
  %v592 = vld [vmem:[%s587 + $0x20] sm:$0xff]
  %v593 = vld [vmem:[%s587 + $0x28] sm:$0xff]
  %v594 = vld [vmem:[%s587 + $0x30] sm:$0xff]
  %v595 = vld [vmem:[%s587 + $0x38] sm:$0xff]
  %v596 = vld [vmem:[%s587 + $0x40] sm:$0xff]
  %v597 = vld [vmem:[%s587 + $0x48] sm:$0xff]
  %v598 = vld [vmem:[%s587 + $0x50] sm:$0xff]
  %v599 = vld [vmem:[%s587 + $0x58] sm:$0xff]
  %v600 = vld [vmem:[%s587 + $0x60] sm:$0xff]
  %v601 = vld [vmem:[%s587 + $0x68] sm:$0xff]
  %v602 = vld [vmem:[%s587 + $0x70] sm:$0xff]
  %v603 = vld [vmem:[%s587 + $0x78] sm:$0xff]
  %605 = vset.pattern.permute.xlu0 0
  %606 = vperm.xlu0 %605, %v588
  %v607 = vpop.permute.xlu0 %606
  %610 = vset.pattern.permute.xlu0 0
  %611 = vperm.xlu0 %610, %v589
  %v612 = vpop.permute.xlu0 %611
  %615 = vset.pattern.permute.xlu0 0
  %616 = vperm.xlu0 %615, %v590
  %v617 = vpop.permute.xlu0 %616
  %620 = vset.pattern.permute.xlu0 0
  %621 = vperm.xlu0 %620, %v591
  %v622 = vpop.permute.xlu0 %621
  %625 = vset.pattern.permute.xlu0 0
  %626 = vperm.xlu0 %625, %v592
  %v627 = vpop.permute.xlu0 %626
  %630 = vset.pattern.permute.xlu0 0
  %631 = vperm.xlu0 %630, %v593
  %v632 = vpop.permute.xlu0 %631
  %635 = vset.pattern.permute.xlu0 0
  %636 = vperm.xlu0 %635, %v594
  %v637 = vpop.permute.xlu0 %636
  %640 = vset.pattern.permute.xlu0 0
  %641 = vperm.xlu0 %640, %v595
  %v642 = vpop.permute.xlu0 %641
  %645 = vset.pattern.permute.xlu0 0
  %646 = vperm.xlu0 %645, %v596
  %v647 = vpop.permute.xlu0 %646
  %650 = vset.pattern.permute.xlu0 0
  %651 = vperm.xlu0 %650, %v597
  %v652 = vpop.permute.xlu0 %651
  %655 = vset.pattern.permute.xlu0 0
  %656 = vperm.xlu0 %655, %v598
  %v657 = vpop.permute.xlu0 %656
  %660 = vset.pattern.permute.xlu0 0
  %661 = vperm.xlu0 %660, %v599
  %v662 = vpop.permute.xlu0 %661
  %665 = vset.pattern.permute.xlu0 0
  %666 = vperm.xlu0 %665, %v600
  %v667 = vpop.permute.xlu0 %666
  %670 = vset.pattern.permute.xlu0 0
  %671 = vperm.xlu0 %670, %v601
  %v672 = vpop.permute.xlu0 %671
  %675 = vset.pattern.permute.xlu0 0
  %676 = vperm.xlu0 %675, %v602
  %v677 = vpop.permute.xlu0 %676
  %680 = vset.pattern.permute.xlu0 0
  %681 = vperm.xlu0 %680, %v603
  %v682 = vpop.permute.xlu0 %681
  %v684 = vmul.f32 %v571, %v607
  %v685 = vmul.f32 %v572, %v612
  %v686 = vmul.f32 %v573, %v617
  %v687 = vmul.f32 %v574, %v622
  %v688 = vmul.f32 %v575, %v627
  %v689 = vmul.f32 %v576, %v632
  %v690 = vmul.f32 %v577, %v637
  %v691 = vmul.f32 %v578, %v642
  %v692 = vmul.f32 %v579, %v647
  %v693 = vmul.f32 %v580, %v652
  %v694 = vmul.f32 %v581, %v657
  %v695 = vmul.f32 %v582, %v662
  %v696 = vmul.f32 %v583, %v667
  %v697 = vmul.f32 %v584, %v672
  %v698 = vmul.f32 %v585, %v677
  %v699 = vmul.f32 %v586, %v682
  %v700 = vpack.c.bf16 %v685, %v684
  %v701 = vpack.c.bf16 %v687, %v686
  %v702 = vpack.c.bf16 %v689, %v688
  %v703 = vpack.c.bf16 %v691, %v690
  %v704 = vpack.c.bf16 %v693, %v692
  %v705 = vpack.c.bf16 %v695, %v694
  %v706 = vpack.c.bf16 %v697, %v696
  %v707 = vpack.c.bf16 %v699, %v698
  %s708 = scalar_lea.vmem %s3, 64
  %v709 = vld [vmem:[%s708] sm:$0xf]
  %v710 = vld [vmem:[%s708 + $0x4] sm:$0xf]
  %v711 = vld [vmem:[%s708 + $0x8] sm:$0xf]
  %v712 = vld [vmem:[%s708 + $0xc] sm:$0xf]
  %v713 = vld [vmem:[%s708 + $0x10] sm:$0xf]
  %v714 = vld [vmem:[%s708 + $0x14] sm:$0xf]
  %v715 = vld [vmem:[%s708 + $0x18] sm:$0xf]
  %v716 = vld [vmem:[%s708 + $0x1c] sm:$0xf]
  %v717 = vld [vmem:[%s708 + $0x20] sm:$0xf]
  %v718 = vld [vmem:[%s708 + $0x24] sm:$0xf]
  %v719 = vld [vmem:[%s708 + $0x28] sm:$0xf]
  %v720 = vld [vmem:[%s708 + $0x2c] sm:$0xf]
  %v721 = vld [vmem:[%s708 + $0x30] sm:$0xf]
  %v722 = vld [vmem:[%s708 + $0x34] sm:$0xf]
  %v723 = vld [vmem:[%s708 + $0x38] sm:$0xf]
  %v724 = vld [vmem:[%s708 + $0x3c] sm:$0xf]
  %v741 = vunpack.c.l.b16 %v709
  %v742 = vunpack.c.l.b16 %v710
  %v743 = vunpack.c.l.b16 %v711
  %v744 = vunpack.c.l.b16 %v712
  %v745 = vunpack.c.l.b16 %v713
  %v746 = vunpack.c.l.b16 %v714
  %v747 = vunpack.c.l.b16 %v715
  %v748 = vunpack.c.l.b16 %v716
  %v749 = vunpack.c.l.b16 %v717
  %v750 = vunpack.c.l.b16 %v718
  %v751 = vunpack.c.l.b16 %v719
  %v752 = vunpack.c.l.b16 %v720
  %v753 = vunpack.c.l.b16 %v721
  %v754 = vunpack.c.l.b16 %v722
  %v755 = vunpack.c.l.b16 %v723
  %v756 = vunpack.c.l.b16 %v724
  %v757 = vpack.c.b16 %v742, %v741
  %v758 = vpack.c.b16 %v744, %v743
  %v759 = vpack.c.b16 %v746, %v745
  %v760 = vpack.c.b16 %v748, %v747
  %v761 = vpack.c.b16 %v750, %v749
  %v762 = vpack.c.b16 %v752, %v751
  %v763 = vpack.c.b16 %v754, %v753
  %v764 = vpack.c.b16 %v756, %v755
  %773 = vmatprep.subr.bf16.mxu0 0
  %774 = vmatpush1.bf16.msra.mxu0 %v757
  %775 = vmatprep.subr.bf16.mxu0 0
  %776 = vmatpush1.bf16.msra.mxu0 %v758
  %777 = vmatprep.subr.bf16.mxu0 0
  %778 = vmatpush1.bf16.msra.mxu0 %v759
  %779 = vmatprep.subr.bf16.mxu0 0
  %780 = vmatpush1.bf16.msra.mxu0 %v760
  %781 = vmatprep.subr.bf16.mxu0 0
  %782 = vmatpush1.bf16.msra.mxu0 %v761
  %783 = vmatprep.subr.bf16.mxu0 0
  %784 = vmatpush1.bf16.msra.mxu0 %v762
  %785 = vmatprep.subr.bf16.mxu0 0
  %786 = vmatpush1.bf16.msra.mxu0 %v763
  %787 = vmatprep.subr.bf16.mxu0 0
  %788 = vmatpush1.bf16.msra.mxu0 %v764
  %789 = vmatprep.subr.bf16.mxu0 0
  %790 = vmatpush1.bf16.msra.mxu0 0
  %791 = vmatprep.subr.bf16.mxu0 0
  %792 = vmatpush1.bf16.msra.mxu0 0
  %793 = vmatprep.subr.bf16.mxu0 0
  %794 = vmatpush1.bf16.msra.mxu0 0
  %795 = vmatprep.subr.bf16.mxu0 0
  %796 = vmatpush1.bf16.msra.mxu0 0
  %797 = vmatprep.subr.bf16.mxu0 0
  %798 = vmatpush1.bf16.msra.mxu0 0
  %799 = vmatprep.subr.bf16.mxu0 0
  %800 = vmatpush1.bf16.msra.mxu0 0
  %801 = vmatprep.subr.bf16.mxu0 0
  %802 = vmatpush1.bf16.msra.mxu0 0
  %803 = vmatprep.subr.bf16.mxu0 0
  %804 = vmatpush1.bf16.msra.mxu0 0
  %805 = vmatprep.mubr.bf16.mxu0 0
  %806 = vmatmul.mubr.bf16.gmra.mrb[0].mxu0 %v700
  %v807 = vpop.f32.mrb[0].mxu0
  %v808 = vadd.f32 0.0, %v807
  %v809 = vpop.f32.mrb[0].mxu0
  %v810 = vpop.f32.mrb[0].mxu0
  %v811 = vadd.f32 0.0, %v810
  %v812 = vpop.f32.mrb[0].mxu0
  %813 = vmatprep.mubr.bf16.mxu0 0
  %814 = vmatmul.mubr.bf16.gmra.mrb[0].mxu0 %v701
  %v815 = vpop.f32.mrb[0].mxu0
  %v816 = vadd.f32 0.0, %v815
  %v817 = vpop.f32.mrb[0].mxu0
  %v818 = vpop.f32.mrb[0].mxu0
  %v819 = vadd.f32 0.0, %v818
  %v820 = vpop.f32.mrb[0].mxu0
  %821 = vmatprep.mubr.bf16.mxu0 0
  %822 = vmatmul.mubr.bf16.gmra.mrb[0].mxu0 %v702
  %v823 = vpop.f32.mrb[0].mxu0
  %v824 = vadd.f32 0.0, %v823
  %v825 = vpop.f32.mrb[0].mxu0
  %v826 = vpop.f32.mrb[0].mxu0
  %v827 = vadd.f32 0.0, %v826
  %v828 = vpop.f32.mrb[0].mxu0
  %829 = vmatprep.mubr.bf16.mxu0 0
  %830 = vmatmul.mubr.bf16.gmra.mrb[0].mxu0 %v703
  %v831 = vpop.f32.mrb[0].mxu0
  %v832 = vadd.f32 0.0, %v831
  %v833 = vpop.f32.mrb[0].mxu0
  %v834 = vpop.f32.mrb[0].mxu0
  %v835 = vadd.f32 0.0, %v834
  %v836 = vpop.f32.mrb[0].mxu0
  %837 = vmatprep.mubr.bf16.mxu0 0
  %838 = vmatmul.mubr.bf16.gmra.mrb[0].mxu0 %v704
  %v839 = vpop.f32.mrb[0].mxu0
  %v840 = vadd.f32 0.0, %v839
  %v841 = vpop.f32.mrb[0].mxu0
  %v842 = vpop.f32.mrb[0].mxu0
  %v843 = vadd.f32 0.0, %v842
  %v844 = vpop.f32.mrb[0].mxu0
  %845 = vmatprep.mubr.bf16.mxu0 0
  %846 = vmatmul.mubr.bf16.gmra.mrb[0].mxu0 %v705
  %v847 = vpop.f32.mrb[0].mxu0
  %v848 = vadd.f32 0.0, %v847
  %v849 = vpop.f32.mrb[0].mxu0
  %v850 = vpop.f32.mrb[0].mxu0
  %v851 = vadd.f32 0.0, %v850
  %v852 = vpop.f32.mrb[0].mxu0
  %853 = vmatprep.mubr.bf16.mxu0 0
  %854 = vmatmul.mubr.bf16.gmra.mrb[0].mxu0 %v706
  %v855 = vpop.f32.mrb[0].mxu0
  %v856 = vadd.f32 0.0, %v855
  %v857 = vpop.f32.mrb[0].mxu0
  %v858 = vpop.f32.mrb[0].mxu0
  %v859 = vadd.f32 0.0, %v858
  %v860 = vpop.f32.mrb[0].mxu0
  %861 = vmatprep.mubr.bf16.mxu0 0
  %862 = vmatmul.mubr.bf16.gmra.mrb[0].mxu0 %v707
  %v863 = vpop.f32.mrb[0].mxu0
  %v864 = vadd.f32 0.0, %v863
  %v865 = vpop.f32.mrb[0].mxu0
  %v866 = vpop.f32.mrb[0].mxu0
  %v867 = vadd.f32 0.0, %v866
  %v868 = vpop.f32.mrb[0].mxu0
  %869 = vdwg.mxu0
  %v886 = vunpack.c.l.b16 %v555
  %v887 = vunpack.c.l.b16 %v556
  %v888 = vunpack.c.l.b16 %v557
  %v889 = vunpack.c.l.b16 %v558
  %v890 = vunpack.c.l.b16 %v559
  %v891 = vunpack.c.l.b16 %v560
  %v892 = vunpack.c.l.b16 %v561
  %v893 = vunpack.c.l.b16 %v562
  %v894 = vunpack.c.l.b16 %v563
  %v895 = vunpack.c.l.b16 %v564
  %v896 = vunpack.c.l.b16 %v565
  %v897 = vunpack.c.l.b16 %v566
  %v898 = vunpack.c.l.b16 %v567
  %v899 = vunpack.c.l.b16 %v568
  %v900 = vunpack.c.l.b16 %v569
  %v901 = vunpack.c.l.b16 %v570
  %v902 = vpack.c.b16 %v887, %v886
  %v903 = vpack.c.b16 %v889, %v888
  %v904 = vpack.c.b16 %v891, %v890
  %v905 = vpack.c.b16 %v893, %v892
  %v906 = vpack.c.b16 %v895, %v894
  %v907 = vpack.c.b16 %v897, %v896
  %v908 = vpack.c.b16 %v899, %v898
  %v909 = vpack.c.b16 %v901, %v900
  %918 = vmatprep.subr.bf16.mxu0 0
  %919 = vmatpush1.bf16.msra.mxu0 %v902
  %920 = vmatprep.subr.bf16.mxu0 0
  %921 = vmatpush1.bf16.msra.mxu0 %v903
  %922 = vmatprep.subr.bf16.mxu0 0
  %923 = vmatpush1.bf16.msra.mxu0 %v904
  %924 = vmatprep.subr.bf16.mxu0 0
  %925 = vmatpush1.bf16.msra.mxu0 %v905
  %926 = vmatprep.subr.bf16.mxu0 0
  %927 = vmatpush1.bf16.msra.mxu0 %v906
  %928 = vmatprep.subr.bf16.mxu0 0
  %929 = vmatpush1.bf16.msra.mxu0 %v907
  %930 = vmatprep.subr.bf16.mxu0 0
  %931 = vmatpush1.bf16.msra.mxu0 %v908
  %932 = vmatprep.subr.bf16.mxu0 0
  %933 = vmatpush1.bf16.msra.mxu0 %v909
  %934 = vmatprep.subr.bf16.mxu0 0
  %935 = vmatpush1.bf16.msra.mxu0 0
  %936 = vmatprep.subr.bf16.mxu0 0
  %937 = vmatpush1.bf16.msra.mxu0 0
  %938 = vmatprep.subr.bf16.mxu0 0
  %939 = vmatpush1.bf16.msra.mxu0 0
  %940 = vmatprep.subr.bf16.mxu0 0
  %941 = vmatpush1.bf16.msra.mxu0 0
  %942 = vmatprep.subr.bf16.mxu0 0
  %943 = vmatpush1.bf16.msra.mxu0 0
  %944 = vmatprep.subr.bf16.mxu0 0
  %945 = vmatpush1.bf16.msra.mxu0 0
  %946 = vmatprep.subr.bf16.mxu0 0
  %947 = vmatpush1.bf16.msra.mxu0 0
  %948 = vmatprep.subr.bf16.mxu0 0
  %949 = vmatpush1.bf16.msra.mxu0 0
  %950 = vmatprep.mubr.bf16.mxu0 0
  %951 = vmatmul.mubr.bf16.gmra.mrb[0].mxu0 %v547
  %v952 = vpop.f32.mrb[0].mxu0
  %v953 = vadd.f32 %v808, %v952
  %v954 = vpop.f32.mrb[0].mxu0
  %v955 = vpop.f32.mrb[0].mxu0
  %v956 = vadd.f32 %v811, %v955
  %v957 = vpop.f32.mrb[0].mxu0
  %958 = vmatprep.mubr.bf16.mxu0 0
  %959 = vmatmul.mubr.bf16.gmra.mrb[0].mxu0 %v548
  %v960 = vpop.f32.mrb[0].mxu0
  %v961 = vadd.f32 %v816, %v960
  %v962 = vpop.f32.mrb[0].mxu0
  %v963 = vpop.f32.mrb[0].mxu0
  %v964 = vadd.f32 %v819, %v963
  %v965 = vpop.f32.mrb[0].mxu0
  %966 = vmatprep.mubr.bf16.mxu0 0
  %967 = vmatmul.mubr.bf16.gmra.mrb[0].mxu0 %v549
  %v968 = vpop.f32.mrb[0].mxu0
  %v969 = vadd.f32 %v824, %v968
  %v970 = vpop.f32.mrb[0].mxu0
  %v971 = vpop.f32.mrb[0].mxu0
  %v972 = vadd.f32 %v827, %v971
  %v973 = vpop.f32.mrb[0].mxu0
  %974 = vmatprep.mubr.bf16.mxu0 0
  %975 = vmatmul.mubr.bf16.gmra.mrb[0].mxu0 %v550
  %v976 = vpop.f32.mrb[0].mxu0
  %v977 = vadd.f32 %v832, %v976
  %v978 = vpop.f32.mrb[0].mxu0
  %v979 = vpop.f32.mrb[0].mxu0
  %v980 = vadd.f32 %v835, %v979
  %v981 = vpop.f32.mrb[0].mxu0
  %982 = vmatprep.mubr.bf16.mxu0 0
  %983 = vmatmul.mubr.bf16.gmra.mrb[0].mxu0 %v551
  %v984 = vpop.f32.mrb[0].mxu0
  %v985 = vadd.f32 %v840, %v984
  %v986 = vpop.f32.mrb[0].mxu0
  %v987 = vpop.f32.mrb[0].mxu0
  %v988 = vadd.f32 %v843, %v987
  %v989 = vpop.f32.mrb[0].mxu0
  %990 = vmatprep.mubr.bf16.mxu0 0
  %991 = vmatmul.mubr.bf16.gmra.mrb[0].mxu0 %v552
  %v992 = vpop.f32.mrb[0].mxu0
  %v993 = vadd.f32 %v848, %v992
  %v994 = vpop.f32.mrb[0].mxu0
  %v995 = vpop.f32.mrb[0].mxu0
  %v996 = vadd.f32 %v851, %v995
  %v997 = vpop.f32.mrb[0].mxu0
  %998 = vmatprep.mubr.bf16.mxu0 0
  %999 = vmatmul.mubr.bf16.gmra.mrb[0].mxu0 %v553
  %v1000 = vpop.f32.mrb[0].mxu0
  %v1001 = vadd.f32 %v856, %v1000
  %v1002 = vpop.f32.mrb[0].mxu0
  %v1003 = vpop.f32.mrb[0].mxu0
  %v1004 = vadd.f32 %v859, %v1003
  %v1005 = vpop.f32.mrb[0].mxu0
  %1006 = vmatprep.mubr.bf16.mxu0 0
  %1007 = vmatmul.mubr.bf16.gmra.mrb[0].mxu0 %v554
  %v1008 = vpop.f32.mrb[0].mxu0
  %v1009 = vadd.f32 %v864, %v1008
  %v1010 = vpop.f32.mrb[0].mxu0
  %v1011 = vpop.f32.mrb[0].mxu0
  %v1012 = vadd.f32 %v867, %v1011
  %v1013 = vpop.f32.mrb[0].mxu0
  %1014 = vdwg.mxu0
  %v1015 = vld [vmem:[#allocation2 + $0x9] sm:$0xff]
  %v1016 = vld [vmem:[#allocation2 + $0x11] sm:$0xff]
  %v1017 = vld [vmem:[#allocation2 + $0x19] sm:$0xff]
  %v1018 = vld [vmem:[#allocation2 + $0x21] sm:$0xff]
  %v1019 = vld [vmem:[#allocation2 + $0x29] sm:$0xff]
  %v1020 = vld [vmem:[#allocation2 + $0x31] sm:$0xff]
  %v1021 = vld [vmem:[#allocation2 + $0x39] sm:$0xff]
  %v1022 = vld [vmem:[#allocation2 + $0x41] sm:$0xff]
  %v1023 = vld [vmem:[#allocation2 + $0x49] sm:$0xff]
  %v1024 = vld [vmem:[#allocation2 + $0x51] sm:$0xff]
  %v1025 = vld [vmem:[#allocation2 + $0x59] sm:$0xff]
  %v1026 = vld [vmem:[#allocation2 + $0x61] sm:$0xff]
  %v1027 = vld [vmem:[#allocation2 + $0x69] sm:$0xff]
  %v1028 = vld [vmem:[#allocation2 + $0x71] sm:$0xff]
  %v1029 = vld [vmem:[#allocation2 + $0x79] sm:$0xff]
  %v1030 = vld [vmem:[#allocation2 + $0x81] sm:$0xff]
  %s1031 = scalar_lea.vmem %s6, 256
  %v1032 = vld [vmem:[%s1031] sm:$0xff]
  %v1033 = vld [vmem:[%s1031 + $0x8] sm:$0xff]
  %v1034 = vld [vmem:[%s1031 + $0x10] sm:$0xff]
  %v1035 = vld [vmem:[%s1031 + $0x18] sm:$0xff]
  %v1036 = vld [vmem:[%s1031 + $0x20] sm:$0xff]
  %v1037 = vld [vmem:[%s1031 + $0x28] sm:$0xff]
  %v1038 = vld [vmem:[%s1031 + $0x30] sm:$0xff]
  %v1039 = vld [vmem:[%s1031 + $0x38] sm:$0xff]
  %v1040 = vld [vmem:[%s1031 + $0x40] sm:$0xff]
  %v1041 = vld [vmem:[%s1031 + $0x48] sm:$0xff]
  %v1042 = vld [vmem:[%s1031 + $0x50] sm:$0xff]
  %v1043 = vld [vmem:[%s1031 + $0x58] sm:$0xff]
  %v1044 = vld [vmem:[%s1031 + $0x60] sm:$0xff]
  %v1045 = vld [vmem:[%s1031 + $0x68] sm:$0xff]
  %v1046 = vld [vmem:[%s1031 + $0x70] sm:$0xff]
  %v1047 = vld [vmem:[%s1031 + $0x78] sm:$0xff]
  %1049 = vset.pattern.permute.xlu0 0
  %1050 = vperm.xlu0 %1049, %v1032
  %v1051 = vpop.permute.xlu0 %1050
  %1054 = vset.pattern.permute.xlu0 0
  %1055 = vperm.xlu0 %1054, %v1033
  %v1056 = vpop.permute.xlu0 %1055
  %1059 = vset.pattern.permute.xlu0 0
  %1060 = vperm.xlu0 %1059, %v1034
  %v1061 = vpop.permute.xlu0 %1060
  %1064 = vset.pattern.permute.xlu0 0
  %1065 = vperm.xlu0 %1064, %v1035
  %v1066 = vpop.permute.xlu0 %1065
  %1069 = vset.pattern.permute.xlu0 0
  %1070 = vperm.xlu0 %1069, %v1036
  %v1071 = vpop.permute.xlu0 %1070
  %1074 = vset.pattern.permute.xlu0 0
  %1075 = vperm.xlu0 %1074, %v1037
  %v1076 = vpop.permute.xlu0 %1075
  %1079 = vset.pattern.permute.xlu0 0
  %1080 = vperm.xlu0 %1079, %v1038
  %v1081 = vpop.permute.xlu0 %1080
  %1084 = vset.pattern.permute.xlu0 0
  %1085 = vperm.xlu0 %1084, %v1039
  %v1086 = vpop.permute.xlu0 %1085
  %1089 = vset.pattern.permute.xlu0 0
  %1090 = vperm.xlu0 %1089, %v1040
  %v1091 = vpop.permute.xlu0 %1090
  %1094 = vset.pattern.permute.xlu0 0
  %1095 = vperm.xlu0 %1094, %v1041
  %v1096 = vpop.permute.xlu0 %1095
  %1099 = vset.pattern.permute.xlu0 0
  %1100 = vperm.xlu0 %1099, %v1042
  %v1101 = vpop.permute.xlu0 %1100
  %1104 = vset.pattern.permute.xlu0 0
  %1105 = vperm.xlu0 %1104, %v1043
  %v1106 = vpop.permute.xlu0 %1105
  %1109 = vset.pattern.permute.xlu0 0
  %1110 = vperm.xlu0 %1109, %v1044
  %v1111 = vpop.permute.xlu0 %1110
  %1114 = vset.pattern.permute.xlu0 0
  %1115 = vperm.xlu0 %1114, %v1045
  %v1116 = vpop.permute.xlu0 %1115
  %1119 = vset.pattern.permute.xlu0 0
  %1120 = vperm.xlu0 %1119, %v1046
  %v1121 = vpop.permute.xlu0 %1120
  %1124 = vset.pattern.permute.xlu0 0
  %1125 = vperm.xlu0 %1124, %v1047
  %v1126 = vpop.permute.xlu0 %1125
  %v1128 = vmul.f32 %v1015, %v1051
  %v1129 = vmul.f32 %v1016, %v1056
  %v1130 = vmul.f32 %v1017, %v1061
  %v1131 = vmul.f32 %v1018, %v1066
  %v1132 = vmul.f32 %v1019, %v1071
  %v1133 = vmul.f32 %v1020, %v1076
  %v1134 = vmul.f32 %v1021, %v1081
  %v1135 = vmul.f32 %v1022, %v1086
  %v1136 = vmul.f32 %v1023, %v1091
  %v1137 = vmul.f32 %v1024, %v1096
  %v1138 = vmul.f32 %v1025, %v1101
  %v1139 = vmul.f32 %v1026, %v1106
  %v1140 = vmul.f32 %v1027, %v1111
  %v1141 = vmul.f32 %v1028, %v1116
  %v1142 = vmul.f32 %v1029, %v1121
  %v1143 = vmul.f32 %v1030, %v1126
  %v1144 = vpack.c.bf16 %v1129, %v1128
  %v1145 = vpack.c.bf16 %v1131, %v1130
  %v1146 = vpack.c.bf16 %v1133, %v1132
  %v1147 = vpack.c.bf16 %v1135, %v1134
  %v1148 = vpack.c.bf16 %v1137, %v1136
  %v1149 = vpack.c.bf16 %v1139, %v1138
  %v1150 = vpack.c.bf16 %v1141, %v1140
  %v1151 = vpack.c.bf16 %v1143, %v1142
  %s1152 = scalar_lea.vmem %s3, 128
  %v1153 = vld [vmem:[%s1152] sm:$0xf]
  %v1154 = vld [vmem:[%s1152 + $0x4] sm:$0xf]
  %v1155 = vld [vmem:[%s1152 + $0x8] sm:$0xf]
  %v1156 = vld [vmem:[%s1152 + $0xc] sm:$0xf]
  %v1157 = vld [vmem:[%s1152 + $0x10] sm:$0xf]
  %v1158 = vld [vmem:[%s1152 + $0x14] sm:$0xf]
  %v1159 = vld [vmem:[%s1152 + $0x18] sm:$0xf]
  %v1160 = vld [vmem:[%s1152 + $0x1c] sm:$0xf]
  %v1161 = vld [vmem:[%s1152 + $0x20] sm:$0xf]
  %v1162 = vld [vmem:[%s1152 + $0x24] sm:$0xf]
  %v1163 = vld [vmem:[%s1152 + $0x28] sm:$0xf]
  %v1164 = vld [vmem:[%s1152 + $0x2c] sm:$0xf]
  %v1165 = vld [vmem:[%s1152 + $0x30] sm:$0xf]
  %v1166 = vld [vmem:[%s1152 + $0x34] sm:$0xf]
  %v1167 = vld [vmem:[%s1152 + $0x38] sm:$0xf]
  %v1168 = vld [vmem:[%s1152 + $0x3c] sm:$0xf]
  %v1185 = vunpack.c.l.b16 %v1153
  %v1186 = vunpack.c.l.b16 %v1154
  %v1187 = vunpack.c.l.b16 %v1155
  %v1188 = vunpack.c.l.b16 %v1156
  %v1189 = vunpack.c.l.b16 %v1157
  %v1190 = vunpack.c.l.b16 %v1158
  %v1191 = vunpack.c.l.b16 %v1159
  %v1192 = vunpack.c.l.b16 %v1160
  %v1193 = vunpack.c.l.b16 %v1161
  %v1194 = vunpack.c.l.b16 %v1162
  %v1195 = vunpack.c.l.b16 %v1163
  %v1196 = vunpack.c.l.b16 %v1164
  %v1197 = vunpack.c.l.b16 %v1165
  %v1198 = vunpack.c.l.b16 %v1166
  %v1199 = vunpack.c.l.b16 %v1167
  %v1200 = vunpack.c.l.b16 %v1168
  %v1201 = vpack.c.b16 %v1186, %v1185
  %v1202 = vpack.c.b16 %v1188, %v1187
  %v1203 = vpack.c.b16 %v1190, %v1189
  %v1204 = vpack.c.b16 %v1192, %v1191
  %v1205 = vpack.c.b16 %v1194, %v1193
  %v1206 = vpack.c.b16 %v1196, %v1195
  %v1207 = vpack.c.b16 %v1198, %v1197
  %v1208 = vpack.c.b16 %v1200, %v1199
  %1217 = vmatprep.subr.bf16.mxu0 0
  %1218 = vmatpush1.bf16.msra.mxu0 %v1201
  %1219 = vmatprep.subr.bf16.mxu0 0
  %1220 = vmatpush1.bf16.msra.mxu0 %v1202
  %1221 = vmatprep.subr.bf16.mxu0 0
  %1222 = vmatpush1.bf16.msra.mxu0 %v1203
  %1223 = vmatprep.subr.bf16.mxu0 0
  %1224 = vmatpush1.bf16.msra.mxu0 %v1204
  %1225 = vmatprep.subr.bf16.mxu0 0
  %1226 = vmatpush1.bf16.msra.mxu0 %v1205
  %1227 = vmatprep.subr.bf16.mxu0 0
  %1228 = vmatpush1.bf16.msra.mxu0 %v1206
  %1229 = vmatprep.subr.bf16.mxu0 0
  %1230 = vmatpush1.bf16.msra.mxu0 %v1207
  %1231 = vmatprep.subr.bf16.mxu0 0
  %1232 = vmatpush1.bf16.msra.mxu0 %v1208
  %1233 = vmatprep.subr.bf16.mxu0 0
  %1234 = vmatpush1.bf16.msra.mxu0 0
  %1235 = vmatprep.subr.bf16.mxu0 0
  %1236 = vmatpush1.bf16.msra.mxu0 0
  %1237 = vmatprep.subr.bf16.mxu0 0
  %1238 = vmatpush1.bf16.msra.mxu0 0
  %1239 = vmatprep.subr.bf16.mxu0 0
  %1240 = vmatpush1.bf16.msra.mxu0 0
  %1241 = vmatprep.subr.bf16.mxu0 0
  %1242 = vmatpush1.bf16.msra.mxu0 0
  %1243 = vmatprep.subr.bf16.mxu0 0
  %1244 = vmatpush1.bf16.msra.mxu0 0
  %1245 = vmatprep.subr.bf16.mxu0 0
  %1246 = vmatpush1.bf16.msra.mxu0 0
  %1247 = vmatprep.subr.bf16.mxu0 0
  %1248 = vmatpush1.bf16.msra.mxu0 0
  %1249 = vmatprep.mubr.bf16.mxu0 0
  %1250 = vmatmul.mubr.bf16.gmra.mrb[0].mxu0 %v1144
  %v1251 = vpop.f32.mrb[0].mxu0
  %v1252 = vadd.f32 0.0, %v1251
  %v1253 = vpop.f32.mrb[0].mxu0
  %v1254 = vpop.f32.mrb[0].mxu0
  %v1255 = vadd.f32 0.0, %v1254
  %v1256 = vpop.f32.mrb[0].mxu0
  %1257 = vmatprep.mubr.bf16.mxu0 0
  %1258 = vmatmul.mubr.bf16.gmra.mrb[0].mxu0 %v1145
  %v1259 = vpop.f32.mrb[0].mxu0
  %v1260 = vadd.f32 0.0, %v1259
  %v1261 = vpop.f32.mrb[0].mxu0
  %v1262 = vpop.f32.mrb[0].mxu0
  %v1263 = vadd.f32 0.0, %v1262
  %v1264 = vpop.f32.mrb[0].mxu0
  %1265 = vmatprep.mubr.bf16.mxu0 0
  %1266 = vmatmul.mubr.bf16.gmra.mrb[0].mxu0 %v1146
  %v1267 = vpop.f32.mrb[0].mxu0
  %v1268 = vadd.f32 0.0, %v1267
  %v1269 = vpop.f32.mrb[0].mxu0
  %v1270 = vpop.f32.mrb[0].mxu0
  %v1271 = vadd.f32 0.0, %v1270
  %v1272 = vpop.f32.mrb[0].mxu0
  %1273 = vmatprep.mubr.bf16.mxu0 0
  %1274 = vmatmul.mubr.bf16.gmra.mrb[0].mxu0 %v1147
  %v1275 = vpop.f32.mrb[0].mxu0
  %v1276 = vadd.f32 0.0, %v1275
  %v1277 = vpop.f32.mrb[0].mxu0
  %v1278 = vpop.f32.mrb[0].mxu0
  %v1279 = vadd.f32 0.0, %v1278
  %v1280 = vpop.f32.mrb[0].mxu0
  %1281 = vmatprep.mubr.bf16.mxu0 0
  %1282 = vmatmul.mubr.bf16.gmra.mrb[0].mxu0 %v1148
  %v1283 = vpop.f32.mrb[0].mxu0
  %v1284 = vadd.f32 0.0, %v1283
  %v1285 = vpop.f32.mrb[0].mxu0
  %v1286 = vpop.f32.mrb[0].mxu0
  %v1287 = vadd.f32 0.0, %v1286
  %v1288 = vpop.f32.mrb[0].mxu0
  %1289 = vmatprep.mubr.bf16.mxu0 0
  %1290 = vmatmul.mubr.bf16.gmra.mrb[0].mxu0 %v1149
  %v1291 = vpop.f32.mrb[0].mxu0
  %v1292 = vadd.f32 0.0, %v1291
  %v1293 = vpop.f32.mrb[0].mxu0
  %v1294 = vpop.f32.mrb[0].mxu0
  %v1295 = vadd.f32 0.0, %v1294
  %v1296 = vpop.f32.mrb[0].mxu0
  %1297 = vmatprep.mubr.bf16.mxu0 0
  %1298 = vmatmul.mubr.bf16.gmra.mrb[0].mxu0 %v1150
  %v1299 = vpop.f32.mrb[0].mxu0
  %v1300 = vadd.f32 0.0, %v1299
  %v1301 = vpop.f32.mrb[0].mxu0
  %v1302 = vpop.f32.mrb[0].mxu0
  %v1303 = vadd.f32 0.0, %v1302
  %v1304 = vpop.f32.mrb[0].mxu0
  %1305 = vmatprep.mubr.bf16.mxu0 0
  %1306 = vmatmul.mubr.bf16.gmra.mrb[0].mxu0 %v1151
  %v1307 = vpop.f32.mrb[0].mxu0
  %v1308 = vadd.f32 0.0, %v1307
  %v1309 = vpop.f32.mrb[0].mxu0
  %v1310 = vpop.f32.mrb[0].mxu0
  %v1311 = vadd.f32 0.0, %v1310
  %v1312 = vpop.f32.mrb[0].mxu0
  %1313 = vdwg.mxu0
  %v1314 = vadd.f32 %v953, %v1252
  %v1315 = vadd.f32 %v956, %v1255
  %v1316 = vadd.f32 %v961, %v1260
  %v1317 = vadd.f32 %v964, %v1263
  %v1318 = vadd.f32 %v969, %v1268
  %v1319 = vadd.f32 %v972, %v1271
  %v1320 = vadd.f32 %v977, %v1276
  %v1321 = vadd.f32 %v980, %v1279
  %v1322 = vadd.f32 %v985, %v1284
  %v1323 = vadd.f32 %v988, %v1287
  %v1324 = vadd.f32 %v993, %v1292
  %v1325 = vadd.f32 %v996, %v1295
  %v1326 = vadd.f32 %v1001, %v1300
  %v1327 = vadd.f32 %v1004, %v1303
  %v1328 = vadd.f32 %v1009, %v1308
  %v1329 = vadd.f32 %v1012, %v1311
  %v1330 = vld [vmem:[#allocation2 + $0xf] sm:$0xff]
  %v1331 = vld [vmem:[#allocation2 + $0x17] sm:$0xff]
  %v1332 = vld [vmem:[#allocation2 + $0x1f] sm:$0xff]
  %v1333 = vld [vmem:[#allocation2 + $0x27] sm:$0xff]
  %v1334 = vld [vmem:[#allocation2 + $0x2f] sm:$0xff]
  %v1335 = vld [vmem:[#allocation2 + $0x37] sm:$0xff]
  %v1336 = vld [vmem:[#allocation2 + $0x3f] sm:$0xff]
  %v1337 = vld [vmem:[#allocation2 + $0x47] sm:$0xff]
  %v1338 = vld [vmem:[#allocation2 + $0x4f] sm:$0xff]
  %v1339 = vld [vmem:[#allocation2 + $0x57] sm:$0xff]
  %v1340 = vld [vmem:[#allocation2 + $0x5f] sm:$0xff]
  %v1341 = vld [vmem:[#allocation2 + $0x67] sm:$0xff]
  %v1342 = vld [vmem:[#allocation2 + $0x6f] sm:$0xff]
  %v1343 = vld [vmem:[#allocation2 + $0x77] sm:$0xff]
  %v1344 = vld [vmem:[#allocation2 + $0x7f] sm:$0xff]
  %v1345 = vld [vmem:[#allocation2 + $0x87] sm:$0xff]
  %s1346 = scalar_lea.vmem %s6, 384
  %v1347 = vld [vmem:[%s1346] sm:$0xff]
  %v1348 = vld [vmem:[%s1346 + $0x8] sm:$0xff]
  %v1349 = vld [vmem:[%s1346 + $0x10] sm:$0xff]
  %v1350 = vld [vmem:[%s1346 + $0x18] sm:$0xff]
  %v1351 = vld [vmem:[%s1346 + $0x20] sm:$0xff]
  %v1352 = vld [vmem:[%s1346 + $0x28] sm:$0xff]
  %v1353 = vld [vmem:[%s1346 + $0x30] sm:$0xff]
  %v1354 = vld [vmem:[%s1346 + $0x38] sm:$0xff]
  %v1355 = vld [vmem:[%s1346 + $0x40] sm:$0xff]
  %v1356 = vld [vmem:[%s1346 + $0x48] sm:$0xff]
  %v1357 = vld [vmem:[%s1346 + $0x50] sm:$0xff]
  %v1358 = vld [vmem:[%s1346 + $0x58] sm:$0xff]
  %v1359 = vld [vmem:[%s1346 + $0x60] sm:$0xff]
  %v1360 = vld [vmem:[%s1346 + $0x68] sm:$0xff]
  %v1361 = vld [vmem:[%s1346 + $0x70] sm:$0xff]
  %v1362 = vld [vmem:[%s1346 + $0x78] sm:$0xff]
  %1364 = vset.pattern.permute.xlu0 0
  %1365 = vperm.xlu0 %1364, %v1347
  %v1366 = vpop.permute.xlu0 %1365
  %1369 = vset.pattern.permute.xlu0 0
  %1370 = vperm.xlu0 %1369, %v1348
  %v1371 = vpop.permute.xlu0 %1370
  %1374 = vset.pattern.permute.xlu0 0
  %1375 = vperm.xlu0 %1374, %v1349
  %v1376 = vpop.permute.xlu0 %1375
  %1379 = vset.pattern.permute.xlu0 0
  %1380 = vperm.xlu0 %1379, %v1350
  %v1381 = vpop.permute.xlu0 %1380
  %1384 = vset.pattern.permute.xlu0 0
  %1385 = vperm.xlu0 %1384, %v1351
  %v1386 = vpop.permute.xlu0 %1385
  %1389 = vset.pattern.permute.xlu0 0
  %1390 = vperm.xlu0 %1389, %v1352
  %v1391 = vpop.permute.xlu0 %1390
  %1394 = vset.pattern.permute.xlu0 0
  %1395 = vperm.xlu0 %1394, %v1353
  %v1396 = vpop.permute.xlu0 %1395
  %1399 = vset.pattern.permute.xlu0 0
  %1400 = vperm.xlu0 %1399, %v1354
  %v1401 = vpop.permute.xlu0 %1400
  %1404 = vset.pattern.permute.xlu0 0
  %1405 = vperm.xlu0 %1404, %v1355
  %v1406 = vpop.permute.xlu0 %1405
  %1409 = vset.pattern.permute.xlu0 0
  %1410 = vperm.xlu0 %1409, %v1356
  %v1411 = vpop.permute.xlu0 %1410
  %1414 = vset.pattern.permute.xlu0 0
  %1415 = vperm.xlu0 %1414, %v1357
  %v1416 = vpop.permute.xlu0 %1415
  %1419 = vset.pattern.permute.xlu0 0
  %1420 = vperm.xlu0 %1419, %v1358
  %v1421 = vpop.permute.xlu0 %1420
  %1424 = vset.pattern.permute.xlu0 0
  %1425 = vperm.xlu0 %1424, %v1359
  %v1426 = vpop.permute.xlu0 %1425
  %1429 = vset.pattern.permute.xlu0 0
  %1430 = vperm.xlu0 %1429, %v1360
  %v1431 = vpop.permute.xlu0 %1430
  %1434 = vset.pattern.permute.xlu0 0
  %1435 = vperm.xlu0 %1434, %v1361
  %v1436 = vpop.permute.xlu0 %1435
  %1439 = vset.pattern.permute.xlu0 0
  %1440 = vperm.xlu0 %1439, %v1362
  %v1441 = vpop.permute.xlu0 %1440
  %v1443 = vmul.f32 %v1330, %v1366
  %v1444 = vmul.f32 %v1331, %v1371
  %v1445 = vmul.f32 %v1332, %v1376
  %v1446 = vmul.f32 %v1333, %v1381
  %v1447 = vmul.f32 %v1334, %v1386
  %v1448 = vmul.f32 %v1335, %v1391
  %v1449 = vmul.f32 %v1336, %v1396
  %v1450 = vmul.f32 %v1337, %v1401
  %v1451 = vmul.f32 %v1338, %v1406
  %v1452 = vmul.f32 %v1339, %v1411
  %v1453 = vmul.f32 %v1340, %v1416
  %v1454 = vmul.f32 %v1341, %v1421
  %v1455 = vmul.f32 %v1342, %v1426
  %v1456 = vmul.f32 %v1343, %v1431
  %v1457 = vmul.f32 %v1344, %v1436
  %v1458 = vmul.f32 %v1345, %v1441
  %v1459 = vpack.c.bf16 %v1444, %v1443
  %v1460 = vpack.c.bf16 %v1446, %v1445
  %v1461 = vpack.c.bf16 %v1448, %v1447
  %v1462 = vpack.c.bf16 %v1450, %v1449
  %v1463 = vpack.c.bf16 %v1452, %v1451
  %v1464 = vpack.c.bf16 %v1454, %v1453
  %v1465 = vpack.c.bf16 %v1456, %v1455
  %v1466 = vpack.c.bf16 %v1458, %v1457
  %s1467 = scalar_lea.vmem %s3, 192
  %v1468 = vld [vmem:[%s1467] sm:$0xf]
  %v1469 = vld [vmem:[%s1467 + $0x4] sm:$0xf]
  %v1470 = vld [vmem:[%s1467 + $0x8] sm:$0xf]
  %v1471 = vld [vmem:[%s1467 + $0xc] sm:$0xf]
  %v1472 = vld [vmem:[%s1467 + $0x10] sm:$0xf]
  %v1473 = vld [vmem:[%s1467 + $0x14] sm:$0xf]
  %v1474 = vld [vmem:[%s1467 + $0x18] sm:$0xf]
  %v1475 = vld [vmem:[%s1467 + $0x1c] sm:$0xf]
  %v1476 = vld [vmem:[%s1467 + $0x20] sm:$0xf]
  %v1477 = vld [vmem:[%s1467 + $0x24] sm:$0xf]
  %v1478 = vld [vmem:[%s1467 + $0x28] sm:$0xf]
  %v1479 = vld [vmem:[%s1467 + $0x2c] sm:$0xf]
  %v1480 = vld [vmem:[%s1467 + $0x30] sm:$0xf]
  %v1481 = vld [vmem:[%s1467 + $0x34] sm:$0xf]
  %v1482 = vld [vmem:[%s1467 + $0x38] sm:$0xf]
  %v1483 = vld [vmem:[%s1467 + $0x3c] sm:$0xf]
  %v1500 = vunpack.c.l.b16 %v1468
  %v1501 = vunpack.c.l.b16 %v1469
  %v1502 = vunpack.c.l.b16 %v1470
  %v1503 = vunpack.c.l.b16 %v1471
  %v1504 = vunpack.c.l.b16 %v1472
  %v1505 = vunpack.c.l.b16 %v1473
  %v1506 = vunpack.c.l.b16 %v1474
  %v1507 = vunpack.c.l.b16 %v1475
  %v1508 = vunpack.c.l.b16 %v1476
  %v1509 = vunpack.c.l.b16 %v1477
  %v1510 = vunpack.c.l.b16 %v1478
  %v1511 = vunpack.c.l.b16 %v1479
  %v1512 = vunpack.c.l.b16 %v1480
  %v1513 = vunpack.c.l.b16 %v1481
  %v1514 = vunpack.c.l.b16 %v1482
  %v1515 = vunpack.c.l.b16 %v1483
  %v1516 = vpack.c.b16 %v1501, %v1500
  %v1517 = vpack.c.b16 %v1503, %v1502
  %v1518 = vpack.c.b16 %v1505, %v1504
  %v1519 = vpack.c.b16 %v1507, %v1506
  %v1520 = vpack.c.b16 %v1509, %v1508
  %v1521 = vpack.c.b16 %v1511, %v1510
  %v1522 = vpack.c.b16 %v1513, %v1512
  %v1523 = vpack.c.b16 %v1515, %v1514
  %1532 = vmatprep.subr.bf16.mxu0 0
  %1533 = vmatpush1.bf16.msra.mxu0 %v1516
  %1534 = vmatprep.subr.bf16.mxu0 0
  %1535 = vmatpush1.bf16.msra.mxu0 %v1517
  %1536 = vmatprep.subr.bf16.mxu0 0
  %1537 = vmatpush1.bf16.msra.mxu0 %v1518
  %1538 = vmatprep.subr.bf16.mxu0 0
  %1539 = vmatpush1.bf16.msra.mxu0 %v1519
  %1540 = vmatprep.subr.bf16.mxu0 0
  %1541 = vmatpush1.bf16.msra.mxu0 %v1520
  %1542 = vmatprep.subr.bf16.mxu0 0
  %1543 = vmatpush1.bf16.msra.mxu0 %v1521
  %1544 = vmatprep.subr.bf16.mxu0 0
  %1545 = vmatpush1.bf16.msra.mxu0 %v1522
  %1546 = vmatprep.subr.bf16.mxu0 0
  %1547 = vmatpush1.bf16.msra.mxu0 %v1523
  %1548 = vmatprep.subr.bf16.mxu0 0
  %1549 = vmatpush1.bf16.msra.mxu0 0
  %1550 = vmatprep.subr.bf16.mxu0 0
  %1551 = vmatpush1.bf16.msra.mxu0 0
  %1552 = vmatprep.subr.bf16.mxu0 0
  %1553 = vmatpush1.bf16.msra.mxu0 0
  %1554 = vmatprep.subr.bf16.mxu0 0
  %1555 = vmatpush1.bf16.msra.mxu0 0
  %1556 = vmatprep.subr.bf16.mxu0 0
  %1557 = vmatpush1.bf16.msra.mxu0 0
  %1558 = vmatprep.subr.bf16.mxu0 0
  %1559 = vmatpush1.bf16.msra.mxu0 0
  %1560 = vmatprep.subr.bf16.mxu0 0
  %1561 = vmatpush1.bf16.msra.mxu0 0
  %1562 = vmatprep.subr.bf16.mxu0 0
  %1563 = vmatpush1.bf16.msra.mxu0 0
  %1564 = vmatprep.mubr.bf16.mxu0 0
  %1565 = vmatmul.mubr.bf16.gmra.mrb[0].mxu0 %v1459
  %v1566 = vpop.f32.mrb[0].mxu0
  %v1567 = vadd.f32 0.0, %v1566
  %v1568 = vpop.f32.mrb[0].mxu0
  %v1569 = vpop.f32.mrb[0].mxu0
  %v1570 = vadd.f32 0.0, %v1569
  %v1571 = vpop.f32.mrb[0].mxu0
  %1572 = vmatprep.mubr.bf16.mxu0 0
  %1573 = vmatmul.mubr.bf16.gmra.mrb[0].mxu0 %v1460
  %v1574 = vpop.f32.mrb[0].mxu0
  %v1575 = vadd.f32 0.0, %v1574
  %v1576 = vpop.f32.mrb[0].mxu0
  %v1577 = vpop.f32.mrb[0].mxu0
  %v1578 = vadd.f32 0.0, %v1577
  %v1579 = vpop.f32.mrb[0].mxu0
  %1580 = vmatprep.mubr.bf16.mxu0 0
  %1581 = vmatmul.mubr.bf16.gmra.mrb[0].mxu0 %v1461
  %v1582 = vpop.f32.mrb[0].mxu0
  %v1583 = vadd.f32 0.0, %v1582
  %v1584 = vpop.f32.mrb[0].mxu0
  %v1585 = vpop.f32.mrb[0].mxu0
  %v1586 = vadd.f32 0.0, %v1585
  %v1587 = vpop.f32.mrb[0].mxu0
  %1588 = vmatprep.mubr.bf16.mxu0 0
  %1589 = vmatmul.mubr.bf16.gmra.mrb[0].mxu0 %v1462
  %v1590 = vpop.f32.mrb[0].mxu0
  %v1591 = vadd.f32 0.0, %v1590
  %v1592 = vpop.f32.mrb[0].mxu0
  %v1593 = vpop.f32.mrb[0].mxu0
  %v1594 = vadd.f32 0.0, %v1593
  %v1595 = vpop.f32.mrb[0].mxu0
  %1596 = vmatprep.mubr.bf16.mxu0 0
  %1597 = vmatmul.mubr.bf16.gmra.mrb[0].mxu0 %v1463
  %v1598 = vpop.f32.mrb[0].mxu0
  %v1599 = vadd.f32 0.0, %v1598
  %v1600 = vpop.f32.mrb[0].mxu0
  %v1601 = vpop.f32.mrb[0].mxu0
  %v1602 = vadd.f32 0.0, %v1601
  %v1603 = vpop.f32.mrb[0].mxu0
  %1604 = vmatprep.mubr.bf16.mxu0 0
  %1605 = vmatmul.mubr.bf16.gmra.mrb[0].mxu0 %v1464
  %v1606 = vpop.f32.mrb[0].mxu0
  %v1607 = vadd.f32 0.0, %v1606
  %v1608 = vpop.f32.mrb[0].mxu0
  %v1609 = vpop.f32.mrb[0].mxu0
  %v1610 = vadd.f32 0.0, %v1609
  %v1611 = vpop.f32.mrb[0].mxu0
  %1612 = vmatprep.mubr.bf16.mxu0 0
  %1613 = vmatmul.mubr.bf16.gmra.mrb[0].mxu0 %v1465
  %v1614 = vpop.f32.mrb[0].mxu0
  %v1615 = vadd.f32 0.0, %v1614
  %v1616 = vpop.f32.mrb[0].mxu0
  %v1617 = vpop.f32.mrb[0].mxu0
  %v1618 = vadd.f32 0.0, %v1617
  %v1619 = vpop.f32.mrb[0].mxu0
  %1620 = vmatprep.mubr.bf16.mxu0 0
  %1621 = vmatmul.mubr.bf16.gmra.mrb[0].mxu0 %v1466
  %v1622 = vpop.f32.mrb[0].mxu0
  %v1623 = vadd.f32 0.0, %v1622
  %v1624 = vpop.f32.mrb[0].mxu0
  %v1625 = vpop.f32.mrb[0].mxu0
  %v1626 = vadd.f32 0.0, %v1625
  %v1627 = vpop.f32.mrb[0].mxu0
  %1628 = vdwg.mxu0
  %v1629 = vadd.f32 %v1314, %v1567
  %v1630 = vadd.f32 %v1315, %v1570
  %v1631 = vadd.f32 %v1316, %v1575
  %v1632 = vadd.f32 %v1317, %v1578
  %v1633 = vadd.f32 %v1318, %v1583
  %v1634 = vadd.f32 %v1319, %v1586
  %v1635 = vadd.f32 %v1320, %v1591
  %v1636 = vadd.f32 %v1321, %v1594
  %v1637 = vadd.f32 %v1322, %v1599
  %v1638 = vadd.f32 %v1323, %v1602
  %v1639 = vadd.f32 %v1324, %v1607
  %v1640 = vadd.f32 %v1325, %v1610
  %v1641 = vadd.f32 %v1326, %v1615
  %v1642 = vadd.f32 %v1327, %v1618
  %v1643 = vadd.f32 %v1328, %v1623
  %v1644 = vadd.f32 %v1329, %v1626
  %v1645 = vld [vmem:[#allocation2 + $0x10] sm:$0xff]
  %v1646 = vld [vmem:[#allocation2 + $0x18] sm:$0xff]
  %v1647 = vld [vmem:[#allocation2 + $0x20] sm:$0xff]
  %v1648 = vld [vmem:[#allocation2 + $0x28] sm:$0xff]
  %v1649 = vld [vmem:[#allocation2 + $0x30] sm:$0xff]
  %v1650 = vld [vmem:[#allocation2 + $0x38] sm:$0xff]
  %v1651 = vld [vmem:[#allocation2 + $0x40] sm:$0xff]
  %v1652 = vld [vmem:[#allocation2 + $0x48] sm:$0xff]
  %v1653 = vld [vmem:[#allocation2 + $0x50] sm:$0xff]
  %v1654 = vld [vmem:[#allocation2 + $0x58] sm:$0xff]
  %v1655 = vld [vmem:[#allocation2 + $0x60] sm:$0xff]
  %v1656 = vld [vmem:[#allocation2 + $0x68] sm:$0xff]
  %v1657 = vld [vmem:[#allocation2 + $0x70] sm:$0xff]
  %v1658 = vld [vmem:[#allocation2 + $0x78] sm:$0xff]
  %v1659 = vld [vmem:[#allocation2 + $0x80] sm:$0xff]
  %v1660 = vld [vmem:[#allocation2 + $0x88] sm:$0xff]
  %s1661 = scalar_lea.vmem %s6, 512
  %v1662 = vld [vmem:[%s1661] sm:$0xff]
  %v1663 = vld [vmem:[%s1661 + $0x8] sm:$0xff]
  %v1664 = vld [vmem:[%s1661 + $0x10] sm:$0xff]
  %v1665 = vld [vmem:[%s1661 + $0x18] sm:$0xff]
  %v1666 = vld [vmem:[%s1661 + $0x20] sm:$0xff]
  %v1667 = vld [vmem:[%s1661 + $0x28] sm:$0xff]
  %v1668 = vld [vmem:[%s1661 + $0x30] sm:$0xff]
  %v1669 = vld [vmem:[%s1661 + $0x38] sm:$0xff]
  %v1670 = vld [vmem:[%s1661 + $0x40] sm:$0xff]
  %v1671 = vld [vmem:[%s1661 + $0x48] sm:$0xff]
  %v1672 = vld [vmem:[%s1661 + $0x50] sm:$0xff]
  %v1673 = vld [vmem:[%s1661 + $0x58] sm:$0xff]
  %v1674 = vld [vmem:[%s1661 + $0x60] sm:$0xff]
  %v1675 = vld [vmem:[%s1661 + $0x68] sm:$0xff]
  %v1676 = vld [vmem:[%s1661 + $0x70] sm:$0xff]
  %v1677 = vld [vmem:[%s1661 + $0x78] sm:$0xff]
  %1679 = vset.pattern.permute.xlu0 0
  %1680 = vperm.xlu0 %1679, %v1662
  %v1681 = vpop.permute.xlu0 %1680
  %1684 = vset.pattern.permute.xlu0 0
  %1685 = vperm.xlu0 %1684, %v1663
  %v1686 = vpop.permute.xlu0 %1685
  %1689 = vset.pattern.permute.xlu0 0
  %1690 = vperm.xlu0 %1689, %v1664
  %v1691 = vpop.permute.xlu0 %1690
  %1694 = vset.pattern.permute.xlu0 0
  %1695 = vperm.xlu0 %1694, %v1665
  %v1696 = vpop.permute.xlu0 %1695
  %1699 = vset.pattern.permute.xlu0 0
  %1700 = vperm.xlu0 %1699, %v1666
  %v1701 = vpop.permute.xlu0 %1700
  %1704 = vset.pattern.permute.xlu0 0
  %1705 = vperm.xlu0 %1704, %v1667
  %v1706 = vpop.permute.xlu0 %1705
  %1709 = vset.pattern.permute.xlu0 0
  %1710 = vperm.xlu0 %1709, %v1668
  %v1711 = vpop.permute.xlu0 %1710
  %1714 = vset.pattern.permute.xlu0 0
  %1715 = vperm.xlu0 %1714, %v1669
  %v1716 = vpop.permute.xlu0 %1715
  %1719 = vset.pattern.permute.xlu0 0
  %1720 = vperm.xlu0 %1719, %v1670
  %v1721 = vpop.permute.xlu0 %1720
  %1724 = vset.pattern.permute.xlu0 0
  %1725 = vperm.xlu0 %1724, %v1671
  %v1726 = vpop.permute.xlu0 %1725
  %1729 = vset.pattern.permute.xlu0 0
  %1730 = vperm.xlu0 %1729, %v1672
  %v1731 = vpop.permute.xlu0 %1730
  %1734 = vset.pattern.permute.xlu0 0
  %1735 = vperm.xlu0 %1734, %v1673
  %v1736 = vpop.permute.xlu0 %1735
  %1739 = vset.pattern.permute.xlu0 0
  %1740 = vperm.xlu0 %1739, %v1674
  %v1741 = vpop.permute.xlu0 %1740
  %1744 = vset.pattern.permute.xlu0 0
  %1745 = vperm.xlu0 %1744, %v1675
  %v1746 = vpop.permute.xlu0 %1745
  %1749 = vset.pattern.permute.xlu0 0
  %1750 = vperm.xlu0 %1749, %v1676
  %v1751 = vpop.permute.xlu0 %1750
  %1754 = vset.pattern.permute.xlu0 0
  %1755 = vperm.xlu0 %1754, %v1677
  %v1756 = vpop.permute.xlu0 %1755
  %v1758 = vmul.f32 %v1645, %v1681
  %v1759 = vmul.f32 %v1646, %v1686
  %v1760 = vmul.f32 %v1647, %v1691
  %v1761 = vmul.f32 %v1648, %v1696
  %v1762 = vmul.f32 %v1649, %v1701
  %v1763 = vmul.f32 %v1650, %v1706
  %v1764 = vmul.f32 %v1651, %v1711
  %v1765 = vmul.f32 %v1652, %v1716
  %v1766 = vmul.f32 %v1653, %v1721
  %v1767 = vmul.f32 %v1654, %v1726
  %v1768 = vmul.f32 %v1655, %v1731
  %v1769 = vmul.f32 %v1656, %v1736
  %v1770 = vmul.f32 %v1657, %v1741
  %v1771 = vmul.f32 %v1658, %v1746
  %v1772 = vmul.f32 %v1659, %v1751
  %v1773 = vmul.f32 %v1660, %v1756
  %v1774 = vpack.c.bf16 %v1759, %v1758
  %v1775 = vpack.c.bf16 %v1761, %v1760
  %v1776 = vpack.c.bf16 %v1763, %v1762
  %v1777 = vpack.c.bf16 %v1765, %v1764
  %v1778 = vpack.c.bf16 %v1767, %v1766
  %v1779 = vpack.c.bf16 %v1769, %v1768
  %v1780 = vpack.c.bf16 %v1771, %v1770
  %v1781 = vpack.c.bf16 %v1773, %v1772
  %s1782 = scalar_lea.vmem %s3, 256
  %v1783 = vld [vmem:[%s1782] sm:$0xf]
  %v1784 = vld [vmem:[%s1782 + $0x4] sm:$0xf]
  %v1785 = vld [vmem:[%s1782 + $0x8] sm:$0xf]
  %v1786 = vld [vmem:[%s1782 + $0xc] sm:$0xf]
  %v1787 = vld [vmem:[%s1782 + $0x10] sm:$0xf]
  %v1788 = vld [vmem:[%s1782 + $0x14] sm:$0xf]
  %v1789 = vld [vmem:[%s1782 + $0x18] sm:$0xf]
  %v1790 = vld [vmem:[%s1782 + $0x1c] sm:$0xf]
  %v1791 = vld [vmem:[%s1782 + $0x20] sm:$0xf]
  %v1792 = vld [vmem:[%s1782 + $0x24] sm:$0xf]
  %v1793 = vld [vmem:[%s1782 + $0x28] sm:$0xf]
  %v1794 = vld [vmem:[%s1782 + $0x2c] sm:$0xf]
  %v1795 = vld [vmem:[%s1782 + $0x30] sm:$0xf]
  %v1796 = vld [vmem:[%s1782 + $0x34] sm:$0xf]
  %v1797 = vld [vmem:[%s1782 + $0x38] sm:$0xf]
  %v1798 = vld [vmem:[%s1782 + $0x3c] sm:$0xf]
  %v1815 = vunpack.c.l.b16 %v1783
  %v1816 = vunpack.c.l.b16 %v1784
  %v1817 = vunpack.c.l.b16 %v1785
  %v1818 = vunpack.c.l.b16 %v1786
  %v1819 = vunpack.c.l.b16 %v1787
  %v1820 = vunpack.c.l.b16 %v1788
  %v1821 = vunpack.c.l.b16 %v1789
  %v1822 = vunpack.c.l.b16 %v1790
  %v1823 = vunpack.c.l.b16 %v1791
  %v1824 = vunpack.c.l.b16 %v1792
  %v1825 = vunpack.c.l.b16 %v1793
  %v1826 = vunpack.c.l.b16 %v1794
  %v1827 = vunpack.c.l.b16 %v1795
  %v1828 = vunpack.c.l.b16 %v1796
  %v1829 = vunpack.c.l.b16 %v1797
  %v1830 = vunpack.c.l.b16 %v1798
  %v1831 = vpack.c.b16 %v1816, %v1815
  %v1832 = vpack.c.b16 %v1818, %v1817
  %v1833 = vpack.c.b16 %v1820, %v1819
  %v1834 = vpack.c.b16 %v1822, %v1821
  %v1835 = vpack.c.b16 %v1824, %v1823
  %v1836 = vpack.c.b16 %v1826, %v1825
  %v1837 = vpack.c.b16 %v1828, %v1827
  %v1838 = vpack.c.b16 %v1830, %v1829
  %1847 = vmatprep.subr.bf16.mxu0 0
  %1848 = vmatpush1.bf16.msra.mxu0 %v1831
  %1849 = vmatprep.subr.bf16.mxu0 0
  %1850 = vmatpush1.bf16.msra.mxu0 %v1832
  %1851 = vmatprep.subr.bf16.mxu0 0
  %1852 = vmatpush1.bf16.msra.mxu0 %v1833
  %1853 = vmatprep.subr.bf16.mxu0 0
  %1854 = vmatpush1.bf16.msra.mxu0 %v1834
  %1855 = vmatprep.subr.bf16.mxu0 0
  %1856 = vmatpush1.bf16.msra.mxu0 %v1835
  %1857 = vmatprep.subr.bf16.mxu0 0
  %1858 = vmatpush1.bf16.msra.mxu0 %v1836
  %1859 = vmatprep.subr.bf16.mxu0 0
  %1860 = vmatpush1.bf16.msra.mxu0 %v1837
  %1861 = vmatprep.subr.bf16.mxu0 0
  %1862 = vmatpush1.bf16.msra.mxu0 %v1838
  %1863 = vmatprep.subr.bf16.mxu0 0
  %1864 = vmatpush1.bf16.msra.mxu0 0
  %1865 = vmatprep.subr.bf16.mxu0 0
  %1866 = vmatpush1.bf16.msra.mxu0 0
  %1867 = vmatprep.subr.bf16.mxu0 0
  %1868 = vmatpush1.bf16.msra.mxu0 0
  %1869 = vmatprep.subr.bf16.mxu0 0
  %1870 = vmatpush1.bf16.msra.mxu0 0
  %1871 = vmatprep.subr.bf16.mxu0 0
  %1872 = vmatpush1.bf16.msra.mxu0 0
  %1873 = vmatprep.subr.bf16.mxu0 0
  %1874 = vmatpush1.bf16.msra.mxu0 0
  %1875 = vmatprep.subr.bf16.mxu0 0
  %1876 = vmatpush1.bf16.msra.mxu0 0
  %1877 = vmatprep.subr.bf16.mxu0 0
  %1878 = vmatpush1.bf16.msra.mxu0 0
  %1879 = vmatprep.mubr.bf16.mxu0 0
  %1880 = vmatmul.mubr.bf16.gmra.mrb[0].mxu0 %v1774
  %v1881 = vpop.f32.mrb[0].mxu0
  %v1882 = vadd.f32 0.0, %v1881
  %v1883 = vpop.f32.mrb[0].mxu0
  %v1884 = vpop.f32.mrb[0].mxu0
  %v1885 = vadd.f32 0.0, %v1884
  %v1886 = vpop.f32.mrb[0].mxu0
  %1887 = vmatprep.mubr.bf16.mxu0 0
  %1888 = vmatmul.mubr.bf16.gmra.mrb[0].mxu0 %v1775
  %v1889 = vpop.f32.mrb[0].mxu0
  %v1890 = vadd.f32 0.0, %v1889
  %v1891 = vpop.f32.mrb[0].mxu0
  %v1892 = vpop.f32.mrb[0].mxu0
  %v1893 = vadd.f32 0.0, %v1892
  %v1894 = vpop.f32.mrb[0].mxu0
  %1895 = vmatprep.mubr.bf16.mxu0 0
  %1896 = vmatmul.mubr.bf16.gmra.mrb[0].mxu0 %v1776
  %v1897 = vpop.f32.mrb[0].mxu0
  %v1898 = vadd.f32 0.0, %v1897
  %v1899 = vpop.f32.mrb[0].mxu0
  %v1900 = vpop.f32.mrb[0].mxu0
  %v1901 = vadd.f32 0.0, %v1900
  %v1902 = vpop.f32.mrb[0].mxu0
  %1903 = vmatprep.mubr.bf16.mxu0 0
  %1904 = vmatmul.mubr.bf16.gmra.mrb[0].mxu0 %v1777
  %v1905 = vpop.f32.mrb[0].mxu0
  %v1906 = vadd.f32 0.0, %v1905
  %v1907 = vpop.f32.mrb[0].mxu0
  %v1908 = vpop.f32.mrb[0].mxu0
  %v1909 = vadd.f32 0.0, %v1908
  %v1910 = vpop.f32.mrb[0].mxu0
  %1911 = vmatprep.mubr.bf16.mxu0 0
  %1912 = vmatmul.mubr.bf16.gmra.mrb[0].mxu0 %v1778
  %v1913 = vpop.f32.mrb[0].mxu0
  %v1914 = vadd.f32 0.0, %v1913
  %v1915 = vpop.f32.mrb[0].mxu0
  %v1916 = vpop.f32.mrb[0].mxu0
  %v1917 = vadd.f32 0.0, %v1916
  %v1918 = vpop.f32.mrb[0].mxu0
  %1919 = vmatprep.mubr.bf16.mxu0 0
  %1920 = vmatmul.mubr.bf16.gmra.mrb[0].mxu0 %v1779
  %v1921 = vpop.f32.mrb[0].mxu0
  %v1922 = vadd.f32 0.0, %v1921
  %v1923 = vpop.f32.mrb[0].mxu0
  %v1924 = vpop.f32.mrb[0].mxu0
  %v1925 = vadd.f32 0.0, %v1924
  %v1926 = vpop.f32.mrb[0].mxu0
  %1927 = vmatprep.mubr.bf16.mxu0 0
  %1928 = vmatmul.mubr.bf16.gmra.mrb[0].mxu0 %v1780
  %v1929 = vpop.f32.mrb[0].mxu0
  %v1930 = vadd.f32 0.0, %v1929
  %v1931 = vpop.f32.mrb[0].mxu0
  %v1932 = vpop.f32.mrb[0].mxu0
  %v1933 = vadd.f32 0.0, %v1932
  %v1934 = vpop.f32.mrb[0].mxu0
  %1935 = vmatprep.mubr.bf16.mxu0 0
  %1936 = vmatmul.mubr.bf16.gmra.mrb[0].mxu0 %v1781
  %v1937 = vpop.f32.mrb[0].mxu0
  %v1938 = vadd.f32 0.0, %v1937
  %v1939 = vpop.f32.mrb[0].mxu0
  %v1940 = vpop.f32.mrb[0].mxu0
  %v1941 = vadd.f32 0.0, %v1940
  %v1942 = vpop.f32.mrb[0].mxu0
  %1943 = vdwg.mxu0
  %v1944 = vadd.f32 %v1629, %v1882
  %v1945 = vadd.f32 %v1630, %v1885
  %v1946 = vadd.f32 %v1631, %v1890
  %v1947 = vadd.f32 %v1632, %v1893
  %v1948 = vadd.f32 %v1633, %v1898
  %v1949 = vadd.f32 %v1634, %v1901
  %v1950 = vadd.f32 %v1635, %v1906
  %v1951 = vadd.f32 %v1636, %v1909
  %v1952 = vadd.f32 %v1637, %v1914
  %v1953 = vadd.f32 %v1638, %v1917
  %v1954 = vadd.f32 %v1639, %v1922
  %v1955 = vadd.f32 %v1640, %v1925
  %v1956 = vadd.f32 %v1641, %v1930
  %v1957 = vadd.f32 %v1642, %v1933
  %v1958 = vadd.f32 %v1643, %v1938
  %v1959 = vadd.f32 %v1644, %v1941
  %v1960 = vld [vmem:[#allocation2 + $0x11] sm:$0xff]
  %v1961 = vld [vmem:[#allocation2 + $0x19] sm:$0xff]
  %v1962 = vld [vmem:[#allocation2 + $0x21] sm:$0xff]
  %v1963 = vld [vmem:[#allocation2 + $0x29] sm:$0xff]
  %v1964 = vld [vmem:[#allocation2 + $0x31] sm:$0xff]
  %v1965 = vld [vmem:[#allocation2 + $0x39] sm:$0xff]
  %v1966 = vld [vmem:[#allocation2 + $0x41] sm:$0xff]
  %v1967 = vld [vmem:[#allocation2 + $0x49] sm:$0xff]
  %v1968 = vld [vmem:[#allocation2 + $0x51] sm:$0xff]
  %v1969 = vld [vmem:[#allocation2 + $0x59] sm:$0xff]
  %v1970 = vld [vmem:[#allocation2 + $0x61] sm:$0xff]
  %v1971 = vld [vmem:[#allocation2 + $0x69] sm:$0xff]
  %v1972 = vld [vmem:[#allocation2 + $0x71] sm:$0xff]
  %v1973 = vld [vmem:[#allocation2 + $0x79] sm:$0xff]
  %v1974 = vld [vmem:[#allocation2 + $0x81] sm:$0xff]
  %v1975 = vld [vmem:[#allocation2 + $0x89] sm:$0xff]
  %s1976 = scalar_lea.vmem %s6, 640
  %v1977 = vld [vmem:[%s1976] sm:$0xff]
  %v1978 = vld [vmem:[%s1976 + $0x8] sm:$0xff]
  %v1979 = vld [vmem:[%s1976 + $0x10] sm:$0xff]
  %v1980 = vld [vmem:[%s1976 + $0x18] sm:$0xff]
  %v1981 = vld [vmem:[%s1976 + $0x20] sm:$0xff]
  %v1982 = vld [vmem:[%s1976 + $0x28] sm:$0xff]
  %v1983 = vld [vmem:[%s1976 + $0x30] sm:$0xff]
  %v1984 = vld [vmem:[%s1976 + $0x38] sm:$0xff]
  %v1985 = vld [vmem:[%s1976 + $0x40] sm:$0xff]
  %v1986 = vld [vmem:[%s1976 + $0x48] sm:$0xff]
  %v1987 = vld [vmem:[%s1976 + $0x50] sm:$0xff]
  %v1988 = vld [vmem:[%s1976 + $0x58] sm:$0xff]
  %v1989 = vld [vmem:[%s1976 + $0x60] sm:$0xff]
  %v1990 = vld [vmem:[%s1976 + $0x68] sm:$0xff]
  %v1991 = vld [vmem:[%s1976 + $0x70] sm:$0xff]
  %v1992 = vld [vmem:[%s1976 + $0x78] sm:$0xff]
  %1994 = vset.pattern.permute.xlu0 0
  %1995 = vperm.xlu0 %1994, %v1977
  %v1996 = vpop.permute.xlu0 %1995
  %1999 = vset.pattern.permute.xlu0 0
  %2000 = vperm.xlu0 %1999, %v1978
  %v2001 = vpop.permute.xlu0 %2000
  %2004 = vset.pattern.permute.xlu0 0
  %2005 = vperm.xlu0 %2004, %v1979
  %v2006 = vpop.permute.xlu0 %2005
  %2009 = vset.pattern.permute.xlu0 0
  %2010 = vperm.xlu0 %2009, %v1980
  %v2011 = vpop.permute.xlu0 %2010
  %2014 = vset.pattern.permute.xlu0 0
  %2015 = vperm.xlu0 %2014, %v1981
  %v2016 = vpop.permute.xlu0 %2015
  %2019 = vset.pattern.permute.xlu0 0
  %2020 = vperm.xlu0 %2019, %v1982
  %v2021 = vpop.permute.xlu0 %2020
  %2024 = vset.pattern.permute.xlu0 0
  %2025 = vperm.xlu0 %2024, %v1983
  %v2026 = vpop.permute.xlu0 %2025
  %2029 = vset.pattern.permute.xlu0 0
  %2030 = vperm.xlu0 %2029, %v1984
  %v2031 = vpop.permute.xlu0 %2030
  %2034 = vset.pattern.permute.xlu0 0
  %2035 = vperm.xlu0 %2034, %v1985
  %v2036 = vpop.permute.xlu0 %2035
  %2039 = vset.pattern.permute.xlu0 0
  %2040 = vperm.xlu0 %2039, %v1986
  %v2041 = vpop.permute.xlu0 %2040
  %2044 = vset.pattern.permute.xlu0 0
  %2045 = vperm.xlu0 %2044, %v1987
  %v2046 = vpop.permute.xlu0 %2045
  %2049 = vset.pattern.permute.xlu0 0
  %2050 = vperm.xlu0 %2049, %v1988
  %v2051 = vpop.permute.xlu0 %2050
  %2054 = vset.pattern.permute.xlu0 0
  %2055 = vperm.xlu0 %2054, %v1989
  %v2056 = vpop.permute.xlu0 %2055
  %2059 = vset.pattern.permute.xlu0 0
  %2060 = vperm.xlu0 %2059, %v1990
  %v2061 = vpop.permute.xlu0 %2060
  %2064 = vset.pattern.permute.xlu0 0
  %2065 = vperm.xlu0 %2064, %v1991
  %v2066 = vpop.permute.xlu0 %2065
  %2069 = vset.pattern.permute.xlu0 0
  %2070 = vperm.xlu0 %2069, %v1992
  %v2071 = vpop.permute.xlu0 %2070
  %v2073 = vmul.f32 %v1960, %v1996
  %v2074 = vmul.f32 %v1961, %v2001
  %v2075 = vmul.f32 %v1962, %v2006
  %v2076 = vmul.f32 %v1963, %v2011
  %v2077 = vmul.f32 %v1964, %v2016
  %v2078 = vmul.f32 %v1965, %v2021
  %v2079 = vmul.f32 %v1966, %v2026
  %v2080 = vmul.f32 %v1967, %v2031
  %v2081 = vmul.f32 %v1968, %v2036
  %v2082 = vmul.f32 %v1969, %v2041
  %v2083 = vmul.f32 %v1970, %v2046
  %v2084 = vmul.f32 %v1971, %v2051
  %v2085 = vmul.f32 %v1972, %v2056
  %v2086 = vmul.f32 %v1973, %v2061
  %v2087 = vmul.f32 %v1974, %v2066
  %v2088 = vmul.f32 %v1975, %v2071
  %v2089 = vpack.c.bf16 %v2074, %v2073
  %v2090 = vpack.c.bf16 %v2076, %v2075
  %v2091 = vpack.c.bf16 %v2078, %v2077
  %v2092 = vpack.c.bf16 %v2080, %v2079
  %v2093 = vpack.c.bf16 %v2082, %v2081
  %v2094 = vpack.c.bf16 %v2084, %v2083
  %v2095 = vpack.c.bf16 %v2086, %v2085
  %v2096 = vpack.c.bf16 %v2088, %v2087
  %s2097 = scalar_lea.vmem %s3, 320
  %v2098 = vld [vmem:[%s2097] sm:$0xf]
  %v2099 = vld [vmem:[%s2097 + $0x4] sm:$0xf]
  %v2100 = vld [vmem:[%s2097 + $0x8] sm:$0xf]
  %v2101 = vld [vmem:[%s2097 + $0xc] sm:$0xf]
  %v2102 = vld [vmem:[%s2097 + $0x10] sm:$0xf]
  %v2103 = vld [vmem:[%s2097 + $0x14] sm:$0xf]
  %v2104 = vld [vmem:[%s2097 + $0x18] sm:$0xf]
  %v2105 = vld [vmem:[%s2097 + $0x1c] sm:$0xf]
  %v2106 = vld [vmem:[%s2097 + $0x20] sm:$0xf]
  %v2107 = vld [vmem:[%s2097 + $0x24] sm:$0xf]
  %v2108 = vld [vmem:[%s2097 + $0x28] sm:$0xf]
  %v2109 = vld [vmem:[%s2097 + $0x2c] sm:$0xf]
  %v2110 = vld [vmem:[%s2097 + $0x30] sm:$0xf]
  %v2111 = vld [vmem:[%s2097 + $0x34] sm:$0xf]
  %v2112 = vld [vmem:[%s2097 + $0x38] sm:$0xf]
  %v2113 = vld [vmem:[%s2097 + $0x3c] sm:$0xf]
  %v2130 = vunpack.c.l.b16 %v2098
  %v2131 = vunpack.c.l.b16 %v2099
  %v2132 = vunpack.c.l.b16 %v2100
  %v2133 = vunpack.c.l.b16 %v2101
  %v2134 = vunpack.c.l.b16 %v2102
  %v2135 = vunpack.c.l.b16 %v2103
  %v2136 = vunpack.c.l.b16 %v2104
  %v2137 = vunpack.c.l.b16 %v2105
  %v2138 = vunpack.c.l.b16 %v2106
  %v2139 = vunpack.c.l.b16 %v2107
  %v2140 = vunpack.c.l.b16 %v2108
  %v2141 = vunpack.c.l.b16 %v2109
  %v2142 = vunpack.c.l.b16 %v2110
  %v2143 = vunpack.c.l.b16 %v2111
  %v2144 = vunpack.c.l.b16 %v2112
  %v2145 = vunpack.c.l.b16 %v2113
  %v2146 = vpack.c.b16 %v2131, %v2130
  %v2147 = vpack.c.b16 %v2133, %v2132
  %v2148 = vpack.c.b16 %v2135, %v2134
  %v2149 = vpack.c.b16 %v2137, %v2136
  %v2150 = vpack.c.b16 %v2139, %v2138
  %v2151 = vpack.c.b16 %v2141, %v2140
  %v2152 = vpack.c.b16 %v2143, %v2142
  %v2153 = vpack.c.b16 %v2145, %v2144
  %2162 = vmatprep.subr.bf16.mxu0 0
  %2163 = vmatpush1.bf16.msra.mxu0 %v2146
  %2164 = vmatprep.subr.bf16.mxu0 0
  %2165 = vmatpush1.bf16.msra.mxu0 %v2147
  %2166 = vmatprep.subr.bf16.mxu0 0
  %2167 = vmatpush1.bf16.msra.mxu0 %v2148
  %2168 = vmatprep.subr.bf16.mxu0 0
  %2169 = vmatpush1.bf16.msra.mxu0 %v2149
  %2170 = vmatprep.subr.bf16.mxu0 0
  %2171 = vmatpush1.bf16.msra.mxu0 %v2150
  %2172 = vmatprep.subr.bf16.mxu0 0
  %2173 = vmatpush1.bf16.msra.mxu0 %v2151
  %2174 = vmatprep.subr.bf16.mxu0 0
  %2175 = vmatpush1.bf16.msra.mxu0 %v2152
  %2176 = vmatprep.subr.bf16.mxu0 0
  %2177 = vmatpush1.bf16.msra.mxu0 %v2153
  %2178 = vmatprep.subr.bf16.mxu0 0
  %2179 = vmatpush1.bf16.msra.mxu0 0
  %2180 = vmatprep.subr.bf16.mxu0 0
  %2181 = vmatpush1.bf16.msra.mxu0 0
  %2182 = vmatprep.subr.bf16.mxu0 0
  %2183 = vmatpush1.bf16.msra.mxu0 0
  %2184 = vmatprep.subr.bf16.mxu0 0
  %2185 = vmatpush1.bf16.msra.mxu0 0
  %2186 = vmatprep.subr.bf16.mxu0 0
  %2187 = vmatpush1.bf16.msra.mxu0 0
  %2188 = vmatprep.subr.bf16.mxu0 0
  %2189 = vmatpush1.bf16.msra.mxu0 0
  %2190 = vmatprep.subr.bf16.mxu0 0
  %2191 = vmatpush1.bf16.msra.mxu0 0
  %2192 = vmatprep.subr.bf16.mxu0 0
  %2193 = vmatpush1.bf16.msra.mxu0 0
  %2194 = vmatprep.mubr.bf16.mxu0 0
  %2195 = vmatmul.mubr.bf16.gmra.mrb[0].mxu0 %v2089
  %v2196 = vpop.f32.mrb[0].mxu0
  %v2197 = vadd.f32 0.0, %v2196
  %v2198 = vpop.f32.mrb[0].mxu0
  %v2199 = vpop.f32.mrb[0].mxu0
  %v2200 = vadd.f32 0.0, %v2199
  %v2201 = vpop.f32.mrb[0].mxu0
  %2202 = vmatprep.mubr.bf16.mxu0 0
  %2203 = vmatmul.mubr.bf16.gmra.mrb[0].mxu0 %v2090
  %v2204 = vpop.f32.mrb[0].mxu0
  %v2205 = vadd.f32 0.0, %v2204
  %v2206 = vpop.f32.mrb[0].mxu0
  %v2207 = vpop.f32.mrb[0].mxu0
  %v2208 = vadd.f32 0.0, %v2207
  %v2209 = vpop.f32.mrb[0].mxu0
  %2210 = vmatprep.mubr.bf16.mxu0 0
  %2211 = vmatmul.mubr.bf16.gmra.mrb[0].mxu0 %v2091
  %v2212 = vpop.f32.mrb[0].mxu0
  %v2213 = vadd.f32 0.0, %v2212
  %v2214 = vpop.f32.mrb[0].mxu0
  %v2215 = vpop.f32.mrb[0].mxu0
  %v2216 = vadd.f32 0.0, %v2215
  %v2217 = vpop.f32.mrb[0].mxu0
  %2218 = vmatprep.mubr.bf16.mxu0 0
  %2219 = vmatmul.mubr.bf16.gmra.mrb[0].mxu0 %v2092
  %v2220 = vpop.f32.mrb[0].mxu0
  %v2221 = vadd.f32 0.0, %v2220
  %v2222 = vpop.f32.mrb[0].mxu0
  %v2223 = vpop.f32.mrb[0].mxu0
  %v2224 = vadd.f32 0.0, %v2223
  %v2225 = vpop.f32.mrb[0].mxu0
  %2226 = vmatprep.mubr.bf16.mxu0 0
  %2227 = vmatmul.mubr.bf16.gmra.mrb[0].mxu0 %v2093
  %v2228 = vpop.f32.mrb[0].mxu0
  %v2229 = vadd.f32 0.0, %v2228
  %v2230 = vpop.f32.mrb[0].mxu0
  %v2231 = vpop.f32.mrb[0].mxu0
  %v2232 = vadd.f32 0.0, %v2231
  %v2233 = vpop.f32.mrb[0].mxu0
  %2234 = vmatprep.mubr.bf16.mxu0 0
  %2235 = vmatmul.mubr.bf16.gmra.mrb[0].mxu0 %v2094
  %v2236 = vpop.f32.mrb[0].mxu0
  %v2237 = vadd.f32 0.0, %v2236
  %v2238 = vpop.f32.mrb[0].mxu0
  %v2239 = vpop.f32.mrb[0].mxu0
  %v2240 = vadd.f32 0.0, %v2239
  %v2241 = vpop.f32.mrb[0].mxu0
  %2242 = vmatprep.mubr.bf16.mxu0 0
  %2243 = vmatmul.mubr.bf16.gmra.mrb[0].mxu0 %v2095
  %v2244 = vpop.f32.mrb[0].mxu0
  %v2245 = vadd.f32 0.0, %v2244
  %v2246 = vpop.f32.mrb[0].mxu0
  %v2247 = vpop.f32.mrb[0].mxu0
  %v2248 = vadd.f32 0.0, %v2247
  %v2249 = vpop.f32.mrb[0].mxu0
  %2250 = vmatprep.mubr.bf16.mxu0 0
  %2251 = vmatmul.mubr.bf16.gmra.mrb[0].mxu0 %v2096
  %v2252 = vpop.f32.mrb[0].mxu0
  %v2253 = vadd.f32 0.0, %v2252
  %v2254 = vpop.f32.mrb[0].mxu0
  %v2255 = vpop.f32.mrb[0].mxu0
  %v2256 = vadd.f32 0.0, %v2255
  %v2257 = vpop.f32.mrb[0].mxu0
  %2258 = vdwg.mxu0
  %v2259 = vadd.f32 %v1944, %v2197
  %v2260 = vadd.f32 %v1945, %v2200
  %v2261 = vadd.f32 %v1946, %v2205
  %v2262 = vadd.f32 %v1947, %v2208
  %v2263 = vadd.f32 %v1948, %v2213
  %v2264 = vadd.f32 %v1949, %v2216
  %v2265 = vadd.f32 %v1950, %v2221
  %v2266 = vadd.f32 %v1951, %v2224
  %v2267 = vadd.f32 %v1952, %v2229
  %v2268 = vadd.f32 %v1953, %v2232
  %v2269 = vadd.f32 %v1954, %v2237
  %v2270 = vadd.f32 %v1955, %v2240
  %v2271 = vadd.f32 %v1956, %v2245
  %v2272 = vadd.f32 %v1957, %v2248
  %v2273 = vadd.f32 %v1958, %v2253
  %v2274 = vadd.f32 %v1959, %v2256
  %v2275 = vld [vmem:[#allocation2 + $0x17] sm:$0xff]
  %v2276 = vld [vmem:[#allocation2 + $0x1f] sm:$0xff]
  %v2277 = vld [vmem:[#allocation2 + $0x27] sm:$0xff]
  %v2278 = vld [vmem:[#allocation2 + $0x2f] sm:$0xff]
  %v2279 = vld [vmem:[#allocation2 + $0x37] sm:$0xff]
  %v2280 = vld [vmem:[#allocation2 + $0x3f] sm:$0xff]
  %v2281 = vld [vmem:[#allocation2 + $0x47] sm:$0xff]
  %v2282 = vld [vmem:[#allocation2 + $0x4f] sm:$0xff]
  %v2283 = vld [vmem:[#allocation2 + $0x57] sm:$0xff]
  %v2284 = vld [vmem:[#allocation2 + $0x5f] sm:$0xff]
  %v2285 = vld [vmem:[#allocation2 + $0x67] sm:$0xff]
  %v2286 = vld [vmem:[#allocation2 + $0x6f] sm:$0xff]
  %v2287 = vld [vmem:[#allocation2 + $0x77] sm:$0xff]
  %v2288 = vld [vmem:[#allocation2 + $0x7f] sm:$0xff]
  %v2289 = vld [vmem:[#allocation2 + $0x87] sm:$0xff]
  %v2290 = vld [vmem:[#allocation2 + $0x8f] sm:$0xff]
  %s2291 = scalar_lea.vmem %s6, 768
  %v2292 = vld [vmem:[%s2291] sm:$0xff]
  %v2293 = vld [vmem:[%s2291 + $0x8] sm:$0xff]
  %v2294 = vld [vmem:[%s2291 + $0x10] sm:$0xff]
  %v2295 = vld [vmem:[%s2291 + $0x18] sm:$0xff]
  %v2296 = vld [vmem:[%s2291 + $0x20] sm:$0xff]
  %v2297 = vld [vmem:[%s2291 + $0x28] sm:$0xff]
  %v2298 = vld [vmem:[%s2291 + $0x30] sm:$0xff]
  %v2299 = vld [vmem:[%s2291 + $0x38] sm:$0xff]
  %v2300 = vld [vmem:[%s2291 + $0x40] sm:$0xff]
  %v2301 = vld [vmem:[%s2291 + $0x48] sm:$0xff]
  %v2302 = vld [vmem:[%s2291 + $0x50] sm:$0xff]
  %v2303 = vld [vmem:[%s2291 + $0x58] sm:$0xff]
  %v2304 = vld [vmem:[%s2291 + $0x60] sm:$0xff]
  %v2305 = vld [vmem:[%s2291 + $0x68] sm:$0xff]
  %v2306 = vld [vmem:[%s2291 + $0x70] sm:$0xff]
  %v2307 = vld [vmem:[%s2291 + $0x78] sm:$0xff]
  %2309 = vset.pattern.permute.xlu0 0
  %2310 = vperm.xlu0 %2309, %v2292
  %v2311 = vpop.permute.xlu0 %2310
  %2314 = vset.pattern.permute.xlu0 0
  %2315 = vperm.xlu0 %2314, %v2293
  %v2316 = vpop.permute.xlu0 %2315
  %2319 = vset.pattern.permute.xlu0 0
  %2320 = vperm.xlu0 %2319, %v2294
  %v2321 = vpop.permute.xlu0 %2320
  %2324 = vset.pattern.permute.xlu0 0
  %2325 = vperm.xlu0 %2324, %v2295
  %v2326 = vpop.permute.xlu0 %2325
  %2329 = vset.pattern.permute.xlu0 0
  %2330 = vperm.xlu0 %2329, %v2296
  %v2331 = vpop.permute.xlu0 %2330
  %2334 = vset.pattern.permute.xlu0 0
  %2335 = vperm.xlu0 %2334, %v2297
  %v2336 = vpop.permute.xlu0 %2335
  %2339 = vset.pattern.permute.xlu0 0
  %2340 = vperm.xlu0 %2339, %v2298
  %v2341 = vpop.permute.xlu0 %2340
  %2344 = vset.pattern.permute.xlu0 0
  %2345 = vperm.xlu0 %2344, %v2299
  %v2346 = vpop.permute.xlu0 %2345
  %2349 = vset.pattern.permute.xlu0 0
  %2350 = vperm.xlu0 %2349, %v2300
  %v2351 = vpop.permute.xlu0 %2350
  %2354 = vset.pattern.permute.xlu0 0
  %2355 = vperm.xlu0 %2354, %v2301
  %v2356 = vpop.permute.xlu0 %2355
  %2359 = vset.pattern.permute.xlu0 0
  %2360 = vperm.xlu0 %2359, %v2302
  %v2361 = vpop.permute.xlu0 %2360
  %2364 = vset.pattern.permute.xlu0 0
  %2365 = vperm.xlu0 %2364, %v2303
  %v2366 = vpop.permute.xlu0 %2365
  %2369 = vset.pattern.permute.xlu0 0
  %2370 = vperm.xlu0 %2369, %v2304
  %v2371 = vpop.permute.xlu0 %2370
  %2374 = vset.pattern.permute.xlu0 0
  %2375 = vperm.xlu0 %2374, %v2305
  %v2376 = vpop.permute.xlu0 %2375
  %2379 = vset.pattern.permute.xlu0 0
  %2380 = vperm.xlu0 %2379, %v2306
  %v2381 = vpop.permute.xlu0 %2380
  %2384 = vset.pattern.permute.xlu0 0
  %2385 = vperm.xlu0 %2384, %v2307
  %v2386 = vpop.permute.xlu0 %2385
  %v2388 = vmul.f32 %v2275, %v2311
  %v2389 = vmul.f32 %v2276, %v2316
  %v2390 = vmul.f32 %v2277, %v2321
  %v2391 = vmul.f32 %v2278, %v2326
  %v2392 = vmul.f32 %v2279, %v2331
  %v2393 = vmul.f32 %v2280, %v2336
  %v2394 = vmul.f32 %v2281, %v2341
  %v2395 = vmul.f32 %v2282, %v2346
  %v2396 = vmul.f32 %v2283, %v2351
  %v2397 = vmul.f32 %v2284, %v2356
  %v2398 = vmul.f32 %v2285, %v2361
  %v2399 = vmul.f32 %v2286, %v2366
  %v2400 = vmul.f32 %v2287, %v2371
  %v2401 = vmul.f32 %v2288, %v2376
  %v2402 = vmul.f32 %v2289, %v2381
  %v2403 = vmul.f32 %v2290, %v2386
  %v2404 = vpack.c.bf16 %v2389, %v2388
  %v2405 = vpack.c.bf16 %v2391, %v2390
  %v2406 = vpack.c.bf16 %v2393, %v2392
  %v2407 = vpack.c.bf16 %v2395, %v2394
  %v2408 = vpack.c.bf16 %v2397, %v2396
  %v2409 = vpack.c.bf16 %v2399, %v2398
  %v2410 = vpack.c.bf16 %v2401, %v2400
  %v2411 = vpack.c.bf16 %v2403, %v2402
  %s2412 = scalar_lea.vmem %s3, 384
  %v2413 = vld [vmem:[%s2412] sm:$0xf]
  %v2414 = vld [vmem:[%s2412 + $0x4] sm:$0xf]
  %v2415 = vld [vmem:[%s2412 + $0x8] sm:$0xf]
  %v2416 = vld [vmem:[%s2412 + $0xc] sm:$0xf]
  %v2417 = vld [vmem:[%s2412 + $0x10] sm:$0xf]
  %v2418 = vld [vmem:[%s2412 + $0x14] sm:$0xf]
  %v2419 = vld [vmem:[%s2412 + $0x18] sm:$0xf]
  %v2420 = vld [vmem:[%s2412 + $0x1c] sm:$0xf]
  %v2421 = vld [vmem:[%s2412 + $0x20] sm:$0xf]
  %v2422 = vld [vmem:[%s2412 + $0x24] sm:$0xf]
  %v2423 = vld [vmem:[%s2412 + $0x28] sm:$0xf]
  %v2424 = vld [vmem:[%s2412 + $0x2c] sm:$0xf]
  %v2425 = vld [vmem:[%s2412 + $0x30] sm:$0xf]
  %v2426 = vld [vmem:[%s2412 + $0x34] sm:$0xf]
  %v2427 = vld [vmem:[%s2412 + $0x38] sm:$0xf]
  %v2428 = vld [vmem:[%s2412 + $0x3c] sm:$0xf]
  %v2445 = vunpack.c.l.b16 %v2413
  %v2446 = vunpack.c.l.b16 %v2414
  %v2447 = vunpack.c.l.b16 %v2415
  %v2448 = vunpack.c.l.b16 %v2416
  %v2449 = vunpack.c.l.b16 %v2417
  %v2450 = vunpack.c.l.b16 %v2418
  %v2451 = vunpack.c.l.b16 %v2419
  %v2452 = vunpack.c.l.b16 %v2420
  %v2453 = vunpack.c.l.b16 %v2421
  %v2454 = vunpack.c.l.b16 %v2422
  %v2455 = vunpack.c.l.b16 %v2423
  %v2456 = vunpack.c.l.b16 %v2424
  %v2457 = vunpack.c.l.b16 %v2425
  %v2458 = vunpack.c.l.b16 %v2426
  %v2459 = vunpack.c.l.b16 %v2427
  %v2460 = vunpack.c.l.b16 %v2428
  %v2461 = vpack.c.b16 %v2446, %v2445
  %v2462 = vpack.c.b16 %v2448, %v2447
  %v2463 = vpack.c.b16 %v2450, %v2449
  %v2464 = vpack.c.b16 %v2452, %v2451
  %v2465 = vpack.c.b16 %v2454, %v2453
  %v2466 = vpack.c.b16 %v2456, %v2455
  %v2467 = vpack.c.b16 %v2458, %v2457
  %v2468 = vpack.c.b16 %v2460, %v2459
  %2477 = vmatprep.subr.bf16.mxu0 0
  %2478 = vmatpush1.bf16.msra.mxu0 %v2461
  %2479 = vmatprep.subr.bf16.mxu0 0
  %2480 = vmatpush1.bf16.msra.mxu0 %v2462
  %2481 = vmatprep.subr.bf16.mxu0 0
  %2482 = vmatpush1.bf16.msra.mxu0 %v2463
  %2483 = vmatprep.subr.bf16.mxu0 0
  %2484 = vmatpush1.bf16.msra.mxu0 %v2464
  %2485 = vmatprep.subr.bf16.mxu0 0
  %2486 = vmatpush1.bf16.msra.mxu0 %v2465
  %2487 = vmatprep.subr.bf16.mxu0 0
  %2488 = vmatpush1.bf16.msra.mxu0 %v2466
  %2489 = vmatprep.subr.bf16.mxu0 0
  %2490 = vmatpush1.bf16.msra.mxu0 %v2467
  %2491 = vmatprep.subr.bf16.mxu0 0
  %2492 = vmatpush1.bf16.msra.mxu0 %v2468
  %2493 = vmatprep.subr.bf16.mxu0 0
  %2494 = vmatpush1.bf16.msra.mxu0 0
  %2495 = vmatprep.subr.bf16.mxu0 0
  %2496 = vmatpush1.bf16.msra.mxu0 0
  %2497 = vmatprep.subr.bf16.mxu0 0
  %2498 = vmatpush1.bf16.msra.mxu0 0
  %2499 = vmatprep.subr.bf16.mxu0 0
  %2500 = vmatpush1.bf16.msra.mxu0 0
  %2501 = vmatprep.subr.bf16.mxu0 0
  %2502 = vmatpush1.bf16.msra.mxu0 0
  %2503 = vmatprep.subr.bf16.mxu0 0
  %2504 = vmatpush1.bf16.msra.mxu0 0
  %2505 = vmatprep.subr.bf16.mxu0 0
  %2506 = vmatpush1.bf16.msra.mxu0 0
  %2507 = vmatprep.subr.bf16.mxu0 0
  %2508 = vmatpush1.bf16.msra.mxu0 0
  %2509 = vmatprep.mubr.bf16.mxu0 0
  %2510 = vmatmul.mubr.bf16.gmra.mrb[0].mxu0 %v2404
  %v2511 = vpop.f32.mrb[0].mxu0
  %v2512 = vadd.f32 0.0, %v2511
  %v2513 = vpop.f32.mrb[0].mxu0
  %v2514 = vpop.f32.mrb[0].mxu0
  %v2515 = vadd.f32 0.0, %v2514
  %v2516 = vpop.f32.mrb[0].mxu0
  %2517 = vmatprep.mubr.bf16.mxu0 0
  %2518 = vmatmul.mubr.bf16.gmra.mrb[0].mxu0 %v2405
  %v2519 = vpop.f32.mrb[0].mxu0
  %v2520 = vadd.f32 0.0, %v2519
  %v2521 = vpop.f32.mrb[0].mxu0
  %v2522 = vpop.f32.mrb[0].mxu0
  %v2523 = vadd.f32 0.0, %v2522
  %v2524 = vpop.f32.mrb[0].mxu0
  %2525 = vmatprep.mubr.bf16.mxu0 0
  %2526 = vmatmul.mubr.bf16.gmra.mrb[0].mxu0 %v2406
  %v2527 = vpop.f32.mrb[0].mxu0
  %v2528 = vadd.f32 0.0, %v2527
  %v2529 = vpop.f32.mrb[0].mxu0
  %v2530 = vpop.f32.mrb[0].mxu0
  %v2531 = vadd.f32 0.0, %v2530
  %v2532 = vpop.f32.mrb[0].mxu0
  %2533 = vmatprep.mubr.bf16.mxu0 0
  %2534 = vmatmul.mubr.bf16.gmra.mrb[0].mxu0 %v2407
  %v2535 = vpop.f32.mrb[0].mxu0
  %v2536 = vadd.f32 0.0, %v2535
  %v2537 = vpop.f32.mrb[0].mxu0
  %v2538 = vpop.f32.mrb[0].mxu0
  %v2539 = vadd.f32 0.0, %v2538
  %v2540 = vpop.f32.mrb[0].mxu0
  %2541 = vmatprep.mubr.bf16.mxu0 0
  %2542 = vmatmul.mubr.bf16.gmra.mrb[0].mxu0 %v2408
  %v2543 = vpop.f32.mrb[0].mxu0
  %v2544 = vadd.f32 0.0, %v2543
  %v2545 = vpop.f32.mrb[0].mxu0
  %v2546 = vpop.f32.mrb[0].mxu0
  %v2547 = vadd.f32 0.0, %v2546
  %v2548 = vpop.f32.mrb[0].mxu0
  %2549 = vmatprep.mubr.bf16.mxu0 0
  %2550 = vmatmul.mubr.bf16.gmra.mrb[0].mxu0 %v2409
  %v2551 = vpop.f32.mrb[0].mxu0
  %v2552 = vadd.f32 0.0, %v2551
  %v2553 = vpop.f32.mrb[0].mxu0
  %v2554 = vpop.f32.mrb[0].mxu0
  %v2555 = vadd.f32 0.0, %v2554
  %v2556 = vpop.f32.mrb[0].mxu0
  %2557 = vmatprep.mubr.bf16.mxu0 0
  %2558 = vmatmul.mubr.bf16.gmra.mrb[0].mxu0 %v2410
  %v2559 = vpop.f32.mrb[0].mxu0
  %v2560 = vadd.f32 0.0, %v2559
  %v2561 = vpop.f32.mrb[0].mxu0
  %v2562 = vpop.f32.mrb[0].mxu0
  %v2563 = vadd.f32 0.0, %v2562
  %v2564 = vpop.f32.mrb[0].mxu0
  %2565 = vmatprep.mubr.bf16.mxu0 0
  %2566 = vmatmul.mubr.bf16.gmra.mrb[0].mxu0 %v2411
  %v2567 = vpop.f32.mrb[0].mxu0
  %v2568 = vadd.f32 0.0, %v2567
  %v2569 = vpop.f32.mrb[0].mxu0
  %v2570 = vpop.f32.mrb[0].mxu0
  %v2571 = vadd.f32 0.0, %v2570
  %v2572 = vpop.f32.mrb[0].mxu0
  %2573 = vdwg.mxu0
  %v2574 = vadd.f32 %v2259, %v2512
  %v2575 = vadd.f32 %v2260, %v2515
  %v2576 = vadd.f32 %v2261, %v2520
  %v2577 = vadd.f32 %v2262, %v2523
  %v2578 = vadd.f32 %v2263, %v2528
  %v2579 = vadd.f32 %v2264, %v2531
  %v2580 = vadd.f32 %v2265, %v2536
  %v2581 = vadd.f32 %v2266, %v2539
  %v2582 = vadd.f32 %v2267, %v2544
  %v2583 = vadd.f32 %v2268, %v2547
  %v2584 = vadd.f32 %v2269, %v2552
  %v2585 = vadd.f32 %v2270, %v2555
  %v2586 = vadd.f32 %v2271, %v2560
  %v2587 = vadd.f32 %v2272, %v2563
  %v2588 = vadd.f32 %v2273, %v2568
  %v2589 = vadd.f32 %v2274, %v2571
  %v2590 = vld [vmem:[#allocation2 + $0x18] sm:$0xff]
  %v2591 = vld [vmem:[#allocation2 + $0x20] sm:$0xff]
  %v2592 = vld [vmem:[#allocation2 + $0x28] sm:$0xff]
  %v2593 = vld [vmem:[#allocation2 + $0x30] sm:$0xff]
  %v2594 = vld [vmem:[#allocation2 + $0x38] sm:$0xff]
  %v2595 = vld [vmem:[#allocation2 + $0x40] sm:$0xff]
  %v2596 = vld [vmem:[#allocation2 + $0x48] sm:$0xff]
  %v2597 = vld [vmem:[#allocation2 + $0x50] sm:$0xff]
  %v2598 = vld [vmem:[#allocation2 + $0x58] sm:$0xff]
  %v2599 = vld [vmem:[#allocation2 + $0x60] sm:$0xff]
  %v2600 = vld [vmem:[#allocation2 + $0x68] sm:$0xff]
  %v2601 = vld [vmem:[#allocation2 + $0x70] sm:$0xff]
  %v2602 = vld [vmem:[#allocation2 + $0x78] sm:$0xff]
  %v2603 = vld [vmem:[#allocation2 + $0x80] sm:$0xff]
  %v2604 = vld [vmem:[#allocation2 + $0x88] sm:$0xff]
  %v2605 = vld [vmem:[#allocation2 + $0x90] sm:$0xff]
  %s2606 = scalar_lea.vmem %s6, 896
  %v2607 = vld [vmem:[%s2606] sm:$0xff]
  %v2608 = vld [vmem:[%s2606 + $0x8] sm:$0xff]
  %v2609 = vld [vmem:[%s2606 + $0x10] sm:$0xff]
  %v2610 = vld [vmem:[%s2606 + $0x18] sm:$0xff]
  %v2611 = vld [vmem:[%s2606 + $0x20] sm:$0xff]
  %v2612 = vld [vmem:[%s2606 + $0x28] sm:$0xff]
  %v2613 = vld [vmem:[%s2606 + $0x30] sm:$0xff]
  %v2614 = vld [vmem:[%s2606 + $0x38] sm:$0xff]
  %v2615 = vld [vmem:[%s2606 + $0x40] sm:$0xff]
  %v2616 = vld [vmem:[%s2606 + $0x48] sm:$0xff]
  %v2617 = vld [vmem:[%s2606 + $0x50] sm:$0xff]
  %v2618 = vld [vmem:[%s2606 + $0x58] sm:$0xff]
  %v2619 = vld [vmem:[%s2606 + $0x60] sm:$0xff]
  %v2620 = vld [vmem:[%s2606 + $0x68] sm:$0xff]
  %v2621 = vld [vmem:[%s2606 + $0x70] sm:$0xff]
  %v2622 = vld [vmem:[%s2606 + $0x78] sm:$0xff]
  %2624 = vset.pattern.permute.xlu0 0
  %2625 = vperm.xlu0 %2624, %v2607
  %v2626 = vpop.permute.xlu0 %2625
  %2629 = vset.pattern.permute.xlu0 0
  %2630 = vperm.xlu0 %2629, %v2608
  %v2631 = vpop.permute.xlu0 %2630
  %2634 = vset.pattern.permute.xlu0 0
  %2635 = vperm.xlu0 %2634, %v2609
  %v2636 = vpop.permute.xlu0 %2635
  %2639 = vset.pattern.permute.xlu0 0
  %2640 = vperm.xlu0 %2639, %v2610
  %v2641 = vpop.permute.xlu0 %2640
  %2644 = vset.pattern.permute.xlu0 0
  %2645 = vperm.xlu0 %2644, %v2611
  %v2646 = vpop.permute.xlu0 %2645
  %2649 = vset.pattern.permute.xlu0 0
  %2650 = vperm.xlu0 %2649, %v2612
  %v2651 = vpop.permute.xlu0 %2650
  %2654 = vset.pattern.permute.xlu0 0
  %2655 = vperm.xlu0 %2654, %v2613
  %v2656 = vpop.permute.xlu0 %2655
  %2659 = vset.pattern.permute.xlu0 0
  %2660 = vperm.xlu0 %2659, %v2614
  %v2661 = vpop.permute.xlu0 %2660
  %2664 = vset.pattern.permute.xlu0 0
  %2665 = vperm.xlu0 %2664, %v2615
  %v2666 = vpop.permute.xlu0 %2665
  %2669 = vset.pattern.permute.xlu0 0
  %2670 = vperm.xlu0 %2669, %v2616
  %v2671 = vpop.permute.xlu0 %2670
  %2674 = vset.pattern.permute.xlu0 0
  %2675 = vperm.xlu0 %2674, %v2617
  %v2676 = vpop.permute.xlu0 %2675
  %2679 = vset.pattern.permute.xlu0 0
  %2680 = vperm.xlu0 %2679, %v2618
  %v2681 = vpop.permute.xlu0 %2680
  %2684 = vset.pattern.permute.xlu0 0
  %2685 = vperm.xlu0 %2684, %v2619
  %v2686 = vpop.permute.xlu0 %2685
  %2689 = vset.pattern.permute.xlu0 0
  %2690 = vperm.xlu0 %2689, %v2620
  %v2691 = vpop.permute.xlu0 %2690
  %2694 = vset.pattern.permute.xlu0 0
  %2695 = vperm.xlu0 %2694, %v2621
  %v2696 = vpop.permute.xlu0 %2695
  %2699 = vset.pattern.permute.xlu0 0
  %2700 = vperm.xlu0 %2699, %v2622
  %v2701 = vpop.permute.xlu0 %2700
  %v2703 = vmul.f32 %v2590, %v2626
  %v2704 = vmul.f32 %v2591, %v2631
  %v2705 = vmul.f32 %v2592, %v2636
  %v2706 = vmul.f32 %v2593, %v2641
  %v2707 = vmul.f32 %v2594, %v2646
  %v2708 = vmul.f32 %v2595, %v2651
  %v2709 = vmul.f32 %v2596, %v2656
  %v2710 = vmul.f32 %v2597, %v2661
  %v2711 = vmul.f32 %v2598, %v2666
  %v2712 = vmul.f32 %v2599, %v2671
  %v2713 = vmul.f32 %v2600, %v2676
  %v2714 = vmul.f32 %v2601, %v2681
  %v2715 = vmul.f32 %v2602, %v2686
  %v2716 = vmul.f32 %v2603, %v2691
  %v2717 = vmul.f32 %v2604, %v2696
  %v2718 = vmul.f32 %v2605, %v2701
  %v2719 = vpack.c.bf16 %v2704, %v2703
  %v2720 = vpack.c.bf16 %v2706, %v2705
  %v2721 = vpack.c.bf16 %v2708, %v2707
  %v2722 = vpack.c.bf16 %v2710, %v2709
  %v2723 = vpack.c.bf16 %v2712, %v2711
  %v2724 = vpack.c.bf16 %v2714, %v2713
  %v2725 = vpack.c.bf16 %v2716, %v2715
  %v2726 = vpack.c.bf16 %v2718, %v2717
  %s2727 = scalar_lea.vmem %s3, 448
  %v2728 = vld [vmem:[%s2727] sm:$0xf]
  %v2729 = vld [vmem:[%s2727 + $0x4] sm:$0xf]
  %v2730 = vld [vmem:[%s2727 + $0x8] sm:$0xf]
  %v2731 = vld [vmem:[%s2727 + $0xc] sm:$0xf]
  %v2732 = vld [vmem:[%s2727 + $0x10] sm:$0xf]
  %v2733 = vld [vmem:[%s2727 + $0x14] sm:$0xf]
  %v2734 = vld [vmem:[%s2727 + $0x18] sm:$0xf]
  %v2735 = vld [vmem:[%s2727 + $0x1c] sm:$0xf]
  %v2736 = vld [vmem:[%s2727 + $0x20] sm:$0xf]
  %v2737 = vld [vmem:[%s2727 + $0x24] sm:$0xf]
  %v2738 = vld [vmem:[%s2727 + $0x28] sm:$0xf]
  %v2739 = vld [vmem:[%s2727 + $0x2c] sm:$0xf]
  %v2740 = vld [vmem:[%s2727 + $0x30] sm:$0xf]
  %v2741 = vld [vmem:[%s2727 + $0x34] sm:$0xf]
  %v2742 = vld [vmem:[%s2727 + $0x38] sm:$0xf]
  %v2743 = vld [vmem:[%s2727 + $0x3c] sm:$0xf]
  %v2760 = vunpack.c.l.b16 %v2728
  %v2761 = vunpack.c.l.b16 %v2729
  %v2762 = vunpack.c.l.b16 %v2730
  %v2763 = vunpack.c.l.b16 %v2731
  %v2764 = vunpack.c.l.b16 %v2732
  %v2765 = vunpack.c.l.b16 %v2733
  %v2766 = vunpack.c.l.b16 %v2734
  %v2767 = vunpack.c.l.b16 %v2735
  %v2768 = vunpack.c.l.b16 %v2736
  %v2769 = vunpack.c.l.b16 %v2737
  %v2770 = vunpack.c.l.b16 %v2738
  %v2771 = vunpack.c.l.b16 %v2739
  %v2772 = vunpack.c.l.b16 %v2740
  %v2773 = vunpack.c.l.b16 %v2741
  %v2774 = vunpack.c.l.b16 %v2742
  %v2775 = vunpack.c.l.b16 %v2743
  %v2776 = vpack.c.b16 %v2761, %v2760
  %v2777 = vpack.c.b16 %v2763, %v2762
  %v2778 = vpack.c.b16 %v2765, %v2764
  %v2779 = vpack.c.b16 %v2767, %v2766
  %v2780 = vpack.c.b16 %v2769, %v2768
  %v2781 = vpack.c.b16 %v2771, %v2770
  %v2782 = vpack.c.b16 %v2773, %v2772
  %v2783 = vpack.c.b16 %v2775, %v2774
  %2792 = vmatprep.subr.bf16.mxu0 0
  %2793 = vmatpush1.bf16.msra.mxu0 %v2776
  %2794 = vmatprep.subr.bf16.mxu0 0
  %2795 = vmatpush1.bf16.msra.mxu0 %v2777
  %2796 = vmatprep.subr.bf16.mxu0 0
  %2797 = vmatpush1.bf16.msra.mxu0 %v2778
  %2798 = vmatprep.subr.bf16.mxu0 0
  %2799 = vmatpush1.bf16.msra.mxu0 %v2779
  %2800 = vmatprep.subr.bf16.mxu0 0
  %2801 = vmatpush1.bf16.msra.mxu0 %v2780
  %2802 = vmatprep.subr.bf16.mxu0 0
  %2803 = vmatpush1.bf16.msra.mxu0 %v2781
  %2804 = vmatprep.subr.bf16.mxu0 0
  %2805 = vmatpush1.bf16.msra.mxu0 %v2782
  %2806 = vmatprep.subr.bf16.mxu0 0
  %2807 = vmatpush1.bf16.msra.mxu0 %v2783
  %2808 = vmatprep.subr.bf16.mxu0 0
  %2809 = vmatpush1.bf16.msra.mxu0 0
  %2810 = vmatprep.subr.bf16.mxu0 0
  %2811 = vmatpush1.bf16.msra.mxu0 0
  %2812 = vmatprep.subr.bf16.mxu0 0
  %2813 = vmatpush1.bf16.msra.mxu0 0
  %2814 = vmatprep.subr.bf16.mxu0 0
  %2815 = vmatpush1.bf16.msra.mxu0 0
  %2816 = vmatprep.subr.bf16.mxu0 0
  %2817 = vmatpush1.bf16.msra.mxu0 0
  %2818 = vmatprep.subr.bf16.mxu0 0
  %2819 = vmatpush1.bf16.msra.mxu0 0
  %2820 = vmatprep.subr.bf16.mxu0 0
  %2821 = vmatpush1.bf16.msra.mxu0 0
  %2822 = vmatprep.subr.bf16.mxu0 0
  %2823 = vmatpush1.bf16.msra.mxu0 0
  %2824 = vmatprep.mubr.bf16.mxu0 0
  %2825 = vmatmul.mubr.bf16.gmra.mrb[0].mxu0 %v2719
  %v2826 = vpop.f32.mrb[0].mxu0
  %v2827 = vadd.f32 0.0, %v2826
  %v2828 = vpop.f32.mrb[0].mxu0
  %v2829 = vpop.f32.mrb[0].mxu0
  %v2830 = vadd.f32 0.0, %v2829
  %v2831 = vpop.f32.mrb[0].mxu0
  %2832 = vmatprep.mubr.bf16.mxu0 0
  %2833 = vmatmul.mubr.bf16.gmra.mrb[0].mxu0 %v2720
  %v2834 = vpop.f32.mrb[0].mxu0
  %v2835 = vadd.f32 0.0, %v2834
  %v2836 = vpop.f32.mrb[0].mxu0
  %v2837 = vpop.f32.mrb[0].mxu0
  %v2838 = vadd.f32 0.0, %v2837
  %v2839 = vpop.f32.mrb[0].mxu0
  %2840 = vmatprep.mubr.bf16.mxu0 0
  %2841 = vmatmul.mubr.bf16.gmra.mrb[0].mxu0 %v2721
  %v2842 = vpop.f32.mrb[0].mxu0
  %v2843 = vadd.f32 0.0, %v2842
  %v2844 = vpop.f32.mrb[0].mxu0
  %v2845 = vpop.f32.mrb[0].mxu0
  %v2846 = vadd.f32 0.0, %v2845
  %v2847 = vpop.f32.mrb[0].mxu0
  %2848 = vmatprep.mubr.bf16.mxu0 0
  %2849 = vmatmul.mubr.bf16.gmra.mrb[0].mxu0 %v2722
  %v2850 = vpop.f32.mrb[0].mxu0
  %v2851 = vadd.f32 0.0, %v2850
  %v2852 = vpop.f32.mrb[0].mxu0
  %v2853 = vpop.f32.mrb[0].mxu0
  %v2854 = vadd.f32 0.0, %v2853
  %v2855 = vpop.f32.mrb[0].mxu0
  %2856 = vmatprep.mubr.bf16.mxu0 0
  %2857 = vmatmul.mubr.bf16.gmra.mrb[0].mxu0 %v2723
  %v2858 = vpop.f32.mrb[0].mxu0
  %v2859 = vadd.f32 0.0, %v2858
  %v2860 = vpop.f32.mrb[0].mxu0
  %v2861 = vpop.f32.mrb[0].mxu0
  %v2862 = vadd.f32 0.0, %v2861
  %v2863 = vpop.f32.mrb[0].mxu0
  %2864 = vmatprep.mubr.bf16.mxu0 0
  %2865 = vmatmul.mubr.bf16.gmra.mrb[0].mxu0 %v2724
  %v2866 = vpop.f32.mrb[0].mxu0
  %v2867 = vadd.f32 0.0, %v2866
  %v2868 = vpop.f32.mrb[0].mxu0
  %v2869 = vpop.f32.mrb[0].mxu0
  %v2870 = vadd.f32 0.0, %v2869
  %v2871 = vpop.f32.mrb[0].mxu0
  %2872 = vmatprep.mubr.bf16.mxu0 0
  %2873 = vmatmul.mubr.bf16.gmra.mrb[0].mxu0 %v2725
  %v2874 = vpop.f32.mrb[0].mxu0
  %v2875 = vadd.f32 0.0, %v2874
  %v2876 = vpop.f32.mrb[0].mxu0
  %v2877 = vpop.f32.mrb[0].mxu0
  %v2878 = vadd.f32 0.0, %v2877
  %v2879 = vpop.f32.mrb[0].mxu0
  %2880 = vmatprep.mubr.bf16.mxu0 0
  %2881 = vmatmul.mubr.bf16.gmra.mrb[0].mxu0 %v2726
  %v2882 = vpop.f32.mrb[0].mxu0
  %v2883 = vadd.f32 0.0, %v2882
  %v2884 = vpop.f32.mrb[0].mxu0
  %v2885 = vpop.f32.mrb[0].mxu0
  %v2886 = vadd.f32 0.0, %v2885
  %v2887 = vpop.f32.mrb[0].mxu0
  %2888 = vdwg.mxu0
  %v2889 = vadd.f32 %v2574, %v2827
  %v2890 = vadd.f32 %v2575, %v2830
  %v2891 = vadd.f32 %v2576, %v2835
  %v2892 = vadd.f32 %v2577, %v2838
  %v2893 = vadd.f32 %v2578, %v2843
  %v2894 = vadd.f32 %v2579, %v2846
  %v2895 = vadd.f32 %v2580, %v2851
  %v2896 = vadd.f32 %v2581, %v2854
  %v2897 = vadd.f32 %v2582, %v2859
  %v2898 = vadd.f32 %v2583, %v2862
  %v2899 = vadd.f32 %v2584, %v2867
  %v2900 = vadd.f32 %v2585, %v2870
  %v2901 = vadd.f32 %v2586, %v2875
  %v2902 = vadd.f32 %v2587, %v2878
  %v2903 = vadd.f32 %v2588, %v2883
  %v2904 = vadd.f32 %v2589, %v2886
  %v2905 = vld [vmem:[#allocation2 + $0x19] sm:$0xff]
  %v2906 = vld [vmem:[#allocation2 + $0x21] sm:$0xff]
  %v2907 = vld [vmem:[#allocation2 + $0x29] sm:$0xff]
  %v2908 = vld [vmem:[#allocation2 + $0x31] sm:$0xff]
  %v2909 = vld [vmem:[#allocation2 + $0x39] sm:$0xff]
  %v2910 = vld [vmem:[#allocation2 + $0x41] sm:$0xff]
  %v2911 = vld [vmem:[#allocation2 + $0x49] sm:$0xff]
  %v2912 = vld [vmem:[#allocation2 + $0x51] sm:$0xff]
  %v2913 = vld [vmem:[#allocation2 + $0x59] sm:$0xff]
  %v2914 = vld [vmem:[#allocation2 + $0x61] sm:$0xff]
  %v2915 = vld [vmem:[#allocation2 + $0x69] sm:$0xff]
  %v2916 = vld [vmem:[#allocation2 + $0x71] sm:$0xff]
  %v2917 = vld [vmem:[#allocation2 + $0x79] sm:$0xff]
  %v2918 = vld [vmem:[#allocation2 + $0x81] sm:$0xff]
  %v2919 = vld [vmem:[#allocation2 + $0x89] sm:$0xff]
  %v2920 = vld [vmem:[#allocation2 + $0x91] sm:$0xff]
  %s2921 = scalar_lea.vmem %s6, 1024
  %v2922 = vld [vmem:[%s2921] sm:$0xff]
  %v2923 = vld [vmem:[%s2921 + $0x8] sm:$0xff]
  %v2924 = vld [vmem:[%s2921 + $0x10] sm:$0xff]
  %v2925 = vld [vmem:[%s2921 + $0x18] sm:$0xff]
  %v2926 = vld [vmem:[%s2921 + $0x20] sm:$0xff]
  %v2927 = vld [vmem:[%s2921 + $0x28] sm:$0xff]
  %v2928 = vld [vmem:[%s2921 + $0x30] sm:$0xff]
  %v2929 = vld [vmem:[%s2921 + $0x38] sm:$0xff]
  %v2930 = vld [vmem:[%s2921 + $0x40] sm:$0xff]
  %v2931 = vld [vmem:[%s2921 + $0x48] sm:$0xff]
  %v2932 = vld [vmem:[%s2921 + $0x50] sm:$0xff]
  %v2933 = vld [vmem:[%s2921 + $0x58] sm:$0xff]
  %v2934 = vld [vmem:[%s2921 + $0x60] sm:$0xff]
  %v2935 = vld [vmem:[%s2921 + $0x68] sm:$0xff]
  %v2936 = vld [vmem:[%s2921 + $0x70] sm:$0xff]
  %v2937 = vld [vmem:[%s2921 + $0x78] sm:$0xff]
  %2939 = vset.pattern.permute.xlu0 0
  %2940 = vperm.xlu0 %2939, %v2922
  %v2941 = vpop.permute.xlu0 %2940
  %2944 = vset.pattern.permute.xlu0 0
  %2945 = vperm.xlu0 %2944, %v2923
  %v2946 = vpop.permute.xlu0 %2945
  %2949 = vset.pattern.permute.xlu0 0
  %2950 = vperm.xlu0 %2949, %v2924
  %v2951 = vpop.permute.xlu0 %2950
  %2954 = vset.pattern.permute.xlu0 0
  %2955 = vperm.xlu0 %2954, %v2925
  %v2956 = vpop.permute.xlu0 %2955
  %2959 = vset.pattern.permute.xlu0 0
  %2960 = vperm.xlu0 %2959, %v2926
  %v2961 = vpop.permute.xlu0 %2960
  %2964 = vset.pattern.permute.xlu0 0
  %2965 = vperm.xlu0 %2964, %v2927
  %v2966 = vpop.permute.xlu0 %2965
  %2969 = vset.pattern.permute.xlu0 0
  %2970 = vperm.xlu0 %2969, %v2928
  %v2971 = vpop.permute.xlu0 %2970
  %2974 = vset.pattern.permute.xlu0 0
  %2975 = vperm.xlu0 %2974, %v2929
  %v2976 = vpop.permute.xlu0 %2975
  %2979 = vset.pattern.permute.xlu0 0
  %2980 = vperm.xlu0 %2979, %v2930
  %v2981 = vpop.permute.xlu0 %2980
  %2984 = vset.pattern.permute.xlu0 0
  %2985 = vperm.xlu0 %2984, %v2931
  %v2986 = vpop.permute.xlu0 %2985
  %2989 = vset.pattern.permute.xlu0 0
  %2990 = vperm.xlu0 %2989, %v2932
  %v2991 = vpop.permute.xlu0 %2990
  %2994 = vset.pattern.permute.xlu0 0
  %2995 = vperm.xlu0 %2994, %v2933
  %v2996 = vpop.permute.xlu0 %2995
  %2999 = vset.pattern.permute.xlu0 0
  %3000 = vperm.xlu0 %2999, %v2934
  %v3001 = vpop.permute.xlu0 %3000
  %3004 = vset.pattern.permute.xlu0 0
  %3005 = vperm.xlu0 %3004, %v2935
  %v3006 = vpop.permute.xlu0 %3005
  %3009 = vset.pattern.permute.xlu0 0
  %3010 = vperm.xlu0 %3009, %v2936
  %v3011 = vpop.permute.xlu0 %3010
  %3014 = vset.pattern.permute.xlu0 0
  %3015 = vperm.xlu0 %3014, %v2937
  %v3016 = vpop.permute.xlu0 %3015
  %v3018 = vmul.f32 %v2905, %v2941
  %v3019 = vmul.f32 %v2906, %v2946
  %v3020 = vmul.f32 %v2907, %v2951
  %v3021 = vmul.f32 %v2908, %v2956
  %v3022 = vmul.f32 %v2909, %v2961
  %v3023 = vmul.f32 %v2910, %v2966
  %v3024 = vmul.f32 %v2911, %v2971
  %v3025 = vmul.f32 %v2912, %v2976
  %v3026 = vmul.f32 %v2913, %v2981
  %v3027 = vmul.f32 %v2914, %v2986
  %v3028 = vmul.f32 %v2915, %v2991
  %v3029 = vmul.f32 %v2916, %v2996
  %v3030 = vmul.f32 %v2917, %v3001
  %v3031 = vmul.f32 %v2918, %v3006
  %v3032 = vmul.f32 %v2919, %v3011
  %v3033 = vmul.f32 %v2920, %v3016
  %v3034 = vpack.c.bf16 %v3019, %v3018
  %v3035 = vpack.c.bf16 %v3021, %v3020
  %v3036 = vpack.c.bf16 %v3023, %v3022
  %v3037 = vpack.c.bf16 %v3025, %v3024
  %v3038 = vpack.c.bf16 %v3027, %v3026
  %v3039 = vpack.c.bf16 %v3029, %v3028
  %v3040 = vpack.c.bf16 %v3031, %v3030
  %v3041 = vpack.c.bf16 %v3033, %v3032
  %s3042 = scalar_lea.vmem %s3, 512
  %v3043 = vld [vmem:[%s3042] sm:$0xf]
  %v3044 = vld [vmem:[%s3042 + $0x4] sm:$0xf]
  %v3045 = vld [vmem:[%s3042 + $0x8] sm:$0xf]
  %v3046 = vld [vmem:[%s3042 + $0xc] sm:$0xf]
  %v3047 = vld [vmem:[%s3042 + $0x10] sm:$0xf]
  %v3048 = vld [vmem:[%s3042 + $0x14] sm:$0xf]
  %v3049 = vld [vmem:[%s3042 + $0x18] sm:$0xf]
  %v3050 = vld [vmem:[%s3042 + $0x1c] sm:$0xf]
  %v3051 = vld [vmem:[%s3042 + $0x20] sm:$0xf]
  %v3052 = vld [vmem:[%s3042 + $0x24] sm:$0xf]
  %v3053 = vld [vmem:[%s3042 + $0x28] sm:$0xf]
  %v3054 = vld [vmem:[%s3042 + $0x2c] sm:$0xf]
  %v3055 = vld [vmem:[%s3042 + $0x30] sm:$0xf]
  %v3056 = vld [vmem:[%s3042 + $0x34] sm:$0xf]
  %v3057 = vld [vmem:[%s3042 + $0x38] sm:$0xf]
  %v3058 = vld [vmem:[%s3042 + $0x3c] sm:$0xf]
  %v3075 = vunpack.c.l.b16 %v3043
  %v3076 = vunpack.c.l.b16 %v3044
  %v3077 = vunpack.c.l.b16 %v3045
  %v3078 = vunpack.c.l.b16 %v3046
  %v3079 = vunpack.c.l.b16 %v3047
  %v3080 = vunpack.c.l.b16 %v3048
  %v3081 = vunpack.c.l.b16 %v3049
  %v3082 = vunpack.c.l.b16 %v3050
  %v3083 = vunpack.c.l.b16 %v3051
  %v3084 = vunpack.c.l.b16 %v3052
  %v3085 = vunpack.c.l.b16 %v3053
  %v3086 = vunpack.c.l.b16 %v3054
  %v3087 = vunpack.c.l.b16 %v3055
  %v3088 = vunpack.c.l.b16 %v3056
  %v3089 = vunpack.c.l.b16 %v3057
  %v3090 = vunpack.c.l.b16 %v3058
  %v3091 = vpack.c.b16 %v3076, %v3075
  %v3092 = vpack.c.b16 %v3078, %v3077
  %v3093 = vpack.c.b16 %v3080, %v3079
  %v3094 = vpack.c.b16 %v3082, %v3081
  %v3095 = vpack.c.b16 %v3084, %v3083
  %v3096 = vpack.c.b16 %v3086, %v3085
  %v3097 = vpack.c.b16 %v3088, %v3087
  %v3098 = vpack.c.b16 %v3090, %v3089
  %3107 = vmatprep.subr.bf16.mxu0 0
  %3108 = vmatpush1.bf16.msra.mxu0 %v3091
  %3109 = vmatprep.subr.bf16.mxu0 0
  %3110 = vmatpush1.bf16.msra.mxu0 %v3092
  %3111 = vmatprep.subr.bf16.mxu0 0
  %3112 = vmatpush1.bf16.msra.mxu0 %v3093
  %3113 = vmatprep.subr.bf16.mxu0 0
  %3114 = vmatpush1.bf16.msra.mxu0 %v3094
  %3115 = vmatprep.subr.bf16.mxu0 0
  %3116 = vmatpush1.bf16.msra.mxu0 %v3095
  %3117 = vmatprep.subr.bf16.mxu0 0
  %3118 = vmatpush1.bf16.msra.mxu0 %v3096
  %3119 = vmatprep.subr.bf16.mxu0 0
  %3120 = vmatpush1.bf16.msra.mxu0 %v3097
  %3121 = vmatprep.subr.bf16.mxu0 0
  %3122 = vmatpush1.bf16.msra.mxu0 %v3098
  %3123 = vmatprep.subr.bf16.mxu0 0
  %3124 = vmatpush1.bf16.msra.mxu0 0
  %3125 = vmatprep.subr.bf16.mxu0 0
  %3126 = vmatpush1.bf16.msra.mxu0 0
  %3127 = vmatprep.subr.bf16.mxu0 0
  %3128 = vmatpush1.bf16.msra.mxu0 0
  %3129 = vmatprep.subr.bf16.mxu0 0
  %3130 = vmatpush1.bf16.msra.mxu0 0
  %3131 = vmatprep.subr.bf16.mxu0 0
  %3132 = vmatpush1.bf16.msra.mxu0 0
  %3133 = vmatprep.subr.bf16.mxu0 0
  %3134 = vmatpush1.bf16.msra.mxu0 0
  %3135 = vmatprep.subr.bf16.mxu0 0
  %3136 = vmatpush1.bf16.msra.mxu0 0
  %3137 = vmatprep.subr.bf16.mxu0 0
  %3138 = vmatpush1.bf16.msra.mxu0 0
  %3139 = vmatprep.mubr.bf16.mxu0 0
  %3140 = vmatmul.mubr.bf16.gmra.mrb[0].mxu0 %v3034
  %v3141 = vpop.f32.mrb[0].mxu0
  %v3142 = vadd.f32 0.0, %v3141
  %v3143 = vpop.f32.mrb[0].mxu0
  %v3144 = vpop.f32.mrb[0].mxu0
  %v3145 = vadd.f32 0.0, %v3144
  %v3146 = vpop.f32.mrb[0].mxu0
  %3147 = vmatprep.mubr.bf16.mxu0 0
  %3148 = vmatmul.mubr.bf16.gmra.mrb[0].mxu0 %v3035
  %v3149 = vpop.f32.mrb[0].mxu0
  %v3150 = vadd.f32 0.0, %v3149
  %v3151 = vpop.f32.mrb[0].mxu0
  %v3152 = vpop.f32.mrb[0].mxu0
  %v3153 = vadd.f32 0.0, %v3152
  %v3154 = vpop.f32.mrb[0].mxu0
  %3155 = vmatprep.mubr.bf16.mxu0 0
  %3156 = vmatmul.mubr.bf16.gmra.mrb[0].mxu0 %v3036
  %v3157 = vpop.f32.mrb[0].mxu0
  %v3158 = vadd.f32 0.0, %v3157
  %v3159 = vpop.f32.mrb[0].mxu0
  %v3160 = vpop.f32.mrb[0].mxu0
  %v3161 = vadd.f32 0.0, %v3160
  %v3162 = vpop.f32.mrb[0].mxu0
  %3163 = vmatprep.mubr.bf16.mxu0 0
  %3164 = vmatmul.mubr.bf16.gmra.mrb[0].mxu0 %v3037
  %v3165 = vpop.f32.mrb[0].mxu0
  %v3166 = vadd.f32 0.0, %v3165
  %v3167 = vpop.f32.mrb[0].mxu0
  %v3168 = vpop.f32.mrb[0].mxu0
  %v3169 = vadd.f32 0.0, %v3168
  %v3170 = vpop.f32.mrb[0].mxu0
  %3171 = vmatprep.mubr.bf16.mxu0 0
  %3172 = vmatmul.mubr.bf16.gmra.mrb[0].mxu0 %v3038
  %v3173 = vpop.f32.mrb[0].mxu0
  %v3174 = vadd.f32 0.0, %v3173
  %v3175 = vpop.f32.mrb[0].mxu0
  %v3176 = vpop.f32.mrb[0].mxu0
  %v3177 = vadd.f32 0.0, %v3176
  %v3178 = vpop.f32.mrb[0].mxu0
  %3179 = vmatprep.mubr.bf16.mxu0 0
  %3180 = vmatmul.mubr.bf16.gmra.mrb[0].mxu0 %v3039
  %v3181 = vpop.f32.mrb[0].mxu0
  %v3182 = vadd.f32 0.0, %v3181
  %v3183 = vpop.f32.mrb[0].mxu0
  %v3184 = vpop.f32.mrb[0].mxu0
  %v3185 = vadd.f32 0.0, %v3184
  %v3186 = vpop.f32.mrb[0].mxu0
  %3187 = vmatprep.mubr.bf16.mxu0 0
  %3188 = vmatmul.mubr.bf16.gmra.mrb[0].mxu0 %v3040
  %v3189 = vpop.f32.mrb[0].mxu0
  %v3190 = vadd.f32 0.0, %v3189
  %v3191 = vpop.f32.mrb[0].mxu0
  %v3192 = vpop.f32.mrb[0].mxu0
  %v3193 = vadd.f32 0.0, %v3192
  %v3194 = vpop.f32.mrb[0].mxu0
  %3195 = vmatprep.mubr.bf16.mxu0 0
  %3196 = vmatmul.mubr.bf16.gmra.mrb[0].mxu0 %v3041
  %v3197 = vpop.f32.mrb[0].mxu0
  %v3198 = vadd.f32 0.0, %v3197
  %v3199 = vpop.f32.mrb[0].mxu0
  %v3200 = vpop.f32.mrb[0].mxu0
  %v3201 = vadd.f32 0.0, %v3200
  %v3202 = vpop.f32.mrb[0].mxu0
  %3203 = vdwg.mxu0
  %v3204 = vadd.f32 %v2889, %v3142
  %v3205 = vadd.f32 %v2890, %v3145
  %v3206 = vadd.f32 %v2891, %v3150
  %v3207 = vadd.f32 %v2892, %v3153
  %v3208 = vadd.f32 %v2893, %v3158
  %v3209 = vadd.f32 %v2894, %v3161
  %v3210 = vadd.f32 %v2895, %v3166
  %v3211 = vadd.f32 %v2896, %v3169
  %v3212 = vadd.f32 %v2897, %v3174
  %v3213 = vadd.f32 %v2898, %v3177
  %v3214 = vadd.f32 %v2899, %v3182
  %v3215 = vadd.f32 %v2900, %v3185
  %v3216 = vadd.f32 %v2901, %v3190
  %v3217 = vadd.f32 %v2902, %v3193
  %v3218 = vadd.f32 %v2903, %v3198
  %v3219 = vadd.f32 %v2904, %v3201
  %v3220 = vadd.f32 %v3204, %v3205
  %v3221 = vadd.f32 %v3220, %v3206
  %v3222 = vadd.f32 %v3221, %v3207
  %v3223 = vadd.f32 %v3222, %v3208
  %v3224 = vadd.f32 %v3223, %v3209
  %v3225 = vadd.f32 %v3224, %v3210
  %v3226 = vadd.f32 %v3225, %v3211
  %v3227 = vadd.f32 %v3226, %v3212
  %v3228 = vadd.f32 %v3227, %v3213
  %v3229 = vadd.f32 %v3228, %v3214
  %v3230 = vadd.f32 %v3229, %v3215
  %v3231 = vadd.f32 %v3230, %v3216
  %v3232 = vadd.f32 %v3231, %v3217
  %v3233 = vadd.f32 %v3232, %v3218
  %v3234 = vadd.f32 %v3233, %v3219
  %v3235 = vrot.slane %v3234, 4
  %v3236 = vadd.f32 %v3234, %v3235
  %v3237 = vrot.slane %v3236, 2
  %v3238 = vadd.f32 %v3236, %v3237
  %v3239 = vrot.slane %v3238, 1
  %v3240 = vadd.f32 %v3238, %v3239
  %v3241 = vmul.f32 %v3240, 0.0078125
  %v3242 = vmul.f32 %v3204, %v3204
  %v3243 = vmul.f32 %v3205, %v3205
  %v3244 = vmul.f32 %v3206, %v3206
  %v3245 = vmul.f32 %v3207, %v3207
  %v3246 = vmul.f32 %v3208, %v3208
  %v3247 = vmul.f32 %v3209, %v3209
  %v3248 = vmul.f32 %v3210, %v3210
  %v3249 = vmul.f32 %v3211, %v3211
  %v3250 = vmul.f32 %v3212, %v3212
  %v3251 = vmul.f32 %v3213, %v3213
  %v3252 = vmul.f32 %v3214, %v3214
  %v3253 = vmul.f32 %v3215, %v3215
  %v3254 = vmul.f32 %v3216, %v3216
  %v3255 = vmul.f32 %v3217, %v3217
  %v3256 = vmul.f32 %v3218, %v3218
  %v3257 = vmul.f32 %v3219, %v3219
  %v3258 = vadd.f32 %v3242, %v3243
  %v3259 = vadd.f32 %v3258, %v3244
  %v3260 = vadd.f32 %v3259, %v3245
  %v3261 = vadd.f32 %v3260, %v3246
  %v3262 = vadd.f32 %v3261, %v3247
  %v3263 = vadd.f32 %v3262, %v3248
  %v3264 = vadd.f32 %v3263, %v3249
  %v3265 = vadd.f32 %v3264, %v3250
  %v3266 = vadd.f32 %v3265, %v3251
  %v3267 = vadd.f32 %v3266, %v3252
  %v3268 = vadd.f32 %v3267, %v3253
  %v3269 = vadd.f32 %v3268, %v3254
  %v3270 = vadd.f32 %v3269, %v3255
  %v3271 = vadd.f32 %v3270, %v3256
  %v3272 = vadd.f32 %v3271, %v3257
  %v3273 = vrot.slane %v3272, 4
  %v3274 = vadd.f32 %v3272, %v3273
  %v3275 = vrot.slane %v3274, 2
  %v3276 = vadd.f32 %v3274, %v3275
  %v3277 = vrot.slane %v3276, 1
  %v3278 = vadd.f32 %v3276, %v3277
  %v3279 = vmul.f32 %v3278, 0.0078125
  %v3280 = vmul.f32 %v3241, %v3241
  %v3281 = vsub.f32 %v3279, %v3280
  %v3282 = vmax.f32 %v3281, 0.0
  %v3283 = vsub.f32 %v3204, %v3241
  %v3284 = vsub.f32 %v3205, %v3241
  %v3285 = vsub.f32 %v3206, %v3241
  %v3286 = vsub.f32 %v3207, %v3241
  %v3287 = vsub.f32 %v3208, %v3241
  %v3288 = vsub.f32 %v3209, %v3241
  %v3289 = vsub.f32 %v3210, %v3241
  %v3290 = vsub.f32 %v3211, %v3241
  %v3291 = vsub.f32 %v3212, %v3241
  %v3292 = vsub.f32 %v3213, %v3241
  %v3293 = vsub.f32 %v3214, %v3241
  %v3294 = vsub.f32 %v3215, %v3241
  %v3295 = vsub.f32 %v3216, %v3241
  %v3296 = vsub.f32 %v3217, %v3241
  %v3297 = vsub.f32 %v3218, %v3241
  %v3298 = vsub.f32 %v3219, %v3241
  %v3299 = vadd.f32 %v3282, 1e-05
  %v3300 = vrsqrt.pop %v3299
  %v3301 = vmul.f32 %v3283, %v3300
  %v3302 = vmul.f32 %v3284, %v3300
  %v3303 = vmul.f32 %v3285, %v3300
  %v3304 = vmul.f32 %v3286, %v3300
  %v3305 = vmul.f32 %v3287, %v3300
  %v3306 = vmul.f32 %v3288, %v3300
  %v3307 = vmul.f32 %v3289, %v3300
  %v3308 = vmul.f32 %v3290, %v3300
  %v3309 = vmul.f32 %v3291, %v3300
  %v3310 = vmul.f32 %v3292, %v3300
  %v3311 = vmul.f32 %v3293, %v3300
  %v3312 = vmul.f32 %v3294, %v3300
  %v3313 = vmul.f32 %v3295, %v3300
  %v3314 = vmul.f32 %v3296, %v3300
  %v3315 = vmul.f32 %v3297, %v3300
  %v3316 = vmul.f32 %v3298, %v3300
  %v3317 = vlaneseq
  %v3318 = vshrl.u32 %v3317, 7
  %v3319 = vsub.s32 2, %v3318
  %v3320 = vrot.slane %v27, %v3319
  %v3321 = vmul.f32 %v3301, %v3320
  %v3322 = vmul.f32 %v3302, %v3320
  %v3323 = vmul.f32 %v3303, %v3320
  %v3324 = vmul.f32 %v3304, %v3320
  %v3325 = vmul.f32 %v3305, %v3320
  %v3326 = vmul.f32 %v3306, %v3320
  %v3327 = vmul.f32 %v3307, %v3320
  %v3328 = vmul.f32 %v3308, %v3320
  %v3329 = vmul.f32 %v3309, %v3320
  %v3330 = vmul.f32 %v3310, %v3320
  %v3331 = vmul.f32 %v3311, %v3320
  %v3332 = vmul.f32 %v3312, %v3320
  %v3333 = vmul.f32 %v3313, %v3320
  %v3334 = vmul.f32 %v3314, %v3320
  %v3335 = vmul.f32 %v3315, %v3320
  %v3336 = vmul.f32 %v3316, %v3320
  %v3337 = vlaneseq
  %v3338 = vshrl.u32 %v3337, 7
  %v3339 = vsub.s32 3, %v3338
  %v3340 = vrot.slane %v27, %v3339
  %v3341 = vadd.f32 %v3321, %v3340
  %v3342 = vadd.f32 %v3322, %v3340
  %v3343 = vadd.f32 %v3323, %v3340
  %v3344 = vadd.f32 %v3324, %v3340
  %v3345 = vadd.f32 %v3325, %v3340
  %v3346 = vadd.f32 %v3326, %v3340
  %v3347 = vadd.f32 %v3327, %v3340
  %v3348 = vadd.f32 %v3328, %v3340
  %v3349 = vadd.f32 %v3329, %v3340
  %v3350 = vadd.f32 %v3330, %v3340
  %v3351 = vadd.f32 %v3331, %v3340
  %v3352 = vadd.f32 %v3332, %v3340
  %v3353 = vadd.f32 %v3333, %v3340
  %v3354 = vadd.f32 %v3334, %v3340
  %v3355 = vadd.f32 %v3335, %v3340
  %v3356 = vadd.f32 %v3336, %v3340
  %v3357 = vld [vmem:[%s1] sm:$0xf]
  %v3358 = vld [vmem:[%s1 + $0x4] sm:$0xf]
  %v3359 = vld [vmem:[%s1 + $0x8] sm:$0xf]
  %v3360 = vld [vmem:[%s1 + $0xc] sm:$0xf]
  %v3361 = vld [vmem:[%s1 + $0x10] sm:$0xf]
  %v3362 = vld [vmem:[%s1 + $0x14] sm:$0xf]
  %v3363 = vld [vmem:[%s1 + $0x18] sm:$0xf]
  %v3364 = vld [vmem:[%s1 + $0x1c] sm:$0xf]
  %v3365 = vld [vmem:[%s1 + $0x20] sm:$0xf]
  %v3366 = vld [vmem:[%s1 + $0x24] sm:$0xf]
  %v3367 = vld [vmem:[%s1 + $0x28] sm:$0xf]
  %v3368 = vld [vmem:[%s1 + $0x2c] sm:$0xf]
  %v3369 = vld [vmem:[%s1 + $0x30] sm:$0xf]
  %v3370 = vld [vmem:[%s1 + $0x34] sm:$0xf]
  %v3371 = vld [vmem:[%s1 + $0x38] sm:$0xf]
  %v3372 = vld [vmem:[%s1 + $0x3c] sm:$0xf]
  %v3373 = vld [vmem:[%s4] sm:$0x3]
  %v3390 = vunpack.c.l.b16 %v3357
  %v3391 = vunpack.c.l.b16 %v3358
  %v3392 = vunpack.c.l.b16 %v3359
  %v3393 = vunpack.c.l.b16 %v3360
  %v3394 = vunpack.c.l.b16 %v3361
  %v3395 = vunpack.c.l.b16 %v3362
  %v3396 = vunpack.c.l.b16 %v3363
  %v3397 = vunpack.c.l.b16 %v3364
  %v3398 = vunpack.c.l.b16 %v3365
  %v3399 = vunpack.c.l.b16 %v3366
  %v3400 = vunpack.c.l.b16 %v3367
  %v3401 = vunpack.c.l.b16 %v3368
  %v3402 = vunpack.c.l.b16 %v3369
  %v3403 = vunpack.c.l.b16 %v3370
  %v3404 = vunpack.c.l.b16 %v3371
  %v3405 = vunpack.c.l.b16 %v3372
  %v3406 = vpack.c.b16 %v3391, %v3390
  %v3407 = vpack.c.b16 %v3393, %v3392
  %v3408 = vpack.c.b16 %v3395, %v3394
  %v3409 = vpack.c.b16 %v3397, %v3396
  %v3410 = vpack.c.b16 %v3399, %v3398
  %v3411 = vpack.c.b16 %v3401, %v3400
  %v3412 = vpack.c.b16 %v3403, %v3402
  %v3413 = vpack.c.b16 %v3405, %v3404
  %vm3414 = vcmask 31744
  %v3416 = vsel %vm3414, %v3406, 0
  %v3419 = vsel %vm3414, %v3407, 0
  %v3422 = vsel %vm3414, %v3408, 0
  %v3425 = vsel %vm3414, %v3409, 0
  %v3428 = vsel %vm3414, %v3410, 0
  %v3431 = vsel %vm3414, %v3411, 0
  %v3434 = vsel %vm3414, %v3412, 0
  %v3437 = vsel %vm3414, %v3413, 0
  %v3440 = vsel %vm129, %v3373, 0
  %3442 = vmatprep.subr.bf16.mxu0 0
  %3443 = vmatpush1.bf16.msra.mxu0 %v3440
  %3444 = vmatprep.subr.bf16.mxu0 0
  %3445 = vmatpush1.bf16.msra.mxu0 0
  %3446 = vmatprep.subr.bf16.mxu0 0
  %3447 = vmatpush1.bf16.msra.mxu0 0
  %3448 = vmatprep.subr.bf16.mxu0 0
  %3449 = vmatpush1.bf16.msra.mxu0 0
  %3450 = vmatprep.subr.bf16.mxu0 0
  %3451 = vmatpush1.bf16.msra.mxu0 0
  %3452 = vmatprep.subr.bf16.mxu0 0
  %3453 = vmatpush1.bf16.msra.mxu0 0
  %3454 = vmatprep.subr.bf16.mxu0 0
  %3455 = vmatpush1.bf16.msra.mxu0 0
  %3456 = vmatprep.subr.bf16.mxu0 0
  %3457 = vmatpush1.bf16.msra.mxu0 0
  %3458 = vmatprep.subr.bf16.mxu0 0
  %3459 = vmatpush1.bf16.msra.mxu0 0
  %3460 = vmatprep.subr.bf16.mxu0 0
  %3461 = vmatpush1.bf16.msra.mxu0 0
  %3462 = vmatprep.subr.bf16.mxu0 0
  %3463 = vmatpush1.bf16.msra.mxu0 0
  %3464 = vmatprep.subr.bf16.mxu0 0
  %3465 = vmatpush1.bf16.msra.mxu0 0
  %3466 = vmatprep.subr.bf16.mxu0 0
  %3467 = vmatpush1.bf16.msra.mxu0 0
  %3468 = vmatprep.subr.bf16.mxu0 0
  %3469 = vmatpush1.bf16.msra.mxu0 0
  %3470 = vmatprep.subr.bf16.mxu0 0
  %3471 = vmatpush1.bf16.msra.mxu0 0
  %3472 = vmatprep.subr.bf16.mxu0 0
  %3473 = vmatpush1.bf16.msra.mxu0 0
  %3474 = vmatprep.mubr.bf16.mxu0 0
  %3475 = vmatmul.mubr.bf16.gmra.mrb[0].mxu0 %v3416
  %v3476 = vpop.f32.mrb[0].mxu0
  %v3477 = vadd.f32 0.0, %v3476
  %v3478 = vpop.f32.mrb[0].mxu0
  %v3479 = vpop.f32.mrb[0].mxu0
  %v3480 = vadd.f32 0.0, %v3479
  %v3481 = vpop.f32.mrb[0].mxu0
  %3482 = vmatprep.mubr.bf16.mxu0 0
  %3483 = vmatmul.mubr.bf16.gmra.mrb[0].mxu0 %v3419
  %v3484 = vpop.f32.mrb[0].mxu0
  %v3485 = vadd.f32 0.0, %v3484
  %v3486 = vpop.f32.mrb[0].mxu0
  %v3487 = vpop.f32.mrb[0].mxu0
  %v3488 = vadd.f32 0.0, %v3487
  %v3489 = vpop.f32.mrb[0].mxu0
  %3490 = vmatprep.mubr.bf16.mxu0 0
  %3491 = vmatmul.mubr.bf16.gmra.mrb[0].mxu0 %v3422
  %v3492 = vpop.f32.mrb[0].mxu0
  %v3493 = vadd.f32 0.0, %v3492
  %v3494 = vpop.f32.mrb[0].mxu0
  %v3495 = vpop.f32.mrb[0].mxu0
  %v3496 = vadd.f32 0.0, %v3495
  %v3497 = vpop.f32.mrb[0].mxu0
  %3498 = vmatprep.mubr.bf16.mxu0 0
  %3499 = vmatmul.mubr.bf16.gmra.mrb[0].mxu0 %v3425
  %v3500 = vpop.f32.mrb[0].mxu0
  %v3501 = vadd.f32 0.0, %v3500
  %v3502 = vpop.f32.mrb[0].mxu0
  %v3503 = vpop.f32.mrb[0].mxu0
  %v3504 = vadd.f32 0.0, %v3503
  %v3505 = vpop.f32.mrb[0].mxu0
  %3506 = vmatprep.mubr.bf16.mxu0 0
  %3507 = vmatmul.mubr.bf16.gmra.mrb[0].mxu0 %v3428
  %v3508 = vpop.f32.mrb[0].mxu0
  %v3509 = vadd.f32 0.0, %v3508
  %v3510 = vpop.f32.mrb[0].mxu0
  %v3511 = vpop.f32.mrb[0].mxu0
  %v3512 = vadd.f32 0.0, %v3511
  %v3513 = vpop.f32.mrb[0].mxu0
  %3514 = vmatprep.mubr.bf16.mxu0 0
  %3515 = vmatmul.mubr.bf16.gmra.mrb[0].mxu0 %v3431
  %v3516 = vpop.f32.mrb[0].mxu0
  %v3517 = vadd.f32 0.0, %v3516
  %v3518 = vpop.f32.mrb[0].mxu0
  %v3519 = vpop.f32.mrb[0].mxu0
  %v3520 = vadd.f32 0.0, %v3519
  %v3521 = vpop.f32.mrb[0].mxu0
  %3522 = vmatprep.mubr.bf16.mxu0 0
  %3523 = vmatmul.mubr.bf16.gmra.mrb[0].mxu0 %v3434
  %v3524 = vpop.f32.mrb[0].mxu0
  %v3525 = vadd.f32 0.0, %v3524
  %v3526 = vpop.f32.mrb[0].mxu0
  %v3527 = vpop.f32.mrb[0].mxu0
  %v3528 = vadd.f32 0.0, %v3527
  %v3529 = vpop.f32.mrb[0].mxu0
  %3530 = vmatprep.mubr.bf16.mxu0 0
  %3531 = vmatmul.mubr.bf16.gmra.mrb[0].mxu0 %v3437
  %v3532 = vpop.f32.mrb[0].mxu0
  %v3533 = vadd.f32 0.0, %v3532
  %v3534 = vpop.f32.mrb[0].mxu0
  %v3535 = vpop.f32.mrb[0].mxu0
  %v3536 = vadd.f32 0.0, %v3535
  %v3537 = vpop.f32.mrb[0].mxu0
  %3538 = vdwg.mxu0
  %v3539 = vadd.f32 %v3477, %v3480
  %v3540 = vadd.f32 %v3539, %v3485
  %v3541 = vadd.f32 %v3540, %v3488
  %v3542 = vadd.f32 %v3541, %v3493
  %v3543 = vadd.f32 %v3542, %v3496
  %v3544 = vadd.f32 %v3543, %v3501
  %v3545 = vadd.f32 %v3544, %v3504
  %v3546 = vadd.f32 %v3545, %v3509
  %v3547 = vadd.f32 %v3546, %v3512
  %v3548 = vadd.f32 %v3547, %v3517
  %v3549 = vadd.f32 %v3548, %v3520
  %v3550 = vadd.f32 %v3549, %v3525
  %v3551 = vadd.f32 %v3550, %v3528
  %v3552 = vadd.f32 %v3551, %v3533
  %v3553 = vadd.f32 %v3552, %v3536
  %v3554 = vrot.slane %v3553, 4
  %v3555 = vadd.f32 %v3553, %v3554
  %v3556 = vrot.slane %v3555, 2
  %v3557 = vadd.f32 %v3555, %v3556
  %v3558 = vrot.slane %v3557, 1
  %v3559 = vadd.f32 %v3557, %v3558
  %v3560 = vmul.f32 %v3559, 0.0078125
  %v3561 = vmul.f32 %v3477, %v3477
  %v3562 = vmul.f32 %v3480, %v3480
  %v3563 = vmul.f32 %v3485, %v3485
  %v3564 = vmul.f32 %v3488, %v3488
  %v3565 = vmul.f32 %v3493, %v3493
  %v3566 = vmul.f32 %v3496, %v3496
  %v3567 = vmul.f32 %v3501, %v3501
  %v3568 = vmul.f32 %v3504, %v3504
  %v3569 = vmul.f32 %v3509, %v3509
  %v3570 = vmul.f32 %v3512, %v3512
  %v3571 = vmul.f32 %v3517, %v3517
  %v3572 = vmul.f32 %v3520, %v3520
  %v3573 = vmul.f32 %v3525, %v3525
  %v3574 = vmul.f32 %v3528, %v3528
  %v3575 = vmul.f32 %v3533, %v3533
  %v3576 = vmul.f32 %v3536, %v3536
  %v3577 = vadd.f32 %v3561, %v3562
  %v3578 = vadd.f32 %v3577, %v3563
  %v3579 = vadd.f32 %v3578, %v3564
  %v3580 = vadd.f32 %v3579, %v3565
  %v3581 = vadd.f32 %v3580, %v3566
  %v3582 = vadd.f32 %v3581, %v3567
  %v3583 = vadd.f32 %v3582, %v3568
  %v3584 = vadd.f32 %v3583, %v3569
  %v3585 = vadd.f32 %v3584, %v3570
  %v3586 = vadd.f32 %v3585, %v3571
  %v3587 = vadd.f32 %v3586, %v3572
  %v3588 = vadd.f32 %v3587, %v3573
  %v3589 = vadd.f32 %v3588, %v3574
  %v3590 = vadd.f32 %v3589, %v3575
  %v3591 = vadd.f32 %v3590, %v3576
  %v3592 = vrot.slane %v3591, 4
  %v3593 = vadd.f32 %v3591, %v3592
  %v3594 = vrot.slane %v3593, 2
  %v3595 = vadd.f32 %v3593, %v3594
  %v3596 = vrot.slane %v3595, 1
  %v3597 = vadd.f32 %v3595, %v3596
  %v3598 = vmul.f32 %v3597, 0.0078125
  %v3599 = vmul.f32 %v3560, %v3560
  %v3600 = vsub.f32 %v3598, %v3599
  %v3601 = vmax.f32 %v3600, 0.0
  %v3602 = vsub.f32 %v3477, %v3560
  %v3603 = vsub.f32 %v3480, %v3560
  %v3604 = vsub.f32 %v3485, %v3560
  %v3605 = vsub.f32 %v3488, %v3560
  %v3606 = vsub.f32 %v3493, %v3560
  %v3607 = vsub.f32 %v3496, %v3560
  %v3608 = vsub.f32 %v3501, %v3560
  %v3609 = vsub.f32 %v3504, %v3560
  %v3610 = vsub.f32 %v3509, %v3560
  %v3611 = vsub.f32 %v3512, %v3560
  %v3612 = vsub.f32 %v3517, %v3560
  %v3613 = vsub.f32 %v3520, %v3560
  %v3614 = vsub.f32 %v3525, %v3560
  %v3615 = vsub.f32 %v3528, %v3560
  %v3616 = vsub.f32 %v3533, %v3560
  %v3617 = vsub.f32 %v3536, %v3560
  %v3618 = vadd.f32 %v3601, 1e-05
  %v3619 = vrsqrt.pop %v3618
  %v3620 = vmul.f32 %v3602, %v3619
  %v3621 = vmul.f32 %v3603, %v3619
  %v3622 = vmul.f32 %v3604, %v3619
  %v3623 = vmul.f32 %v3605, %v3619
  %v3624 = vmul.f32 %v3606, %v3619
  %v3625 = vmul.f32 %v3607, %v3619
  %v3626 = vmul.f32 %v3608, %v3619
  %v3627 = vmul.f32 %v3609, %v3619
  %v3628 = vmul.f32 %v3610, %v3619
  %v3629 = vmul.f32 %v3611, %v3619
  %v3630 = vmul.f32 %v3612, %v3619
  %v3631 = vmul.f32 %v3613, %v3619
  %v3632 = vmul.f32 %v3614, %v3619
  %v3633 = vmul.f32 %v3615, %v3619
  %v3634 = vmul.f32 %v3616, %v3619
  %v3635 = vmul.f32 %v3617, %v3619
  %v3636 = vlaneseq
  %v3637 = vshrl.u32 %v3636, 7
  %v3638 = vsub.s32 4, %v3637
  %v3639 = vrot.slane %v27, %v3638
  %v3640 = vmul.f32 %v3620, %v3639
  %v3641 = vmul.f32 %v3621, %v3639
  %v3642 = vmul.f32 %v3622, %v3639
  %v3643 = vmul.f32 %v3623, %v3639
  %v3644 = vmul.f32 %v3624, %v3639
  %v3645 = vmul.f32 %v3625, %v3639
  %v3646 = vmul.f32 %v3626, %v3639
  %v3647 = vmul.f32 %v3627, %v3639
  %v3648 = vmul.f32 %v3628, %v3639
  %v3649 = vmul.f32 %v3629, %v3639
  %v3650 = vmul.f32 %v3630, %v3639
  %v3651 = vmul.f32 %v3631, %v3639
  %v3652 = vmul.f32 %v3632, %v3639
  %v3653 = vmul.f32 %v3633, %v3639
  %v3654 = vmul.f32 %v3634, %v3639
  %v3655 = vmul.f32 %v3635, %v3639
  %v3656 = vlaneseq
  %v3657 = vshrl.u32 %v3656, 7
  %v3658 = vsub.s32 5, %v3657
  %v3659 = vrot.slane %v27, %v3658
  %v3660 = vadd.f32 %v3640, %v3659
  %v3661 = vadd.f32 %v3641, %v3659
  %v3662 = vadd.f32 %v3642, %v3659
  %v3663 = vadd.f32 %v3643, %v3659
  %v3664 = vadd.f32 %v3644, %v3659
  %v3665 = vadd.f32 %v3645, %v3659
  %v3666 = vadd.f32 %v3646, %v3659
  %v3667 = vadd.f32 %v3647, %v3659
  %v3668 = vadd.f32 %v3648, %v3659
  %v3669 = vadd.f32 %v3649, %v3659
  %v3670 = vadd.f32 %v3650, %v3659
  %v3671 = vadd.f32 %v3651, %v3659
  %v3672 = vadd.f32 %v3652, %v3659
  %v3673 = vadd.f32 %v3653, %v3659
  %v3674 = vadd.f32 %v3654, %v3659
  %v3675 = vadd.f32 %v3655, %v3659
  %v3676 = vadd.f32 %v3341, %v3660
  %v3677 = vadd.f32 %v3342, %v3661
  %v3678 = vadd.f32 %v3343, %v3662
  %v3679 = vadd.f32 %v3344, %v3663
  %v3680 = vadd.f32 %v3345, %v3664
  %v3681 = vadd.f32 %v3346, %v3665
  %v3682 = vadd.f32 %v3347, %v3666
  %v3683 = vadd.f32 %v3348, %v3667
  %v3684 = vadd.f32 %v3349, %v3668
  %v3685 = vadd.f32 %v3350, %v3669
  %v3686 = vadd.f32 %v3351, %v3670
  %v3687 = vadd.f32 %v3352, %v3671
  %v3688 = vadd.f32 %v3353, %v3672
  %v3689 = vadd.f32 %v3354, %v3673
  %v3690 = vadd.f32 %v3355, %v3674
  %v3691 = vadd.f32 %v3356, %v3675
  %v3692 = vmax.f32 %v3676, 0.0
  %v3693 = vmax.f32 %v3677, 0.0
  %v3694 = vmax.f32 %v3678, 0.0
  %v3695 = vmax.f32 %v3679, 0.0
  %v3696 = vmax.f32 %v3680, 0.0
  %v3697 = vmax.f32 %v3681, 0.0
  %v3698 = vmax.f32 %v3682, 0.0
  %v3699 = vmax.f32 %v3683, 0.0
  %v3700 = vmax.f32 %v3684, 0.0
  %v3701 = vmax.f32 %v3685, 0.0
  %v3702 = vmax.f32 %v3686, 0.0
  %v3703 = vmax.f32 %v3687, 0.0
  %v3704 = vmax.f32 %v3688, 0.0
  %v3705 = vmax.f32 %v3689, 0.0
  %v3706 = vmax.f32 %v3690, 0.0
  %v3707 = vmax.f32 %v3691, 0.0
  %3708 = vst [vmem:[%s7] sm:$0xff] %v3692
  %3709 = vst [vmem:[%s7 + $0x8] sm:$0xff] %v3693
  %3710 = vst [vmem:[%s7 + $0x10] sm:$0xff] %v3694
  %3711 = vst [vmem:[%s7 + $0x18] sm:$0xff] %v3695
  %3712 = vst [vmem:[%s7 + $0x20] sm:$0xff] %v3696
  %3713 = vst [vmem:[%s7 + $0x28] sm:$0xff] %v3697
  %3714 = vst [vmem:[%s7 + $0x30] sm:$0xff] %v3698
  %3715 = vst [vmem:[%s7 + $0x38] sm:$0xff] %v3699
  %3716 = vst [vmem:[%s7 + $0x40] sm:$0xff] %v3700
  %3717 = vst [vmem:[%s7 + $0x48] sm:$0xff] %v3701
  %3718 = vst [vmem:[%s7 + $0x50] sm:$0xff] %v3702
  %3719 = vst [vmem:[%s7 + $0x58] sm:$0xff] %v3703
  %3720 = vst [vmem:[%s7 + $0x60] sm:$0xff] %v3704
  %3721 = vst [vmem:[%s7 + $0x68] sm:$0xff] %v3705
  %3722 = vst [vmem:[%s7 + $0x70] sm:$0xff] %v3706
  %3723 = vst [vmem:[%s7 + $0x78] sm:$0xff] %v3707
  // Predicated region
  $region30: #{_lambda_.1} parent=0 // pred_check
    _
  $region31: #{_lambda_.1} parent=0 // pred_check_branch
    %3725 = sbr.rel (0) target = $region33
  $region32: #{_lambda_.1} parent=0 // pred_region
    _
  $region33: #{_lambda_.1} parent=0 // pred_fallthru
    _
  // Predicated region
  $region34: #{_lambda_.1} parent=0 // pred_check
    _
  $region35: #{_lambda_.1} parent=0 // pred_check_branch
    %3727 = sbr.rel (0) target = $region37
  $region36: #{_lambda_.1} parent=0 // pred_region
    _
  $region37: #{_lambda_.1} parent=0 // pred_fallthru
    _

</llo_original>
